<compile_context>
chip_gen: v5e
topology: v5e:2x2
jax: 0.10.0
libtpu: 0.0.40
codegen_flags: <defaults>
</compile_context>

<pallas_src>
import jax
import jax.numpy as jnp
from jax.experimental import pallas as pl
from jax.experimental.pallas import tpu as pltpu

EPS = 1e-5


def conv_bn_relu_kernel(x_ref, w_ref, gb_ref, o_ref):
    # x_ref:  [Cin, M]  f32   (M = N*H*W, full extent, native NCHW reshape)
    # w_ref:  [Cb, Cin] f32   (block of output channels)
    # gb_ref: [Cb, 2]   f32   (col 0 = gamma, col 1 = beta)
    # o_ref:  [Cb, M]   f32
    #
    # Cast to bf16 in-kernel (cheap VPU pass); 1x1 conv in native NCHW layout == W @ X
    # on the MXU with f32 accumulation.
    x_bf = x_ref[...].astype(jnp.bfloat16)
    w_bf = w_ref[...].astype(jnp.bfloat16)
    y = jnp.dot(w_bf, x_bf, preferred_element_type=jnp.float32)

    # Training-mode BatchNorm with centered (two-pass) variance: per-channel reduction
    # over the lane (pixel) axis.  y is VMEM-resident so the second pass is free.
    m = jnp.float32(y.shape[1])
    mean = jnp.sum(y, axis=1, keepdims=True) / m            # [Cb, 1]
    yc = y - mean
    var = jnp.sum(yc * yc, axis=1, keepdims=True) / m       # [Cb, 1]
    inv_std = jax.lax.rsqrt(var + EPS)                      # EUP path

    gamma = gb_ref[:, 0:1]                                   # [Cb, 1]
    beta = gb_ref[:, 1:2]                                    # [Cb, 1]
    scale = gamma * inv_std                                  # [Cb, 1]
    # One FMA per element + ReLU.
    o_ref[...] = jnp.maximum(yc * scale + beta, 0.0).astype(o_ref.dtype)


def _is_multi_tensorcore():
    """True on chips whose grid 'parallel' axes shard across >1 TensorCore (v7x, v4, v5p)."""
    try:
        kind = jax.devices()[0].device_kind.lower()
    except Exception:
        return False
    return ("v7" in kind) or ("v4" in kind) or ("v5p" in kind)


def conv2d_bn_relu(x_nchw, weight_oi, gamma, beta):
    """Fused Conv2d(1x1, no bias) + BatchNorm2d(batch stats) + ReLU.

    x_nchw:    [N, Cin, H, W]  f32
    weight_oi: [Cout, Cin]     f32 (1x1 conv kernel with the trailing 1x1 dims squeezed)
    gamma, beta: [Cout]        f32
    """
    N, Cin, H, W = x_nchw.shape
    Cout = weight_oi.shape[0]
    M = N * H * W

    # Native-layout operands, f32 (no wrapper-side convert kernels).  For N == 1 (the
    # module's shape) the transpose/reshape below is a pure no-op relayout.
    x2d = jnp.transpose(x_nchw, (1, 0, 2, 3)).reshape(Cin, M).astype(jnp.float32)
    w2d = weight_oi.astype(jnp.float32)                        # [Cout, Cin]
    gb = jnp.stack([gamma, beta], axis=1).astype(jnp.float32)  # [Cout, 2]

    # Split output channels across the grid only when >1 TensorCore can actually use it
    # (BN stats are per-channel, so the split needs no cross-core reduction).
    if _is_multi_tensorcore() and Cout % 2 == 0 and (Cout // 2) % 8 == 0:
        cb = Cout // 2
    else:
        cb = Cout
    grid = (Cout // cb,)

    flops = 2 * Cout * Cin * M
    bytes_accessed = (Cin * M * 4) * (Cout // cb) + Cout * Cin * 4 + Cout * 2 * 4 + Cout * M * 4

    y2d = pl.pallas_call(
        conv_bn_relu_kernel,
        out_shape=jax.ShapeDtypeStruct((Cout, M), jnp.float32),
        grid=grid,
        in_specs=[
            pl.BlockSpec((Cin, M), lambda i: (0, 0)),          # X (same block every step)
            pl.BlockSpec((cb, Cin), lambda i: (i, 0)),         # W block
            pl.BlockSpec((cb, 2), lambda i: (i, 0)),           # packed gamma/beta block
        ],
        out_specs=pl.BlockSpec((cb, M), lambda i: (i, 0)),
        compiler_params=pltpu.CompilerParams(
            dimension_semantics=("parallel",)),
        cost_estimate=pl.CostEstimate(
            flops=flops, bytes_accessed=bytes_accessed, transcendentals=Cout),
    )(x2d, w2d, gb)

    # [Cout, N*H*W] -> NCHW (again a no-op relayout for N == 1).
    return jnp.transpose(y2d.reshape(Cout, N, H, W), (1, 0, 2, 3))

# TODO(synk): the PyTorch BatchNorm2d also updates running_mean/running_var (momentum=0.1)
# as a training-time side effect; only the forward output (batch-stat normalization) is
# produced here.


def reference(x_nchw, weight_oi, gamma, beta, *, bf16_inputs):
    """Pure-JAX reference. bf16_inputs=True mirrors the kernel's in-MXU bf16 precision."""
    N, Cin, H, W = x_nchw.shape
    Cout = weight_oi.shape[0]
    x2d = jnp.transpose(x_nchw, (0, 2, 3, 1)).reshape(-1, Cin)
    w = weight_oi
    if bf16_inputs:
        x2d = x2d.astype(jnp.bfloat16).astype(jnp.float32)
        w = w.astype(jnp.bfloat16).astype(jnp.float32)
    y = x2d @ w.T
    mean = jnp.mean(y, axis=0, keepdims=True)
    var = jnp.mean((y - mean) ** 2, axis=0, keepdims=True)
    out = (y - mean) / jnp.sqrt(var + EPS) * gamma + beta
    out = jnp.maximum(out, 0.0)
    return jnp.transpose(out.reshape(N, H, W, Cout), (0, 3, 1, 2))


if __name__ == "__main__":
    # Shapes from the module: x311 ~ [1, 1536, 14, 14], Conv2d(1536 -> 192, 1x1).
    N, Cin, H, W = 1, 1536, 14, 14
    Cout = 192

    key = jax.random.PRNGKey(0)
    kx, kw = jax.random.split(key)

    x = jax.random.normal(kx, (N, Cin, H, W), dtype=jnp.float32)
    weight = jax.random.normal(kw, (Cout, Cin), dtype=jnp.float32) * 0.02
    gamma = jnp.ones((Cout,), dtype=jnp.float32)   # BatchNorm default affine init
    beta = jnp.zeros((Cout,), dtype=jnp.float32)

    out = jax.block_until_ready(conv2d_bn_relu(x, weight, gamma, beta))
    assert out.shape == (N, Cout, H, W), out.shape

    # Tight check against a reference that uses the same bf16 matmul precision as the kernel.
    ref_bf16 = reference(x, weight, gamma, beta, bf16_inputs=True)
    err = float(jnp.max(jnp.abs(out - ref_bf16)))
    assert jnp.allclose(out, ref_bf16, atol=2e-3, rtol=2e-3), err

    # Loose sanity check against the full-f32 reference (difference = bf16 MXU precision only).
    ref_f32 = reference(x, weight, gamma, beta, bf16_inputs=False)
    err32 = float(jnp.max(jnp.abs(out - ref_f32)))
    assert jnp.allclose(out, ref_f32, atol=5e-2, rtol=5e-2), err32

    print("KERNEL_OK")
</pallas_src>

<mosaic_0001>
module attributes {stable_mosaic.version = 11 : i64} {
  func.func @conv_bn_relu_kernel(%arg0: i32, %arg1: memref<1536x196xf32, #tpu.memory_space<vmem>>, %arg2: memref<192x1536xf32, #tpu.memory_space<vmem>>, %arg3: memref<192x2xf32, #tpu.memory_space<vmem>>, %arg4: memref<192x196xf32, #tpu.memory_space<vmem>>) attributes {dimension_semantics = [#tpu.dimension_semantics<parallel>], iteration_bounds = array<i64: 1>, scalar_prefetch = 0 : i64, scratch_operands = 0 : i64, tpu.core_type = #tpu.core_type<tc>, window_params = [{pipeline_mode = #tpu.pipeline_mode<synchronous>, transform_indices = @transform_0, window_bounds = array<i64: 1536, 196>}, {transform_indices = @transform_1, window_bounds = array<i64: 192, 1536>}, {transform_indices = @transform_2, window_bounds = array<i64: 192, 2>}, {transform_indices = @transform_3, window_bounds = array<i64: 192, 196>}]} {
    %c0 = arith.constant 0 : index
    %c0_0 = arith.constant 0 : index
    %0 = vector.load %arg1[%c0, %c0_0] : memref<1536x196xf32, #tpu.memory_space<vmem>>, vector<1536x196xf32>
    %1 = arith.truncf %0 : vector<1536x196xf32> to vector<1536x196xbf16>
    %c0_1 = arith.constant 0 : index
    %c0_2 = arith.constant 0 : index
    %2 = vector.load %arg2[%c0_1, %c0_2] : memref<192x1536xf32, #tpu.memory_space<vmem>>, vector<192x1536xf32>
    %3 = arith.truncf %2 : vector<192x1536xf32> to vector<192x1536xbf16>
    %cst = arith.constant dense<0.000000e+00> : vector<192x196xf32>
    %4 = tpu.matmul %3, %1, %cst {dimension_numbers = #tpu.dot_dimension_numbers<[1], [0], [0], [1], [0, 0, 1, 1], [], []>} : vector<192x1536xbf16>, vector<1536x196xbf16>, vector<192x196xf32> -> vector<192x196xf32>
    %cst_3 = arith.constant dense<0.000000e+00> : vector<192xf32>
    %5 = vector.multi_reduction <add>, %4, %cst_3 [1] : vector<192x196xf32> to vector<192xf32>
    %6 = vector.shape_cast %5 : vector<192xf32> to vector<192x1xf32>
    %cst_4 = arith.constant 1.960000e+02 : f32
    %7 = vector.broadcast %cst_4 : f32 to vector<192x1xf32>
    %8 = arith.divf %6, %7 : vector<192x1xf32>
    %9 = vector.broadcast %8 : vector<192x1xf32> to vector<192x196xf32>
    %10 = arith.subf %4, %9 : vector<192x196xf32>
    %11 = arith.mulf %10, %10 : vector<192x196xf32>
    %cst_5 = arith.constant dense<0.000000e+00> : vector<192xf32>
    %12 = vector.multi_reduction <add>, %11, %cst_5 [1] : vector<192x196xf32> to vector<192xf32>
    %13 = vector.shape_cast %12 : vector<192xf32> to vector<192x1xf32>
    %cst_6 = arith.constant 1.960000e+02 : f32
    %14 = vector.broadcast %cst_6 : f32 to vector<192x1xf32>
    %15 = arith.divf %13, %14 : vector<192x1xf32>
    %cst_7 = arith.constant 9.99999974E-6 : f32
    %16 = vector.broadcast %cst_7 : f32 to vector<192x1xf32>
    %17 = arith.addf %15, %16 : vector<192x1xf32>
    %18 = math.rsqrt %17 : vector<192x1xf32>
    %c0_8 = arith.constant 0 : index
    %c0_9 = arith.constant 0 : index
    %19 = vector.load %arg3[%c0_8, %c0_9] : memref<192x2xf32, #tpu.memory_space<vmem>>, vector<192x1xf32>
    %c0_10 = arith.constant 0 : index
    %c1 = arith.constant 1 : index
    %20 = vector.load %arg3[%c0_10, %c1] : memref<192x2xf32, #tpu.memory_space<vmem>>, vector<192x1xf32>
    %21 = arith.mulf %19, %18 : vector<192x1xf32>
    %22 = vector.broadcast %21 : vector<192x1xf32> to vector<192x196xf32>
    %23 = arith.mulf %10, %22 : vector<192x196xf32>
    %24 = vector.broadcast %20 : vector<192x1xf32> to vector<192x196xf32>
    %25 = arith.addf %23, %24 : vector<192x196xf32>
    %cst_11 = arith.constant 0.000000e+00 : f32
    %26 = vector.broadcast %cst_11 : f32 to vector<192x196xf32>
    %27 = arith.maximumf %25, %26 : vector<192x196xf32>
    %c0_12 = arith.constant 0 : index
    %c0_13 = arith.constant 0 : index
    %28 = vector.load %arg4[%c0_12, %c0_13] : memref<192x196xf32, #tpu.memory_space<vmem>>, vector<192x196xf32>
    tpu.vector_store %arg4[%c0_12, %c0_13], %27 {strides = array<i32>} : memref<192x196xf32, #tpu.memory_space<vmem>>, vector<192x196xf32>,
    return
  }
  func.func @transform_0(%arg0: i32) -> (i32, i32) {
    %c0_i32 = arith.constant 0 : i32
    %c0_i32_0 = arith.constant 0 : i32
    %c0_i32_1 = arith.constant 0 : i32
    return %c0_i32, %c0_i32_0 : i32, i32
  }
  func.func @transform_1(%arg0: i32) -> (i32, i32) {
    %c0_i32 = arith.constant 0 : i32
    %c0_i32_0 = arith.constant 0 : i32
    return %arg0, %c0_i32 : i32, i32
  }
  func.func @transform_2(%arg0: i32) -> (i32, i32) {
    %c0_i32 = arith.constant 0 : i32
    %c0_i32_0 = arith.constant 0 : i32
    return %arg0, %c0_i32 : i32, i32
  }
  func.func @transform_3(%arg0: i32) -> (i32, i32) {
    %c0_i32 = arith.constant 0 : i32
    %c0_i32_0 = arith.constant 0 : i32
    return %arg0, %c0_i32 : i32, i32
  }
}

</mosaic_0001>

<llo_original>
// kernel: tpu_custom_call.1
$region0: #{tpu_custom_call.1}
  #allocation0 [shape = 'u32[]', space=smem, size = 0x4, offset = 0x4, fixed_abs, tag = 'smem constant byte address 0x4 - core index']
  #allocation1 [shape = 'u32[72,128]{1,0:T(1,128)}', space=vmem, size = 0x9000, scoped, tag = 'internal scratch']
  %s0 = inlined_call_operand.vmem [shape: f32[1536,196], index: 0, kind: input, shape index: {}]
  %s1 = inlined_call_operand.vmem [shape: f32[192,1536], index: 1, kind: input, shape index: {}]
  %s2 = inlined_call_operand.vmem [shape: f32[192,2], index: 2, kind: input, shape index: {}]
  %s3 = inlined_call_operand.hbm [shape: f32[192,196], index: 3, kind: output, shape index: {}]
  %s4 = sld [smem:[#allocation0]]
  $region22: #{tpu_custom_call.1} parent=0
    _
  %s6 = ssub.s32 1, %s4
  %s7 = scalar_select 0, %s6, %s4
  $region1: #{tpu_custom_call.1} parent=0
    #allocation2 [shape = 'u8[196608]{0}', space=vmem, size = 0x30000, scoped, tag = 'output window, operand 0, single buffered']
    #allocation3 [shape = 's32[1]{0}', space=sflag, size = 0x4, scoped, tag = 'scoped memory for tpu_custom_call.1']
    %8 = vsyncpa [#allocation3], 0
    // Predicated region
    $region2: #{tpu_custom_call.1} parent=1 // pred_check
      _
    $region3: #{tpu_custom_call.1} parent=1 // pred_check_branch
      %10 = sbr.rel (0) target = $region5
    $region4: #{tpu_custom_call.1} parent=1 // pred_region
      _
    $region5: #{tpu_custom_call.1} parent=1 // pred_fallthru
      _
    // Predicated region
    $region6: #{tpu_custom_call.1} parent=1 // pred_check
      _
    $region7: #{tpu_custom_call.1} parent=1 // pred_check_branch
      %12 = sbr.rel (0) target = $region9
    $region8: #{tpu_custom_call.1} parent=1 // pred_region
      _
    $region9: #{tpu_custom_call.1} parent=1 // pred_fallthru
      _
    // Predicated region
    $region10: #{tpu_custom_call.1} parent=1 // pred_check
      _
    $region11: #{tpu_custom_call.1} parent=1 // pred_check_branch
      %14 = sbr.rel (0) target = $region13
    $region12: #{tpu_custom_call.1} parent=1 // pred_region
      _
    $region13: #{tpu_custom_call.1} parent=1 // pred_fallthru
      _
    %v15 = vld [vmem:[%s0] sm:$0xff]
    %v16 = vld [vmem:[%s0 + $0x8] sm:$0xff]
    %v17 = vld [vmem:[%s0 + $0x10] sm:$0xff]
    %v18 = vld [vmem:[%s0 + $0x18] sm:$0xff]
    %v19 = vld [vmem:[%s0 + $0x20] sm:$0xff]
    %v20 = vld [vmem:[%s0 + $0x28] sm:$0xff]
    %v21 = vld [vmem:[%s0 + $0x30] sm:$0xff]
    %v22 = vld [vmem:[%s0 + $0x38] sm:$0xff]
    %v23 = vld [vmem:[%s0 + $0x40] sm:$0xff]
    %v24 = vld [vmem:[%s0 + $0x48] sm:$0xff]
    %v25 = vld [vmem:[%s0 + $0x50] sm:$0xff]
    %v26 = vld [vmem:[%s0 + $0x58] sm:$0xff]
    %v27 = vld [vmem:[%s0 + $0x60] sm:$0xff]
    %v28 = vld [vmem:[%s0 + $0x68] sm:$0xff]
    %v29 = vld [vmem:[%s0 + $0x70] sm:$0xff]
    %v30 = vld [vmem:[%s0 + $0x78] sm:$0xff]
    %v31 = vld [vmem:[%s0 + $0x80] sm:$0xff]
    %v32 = vld [vmem:[%s0 + $0x88] sm:$0xff]
    %v33 = vld [vmem:[%s0 + $0x90] sm:$0xff]
    %v34 = vld [vmem:[%s0 + $0x98] sm:$0xff]
    %v35 = vld [vmem:[%s0 + $0xa0] sm:$0xff]
    %v36 = vld [vmem:[%s0 + $0xa8] sm:$0xff]
    %v37 = vld [vmem:[%s0 + $0xb0] sm:$0xff]
    %v38 = vld [vmem:[%s0 + $0xb8] sm:$0xff]
    %v39 = vld [vmem:[%s0 + $0xc0] sm:$0xff]
    %v40 = vld [vmem:[%s0 + $0xc8] sm:$0xff]
    %v41 = vld [vmem:[%s0 + $0xd0] sm:$0xff]
    %v42 = vld [vmem:[%s0 + $0xd8] sm:$0xff]
    %v43 = vld [vmem:[%s0 + $0xe0] sm:$0xff]
    %v44 = vld [vmem:[%s0 + $0xe8] sm:$0xff]
    %v45 = vld [vmem:[%s0 + $0xf0] sm:$0xff]
    %v46 = vld [vmem:[%s0 + $0xf8] sm:$0xff]
    %v47 = vld [vmem:[%s0 + $0x100] sm:$0xff]
    %v48 = vld [vmem:[%s0 + $0x108] sm:$0xff]
    %v49 = vld [vmem:[%s0 + $0x110] sm:$0xff]
    %v50 = vld [vmem:[%s0 + $0x118] sm:$0xff]
    %v51 = vld [vmem:[%s0 + $0x120] sm:$0xff]
    %v52 = vld [vmem:[%s0 + $0x128] sm:$0xff]
    %v53 = vld [vmem:[%s0 + $0x130] sm:$0xff]
    %v54 = vld [vmem:[%s0 + $0x138] sm:$0xff]
    %v55 = vld [vmem:[%s0 + $0x140] sm:$0xff]
    %v56 = vld [vmem:[%s0 + $0x148] sm:$0xff]
    %v57 = vld [vmem:[%s0 + $0x150] sm:$0xff]
    %v58 = vld [vmem:[%s0 + $0x158] sm:$0xff]
    %v59 = vld [vmem:[%s0 + $0x160] sm:$0xff]
    %v60 = vld [vmem:[%s0 + $0x168] sm:$0xff]
    %v61 = vld [vmem:[%s0 + $0x170] sm:$0xff]
    %v62 = vld [vmem:[%s0 + $0x178] sm:$0xff]
    %v63 = vld [vmem:[%s0 + $0x180] sm:$0xff]
    %v64 = vld [vmem:[%s0 + $0x188] sm:$0xff]
    %v65 = vld [vmem:[%s0 + $0x190] sm:$0xff]
    %v66 = vld [vmem:[%s0 + $0x198] sm:$0xff]
    %v67 = vld [vmem:[%s0 + $0x1a0] sm:$0xff]
    %v68 = vld [vmem:[%s0 + $0x1a8] sm:$0xff]
    %v69 = vld [vmem:[%s0 + $0x1b0] sm:$0xff]
    %v70 = vld [vmem:[%s0 + $0x1b8] sm:$0xff]
    %v71 = vld [vmem:[%s0 + $0x1c0] sm:$0xff]
    %v72 = vld [vmem:[%s0 + $0x1c8] sm:$0xff]
    %v73 = vld [vmem:[%s0 + $0x1d0] sm:$0xff]
    %v74 = vld [vmem:[%s0 + $0x1d8] sm:$0xff]
    %v75 = vld [vmem:[%s0 + $0x1e0] sm:$0xff]
    %v76 = vld [vmem:[%s0 + $0x1e8] sm:$0xff]
    %v77 = vld [vmem:[%s0 + $0x1f0] sm:$0xff]
    %v78 = vld [vmem:[%s0 + $0x1f8] sm:$0xff]
    %v79 = vld [vmem:[%s0 + $0x200] sm:$0xff]
    %v80 = vld [vmem:[%s0 + $0x208] sm:$0xff]
    %v81 = vld [vmem:[%s0 + $0x210] sm:$0xff]
    %v82 = vld [vmem:[%s0 + $0x218] sm:$0xff]
    %v83 = vld [vmem:[%s0 + $0x220] sm:$0xff]
    %v84 = vld [vmem:[%s0 + $0x228] sm:$0xff]
    %v85 = vld [vmem:[%s0 + $0x230] sm:$0xff]
    %v86 = vld [vmem:[%s0 + $0x238] sm:$0xff]
    %v87 = vld [vmem:[%s0 + $0x240] sm:$0xff]
    %v88 = vld [vmem:[%s0 + $0x248] sm:$0xff]
    %v89 = vld [vmem:[%s0 + $0x250] sm:$0xff]
    %v90 = vld [vmem:[%s0 + $0x258] sm:$0xff]
    %v91 = vld [vmem:[%s0 + $0x260] sm:$0xff]
    %v92 = vld [vmem:[%s0 + $0x268] sm:$0xff]
    %v93 = vld [vmem:[%s0 + $0x270] sm:$0xff]
    %v94 = vld [vmem:[%s0 + $0x278] sm:$0xff]
    %v95 = vld [vmem:[%s0 + $0x280] sm:$0xff]
    %v96 = vld [vmem:[%s0 + $0x288] sm:$0xff]
    %v97 = vld [vmem:[%s0 + $0x290] sm:$0xff]
    %v98 = vld [vmem:[%s0 + $0x298] sm:$0xff]
    %v99 = vld [vmem:[%s0 + $0x2a0] sm:$0xff]
    %v100 = vld [vmem:[%s0 + $0x2a8] sm:$0xff]
    %v101 = vld [vmem:[%s0 + $0x2b0] sm:$0xff]
    %v102 = vld [vmem:[%s0 + $0x2b8] sm:$0xff]
    %v103 = vld [vmem:[%s0 + $0x2c0] sm:$0xff]
    %v104 = vld [vmem:[%s0 + $0x2c8] sm:$0xff]
    %v105 = vld [vmem:[%s0 + $0x2d0] sm:$0xff]
    %v106 = vld [vmem:[%s0 + $0x2d8] sm:$0xff]
    %v107 = vld [vmem:[%s0 + $0x2e0] sm:$0xff]
    %v108 = vld [vmem:[%s0 + $0x2e8] sm:$0xff]
    %v109 = vld [vmem:[%s0 + $0x2f0] sm:$0xff]
    %v110 = vld [vmem:[%s0 + $0x2f8] sm:$0xff]
    %v111 = vld [vmem:[%s0 + $0x300] sm:$0xff]
    %v112 = vld [vmem:[%s0 + $0x308] sm:$0xff]
    %v113 = vld [vmem:[%s0 + $0x310] sm:$0xff]
    %v114 = vld [vmem:[%s0 + $0x318] sm:$0xff]
    %v115 = vld [vmem:[%s0 + $0x320] sm:$0xff]
    %v116 = vld [vmem:[%s0 + $0x328] sm:$0xff]
    %v117 = vld [vmem:[%s0 + $0x330] sm:$0xff]
    %v118 = vld [vmem:[%s0 + $0x338] sm:$0xff]
    %v119 = vld [vmem:[%s0 + $0x340] sm:$0xff]
    %v120 = vld [vmem:[%s0 + $0x348] sm:$0xff]
    %v121 = vld [vmem:[%s0 + $0x350] sm:$0xff]
    %v122 = vld [vmem:[%s0 + $0x358] sm:$0xff]
    %v123 = vld [vmem:[%s0 + $0x360] sm:$0xff]
    %v124 = vld [vmem:[%s0 + $0x368] sm:$0xff]
    %v125 = vld [vmem:[%s0 + $0x370] sm:$0xff]
    %v126 = vld [vmem:[%s0 + $0x378] sm:$0xff]
    %v127 = vld [vmem:[%s0 + $0x380] sm:$0xff]
    %v128 = vld [vmem:[%s0 + $0x388] sm:$0xff]
    %v129 = vld [vmem:[%s0 + $0x390] sm:$0xff]
    %v130 = vld [vmem:[%s0 + $0x398] sm:$0xff]
    %v131 = vld [vmem:[%s0 + $0x3a0] sm:$0xff]
    %v132 = vld [vmem:[%s0 + $0x3a8] sm:$0xff]
    %v133 = vld [vmem:[%s0 + $0x3b0] sm:$0xff]
    %v134 = vld [vmem:[%s0 + $0x3b8] sm:$0xff]
    %v135 = vld [vmem:[%s0 + $0x3c0] sm:$0xff]
    %v136 = vld [vmem:[%s0 + $0x3c8] sm:$0xff]
    %v137 = vld [vmem:[%s0 + $0x3d0] sm:$0xff]
    %v138 = vld [vmem:[%s0 + $0x3d8] sm:$0xff]
    %v139 = vld [vmem:[%s0 + $0x3e0] sm:$0xff]
    %v140 = vld [vmem:[%s0 + $0x3e8] sm:$0xff]
    %v141 = vld [vmem:[%s0 + $0x3f0] sm:$0xff]
    %v142 = vld [vmem:[%s0 + $0x3f8] sm:$0xff]
    %v143 = vld [vmem:[%s0 + $0x400] sm:$0xff]
    %v144 = vld [vmem:[%s0 + $0x408] sm:$0xff]
    %v145 = vld [vmem:[%s0 + $0x410] sm:$0xff]
    %v146 = vld [vmem:[%s0 + $0x418] sm:$0xff]
    %v147 = vld [vmem:[%s0 + $0x420] sm:$0xff]
    %v148 = vld [vmem:[%s0 + $0x428] sm:$0xff]
    %v149 = vld [vmem:[%s0 + $0x430] sm:$0xff]
    %v150 = vld [vmem:[%s0 + $0x438] sm:$0xff]
    %v151 = vld [vmem:[%s0 + $0x440] sm:$0xff]
    %v152 = vld [vmem:[%s0 + $0x448] sm:$0xff]
    %v153 = vld [vmem:[%s0 + $0x450] sm:$0xff]
    %v154 = vld [vmem:[%s0 + $0x458] sm:$0xff]
    %v155 = vld [vmem:[%s0 + $0x460] sm:$0xff]
    %v156 = vld [vmem:[%s0 + $0x468] sm:$0xff]
    %v157 = vld [vmem:[%s0 + $0x470] sm:$0xff]
    %v158 = vld [vmem:[%s0 + $0x478] sm:$0xff]
    %v159 = vld [vmem:[%s0 + $0x480] sm:$0xff]
    %v160 = vld [vmem:[%s0 + $0x488] sm:$0xff]
    %v161 = vld [vmem:[%s0 + $0x490] sm:$0xff]
    %v162 = vld [vmem:[%s0 + $0x498] sm:$0xff]
    %v163 = vld [vmem:[%s0 + $0x4a0] sm:$0xff]
    %v164 = vld [vmem:[%s0 + $0x4a8] sm:$0xff]
    %v165 = vld [vmem:[%s0 + $0x4b0] sm:$0xff]
    %v166 = vld [vmem:[%s0 + $0x4b8] sm:$0xff]
    %v167 = vld [vmem:[%s0 + $0x4c0] sm:$0xff]
    %v168 = vld [vmem:[%s0 + $0x4c8] sm:$0xff]
    %v169 = vld [vmem:[%s0 + $0x4d0] sm:$0xff]
    %v170 = vld [vmem:[%s0 + $0x4d8] sm:$0xff]
    %v171 = vld [vmem:[%s0 + $0x4e0] sm:$0xff]
    %v172 = vld [vmem:[%s0 + $0x4e8] sm:$0xff]
    %v173 = vld [vmem:[%s0 + $0x4f0] sm:$0xff]
    %v174 = vld [vmem:[%s0 + $0x4f8] sm:$0xff]
    %v175 = vld [vmem:[%s0 + $0x500] sm:$0xff]
    %v176 = vld [vmem:[%s0 + $0x508] sm:$0xff]
    %v177 = vld [vmem:[%s0 + $0x510] sm:$0xff]
    %v178 = vld [vmem:[%s0 + $0x518] sm:$0xff]
    %v179 = vld [vmem:[%s0 + $0x520] sm:$0xff]
    %v180 = vld [vmem:[%s0 + $0x528] sm:$0xff]
    %v181 = vld [vmem:[%s0 + $0x530] sm:$0xff]
    %v182 = vld [vmem:[%s0 + $0x538] sm:$0xff]
    %v183 = vld [vmem:[%s0 + $0x540] sm:$0xff]
    %v184 = vld [vmem:[%s0 + $0x548] sm:$0xff]
    %v185 = vld [vmem:[%s0 + $0x550] sm:$0xff]
    %v186 = vld [vmem:[%s0 + $0x558] sm:$0xff]
    %v187 = vld [vmem:[%s0 + $0x560] sm:$0xff]
    %v188 = vld [vmem:[%s0 + $0x568] sm:$0xff]
    %v189 = vld [vmem:[%s0 + $0x570] sm:$0xff]
    %v190 = vld [vmem:[%s0 + $0x578] sm:$0xff]
    %v191 = vld [vmem:[%s0 + $0x580] sm:$0xff]
    %v192 = vld [vmem:[%s0 + $0x588] sm:$0xff]
    %v193 = vld [vmem:[%s0 + $0x590] sm:$0xff]
    %v194 = vld [vmem:[%s0 + $0x598] sm:$0xff]
    %v195 = vld [vmem:[%s0 + $0x5a0] sm:$0xff]
    %v196 = vld [vmem:[%s0 + $0x5a8] sm:$0xff]
    %v197 = vld [vmem:[%s0 + $0x5b0] sm:$0xff]
    %v198 = vld [vmem:[%s0 + $0x5b8] sm:$0xff]
    %v199 = vld [vmem:[%s0 + $0x5c0] sm:$0xff]
    %v200 = vld [vmem:[%s0 + $0x5c8] sm:$0xff]
    %v201 = vld [vmem:[%s0 + $0x5d0] sm:$0xff]
    %v202 = vld [vmem:[%s0 + $0x5d8] sm:$0xff]
    %v203 = vld [vmem:[%s0 + $0x5e0] sm:$0xff]
    %v204 = vld [vmem:[%s0 + $0x5e8] sm:$0xff]
    %v205 = vld [vmem:[%s0 + $0x5f0] sm:$0xff]
    %v206 = vld [vmem:[%s0 + $0x5f8] sm:$0xff]
    %v207 = vld [vmem:[%s0 + $0x600] sm:$0xff]
    %v208 = vld [vmem:[%s0 + $0x608] sm:$0xff]
    %v209 = vld [vmem:[%s0 + $0x610] sm:$0xff]
    %v210 = vld [vmem:[%s0 + $0x618] sm:$0xff]
    %v211 = vld [vmem:[%s0 + $0x620] sm:$0xff]
    %v212 = vld [vmem:[%s0 + $0x628] sm:$0xff]
    %v213 = vld [vmem:[%s0 + $0x630] sm:$0xff]
    %v214 = vld [vmem:[%s0 + $0x638] sm:$0xff]
    %v215 = vld [vmem:[%s0 + $0x640] sm:$0xff]
    %v216 = vld [vmem:[%s0 + $0x648] sm:$0xff]
    %v217 = vld [vmem:[%s0 + $0x650] sm:$0xff]
    %v218 = vld [vmem:[%s0 + $0x658] sm:$0xff]
    %v219 = vld [vmem:[%s0 + $0x660] sm:$0xff]
    %v220 = vld [vmem:[%s0 + $0x668] sm:$0xff]
    %v221 = vld [vmem:[%s0 + $0x670] sm:$0xff]
    %v222 = vld [vmem:[%s0 + $0x678] sm:$0xff]
    %v223 = vld [vmem:[%s0 + $0x680] sm:$0xff]
    %v224 = vld [vmem:[%s0 + $0x688] sm:$0xff]
    %v225 = vld [vmem:[%s0 + $0x690] sm:$0xff]
    %v226 = vld [vmem:[%s0 + $0x698] sm:$0xff]
    %v227 = vld [vmem:[%s0 + $0x6a0] sm:$0xff]
    %v228 = vld [vmem:[%s0 + $0x6a8] sm:$0xff]
    %v229 = vld [vmem:[%s0 + $0x6b0] sm:$0xff]
    %v230 = vld [vmem:[%s0 + $0x6b8] sm:$0xff]
    %v231 = vld [vmem:[%s0 + $0x6c0] sm:$0xff]
    %v232 = vld [vmem:[%s0 + $0x6c8] sm:$0xff]
    %v233 = vld [vmem:[%s0 + $0x6d0] sm:$0xff]
    %v234 = vld [vmem:[%s0 + $0x6d8] sm:$0xff]
    %v235 = vld [vmem:[%s0 + $0x6e0] sm:$0xff]
    %v236 = vld [vmem:[%s0 + $0x6e8] sm:$0xff]
    %v237 = vld [vmem:[%s0 + $0x6f0] sm:$0xff]
    %v238 = vld [vmem:[%s0 + $0x6f8] sm:$0xff]
    %v239 = vld [vmem:[%s0 + $0x700] sm:$0xff]
    %v240 = vld [vmem:[%s0 + $0x708] sm:$0xff]
    %v241 = vld [vmem:[%s0 + $0x710] sm:$0xff]
    %v242 = vld [vmem:[%s0 + $0x718] sm:$0xff]
    %v243 = vld [vmem:[%s0 + $0x720] sm:$0xff]
    %v244 = vld [vmem:[%s0 + $0x728] sm:$0xff]
    %v245 = vld [vmem:[%s0 + $0x730] sm:$0xff]
    %v246 = vld [vmem:[%s0 + $0x738] sm:$0xff]
    %v247 = vld [vmem:[%s0 + $0x740] sm:$0xff]
    %v248 = vld [vmem:[%s0 + $0x748] sm:$0xff]
    %v249 = vld [vmem:[%s0 + $0x750] sm:$0xff]
    %v250 = vld [vmem:[%s0 + $0x758] sm:$0xff]
    %v251 = vld [vmem:[%s0 + $0x760] sm:$0xff]
    %v252 = vld [vmem:[%s0 + $0x768] sm:$0xff]
    %v253 = vld [vmem:[%s0 + $0x770] sm:$0xff]
    %v254 = vld [vmem:[%s0 + $0x778] sm:$0xff]
    %v255 = vld [vmem:[%s0 + $0x780] sm:$0xff]
    %v256 = vld [vmem:[%s0 + $0x788] sm:$0xff]
    %v257 = vld [vmem:[%s0 + $0x790] sm:$0xff]
    %v258 = vld [vmem:[%s0 + $0x798] sm:$0xff]
    %v259 = vld [vmem:[%s0 + $0x7a0] sm:$0xff]
    %v260 = vld [vmem:[%s0 + $0x7a8] sm:$0xff]
    %v261 = vld [vmem:[%s0 + $0x7b0] sm:$0xff]
    %v262 = vld [vmem:[%s0 + $0x7b8] sm:$0xff]
    %v263 = vld [vmem:[%s0 + $0x7c0] sm:$0xff]
    %v264 = vld [vmem:[%s0 + $0x7c8] sm:$0xff]
    %v265 = vld [vmem:[%s0 + $0x7d0] sm:$0xff]
    %v266 = vld [vmem:[%s0 + $0x7d8] sm:$0xff]
    %v267 = vld [vmem:[%s0 + $0x7e0] sm:$0xff]
    %v268 = vld [vmem:[%s0 + $0x7e8] sm:$0xff]
    %v269 = vld [vmem:[%s0 + $0x7f0] sm:$0xff]
    %v270 = vld [vmem:[%s0 + $0x7f8] sm:$0xff]
    %v271 = vld [vmem:[%s0 + $0x800] sm:$0xff]
    %v272 = vld [vmem:[%s0 + $0x808] sm:$0xff]
    %v273 = vld [vmem:[%s0 + $0x810] sm:$0xff]
    %v274 = vld [vmem:[%s0 + $0x818] sm:$0xff]
    %v275 = vld [vmem:[%s0 + $0x820] sm:$0xff]
    %v276 = vld [vmem:[%s0 + $0x828] sm:$0xff]
    %v277 = vld [vmem:[%s0 + $0x830] sm:$0xff]
    %v278 = vld [vmem:[%s0 + $0x838] sm:$0xff]
    %v279 = vld [vmem:[%s0 + $0x840] sm:$0xff]
    %v280 = vld [vmem:[%s0 + $0x848] sm:$0xff]
    %v281 = vld [vmem:[%s0 + $0x850] sm:$0xff]
    %v282 = vld [vmem:[%s0 + $0x858] sm:$0xff]
    %v283 = vld [vmem:[%s0 + $0x860] sm:$0xff]
    %v284 = vld [vmem:[%s0 + $0x868] sm:$0xff]
    %v285 = vld [vmem:[%s0 + $0x870] sm:$0xff]
    %v286 = vld [vmem:[%s0 + $0x878] sm:$0xff]
    %v287 = vld [vmem:[%s0 + $0x880] sm:$0xff]
    %v288 = vld [vmem:[%s0 + $0x888] sm:$0xff]
    %v289 = vld [vmem:[%s0 + $0x890] sm:$0xff]
    %v290 = vld [vmem:[%s0 + $0x898] sm:$0xff]
    %v291 = vld [vmem:[%s0 + $0x8a0] sm:$0xff]
    %v292 = vld [vmem:[%s0 + $0x8a8] sm:$0xff]
    %v293 = vld [vmem:[%s0 + $0x8b0] sm:$0xff]
    %v294 = vld [vmem:[%s0 + $0x8b8] sm:$0xff]
    %v295 = vld [vmem:[%s0 + $0x8c0] sm:$0xff]
    %v296 = vld [vmem:[%s0 + $0x8c8] sm:$0xff]
    %v297 = vld [vmem:[%s0 + $0x8d0] sm:$0xff]
    %v298 = vld [vmem:[%s0 + $0x8d8] sm:$0xff]
    %v299 = vld [vmem:[%s0 + $0x8e0] sm:$0xff]
    %v300 = vld [vmem:[%s0 + $0x8e8] sm:$0xff]
    %v301 = vld [vmem:[%s0 + $0x8f0] sm:$0xff]
    %v302 = vld [vmem:[%s0 + $0x8f8] sm:$0xff]
    %v303 = vld [vmem:[%s0 + $0x900] sm:$0xff]
    %v304 = vld [vmem:[%s0 + $0x908] sm:$0xff]
    %v305 = vld [vmem:[%s0 + $0x910] sm:$0xff]
    %v306 = vld [vmem:[%s0 + $0x918] sm:$0xff]
    %v307 = vld [vmem:[%s0 + $0x920] sm:$0xff]
    %v308 = vld [vmem:[%s0 + $0x928] sm:$0xff]
    %v309 = vld [vmem:[%s0 + $0x930] sm:$0xff]
    %v310 = vld [vmem:[%s0 + $0x938] sm:$0xff]
    %v311 = vld [vmem:[%s0 + $0x940] sm:$0xff]
    %v312 = vld [vmem:[%s0 + $0x948] sm:$0xff]
    %v313 = vld [vmem:[%s0 + $0x950] sm:$0xff]
    %v314 = vld [vmem:[%s0 + $0x958] sm:$0xff]
    %v315 = vld [vmem:[%s0 + $0x960] sm:$0xff]
    %v316 = vld [vmem:[%s0 + $0x968] sm:$0xff]
    %v317 = vld [vmem:[%s0 + $0x970] sm:$0xff]
    %v318 = vld [vmem:[%s0 + $0x978] sm:$0xff]
    %v319 = vld [vmem:[%s0 + $0x980] sm:$0xff]
    %v320 = vld [vmem:[%s0 + $0x988] sm:$0xff]
    %v321 = vld [vmem:[%s0 + $0x990] sm:$0xff]
    %v322 = vld [vmem:[%s0 + $0x998] sm:$0xff]
    %v323 = vld [vmem:[%s0 + $0x9a0] sm:$0xff]
    %v324 = vld [vmem:[%s0 + $0x9a8] sm:$0xff]
    %v325 = vld [vmem:[%s0 + $0x9b0] sm:$0xff]
    %v326 = vld [vmem:[%s0 + $0x9b8] sm:$0xff]
    %v327 = vld [vmem:[%s0 + $0x9c0] sm:$0xff]
    %v328 = vld [vmem:[%s0 + $0x9c8] sm:$0xff]
    %v329 = vld [vmem:[%s0 + $0x9d0] sm:$0xff]
    %v330 = vld [vmem:[%s0 + $0x9d8] sm:$0xff]
    %v331 = vld [vmem:[%s0 + $0x9e0] sm:$0xff]
    %v332 = vld [vmem:[%s0 + $0x9e8] sm:$0xff]
    %v333 = vld [vmem:[%s0 + $0x9f0] sm:$0xff]
    %v334 = vld [vmem:[%s0 + $0x9f8] sm:$0xff]
    %v335 = vld [vmem:[%s0 + $0xa00] sm:$0xff]
    %v336 = vld [vmem:[%s0 + $0xa08] sm:$0xff]
    %v337 = vld [vmem:[%s0 + $0xa10] sm:$0xff]
    %v338 = vld [vmem:[%s0 + $0xa18] sm:$0xff]
    %v339 = vld [vmem:[%s0 + $0xa20] sm:$0xff]
    %v340 = vld [vmem:[%s0 + $0xa28] sm:$0xff]
    %v341 = vld [vmem:[%s0 + $0xa30] sm:$0xff]
    %v342 = vld [vmem:[%s0 + $0xa38] sm:$0xff]
    %v343 = vld [vmem:[%s0 + $0xa40] sm:$0xff]
    %v344 = vld [vmem:[%s0 + $0xa48] sm:$0xff]
    %v345 = vld [vmem:[%s0 + $0xa50] sm:$0xff]
    %v346 = vld [vmem:[%s0 + $0xa58] sm:$0xff]
    %v347 = vld [vmem:[%s0 + $0xa60] sm:$0xff]
    %v348 = vld [vmem:[%s0 + $0xa68] sm:$0xff]
    %v349 = vld [vmem:[%s0 + $0xa70] sm:$0xff]
    %v350 = vld [vmem:[%s0 + $0xa78] sm:$0xff]
    %v351 = vld [vmem:[%s0 + $0xa80] sm:$0xff]
    %v352 = vld [vmem:[%s0 + $0xa88] sm:$0xff]
    %v353 = vld [vmem:[%s0 + $0xa90] sm:$0xff]
    %v354 = vld [vmem:[%s0 + $0xa98] sm:$0xff]
    %v355 = vld [vmem:[%s0 + $0xaa0] sm:$0xff]
    %v356 = vld [vmem:[%s0 + $0xaa8] sm:$0xff]
    %v357 = vld [vmem:[%s0 + $0xab0] sm:$0xff]
    %v358 = vld [vmem:[%s0 + $0xab8] sm:$0xff]
    %v359 = vld [vmem:[%s0 + $0xac0] sm:$0xff]
    %v360 = vld [vmem:[%s0 + $0xac8] sm:$0xff]
    %v361 = vld [vmem:[%s0 + $0xad0] sm:$0xff]
    %v362 = vld [vmem:[%s0 + $0xad8] sm:$0xff]
    %v363 = vld [vmem:[%s0 + $0xae0] sm:$0xff]
    %v364 = vld [vmem:[%s0 + $0xae8] sm:$0xff]
    %v365 = vld [vmem:[%s0 + $0xaf0] sm:$0xff]
    %v366 = vld [vmem:[%s0 + $0xaf8] sm:$0xff]
    %v367 = vld [vmem:[%s0 + $0xb00] sm:$0xff]
    %v368 = vld [vmem:[%s0 + $0xb08] sm:$0xff]
    %v369 = vld [vmem:[%s0 + $0xb10] sm:$0xff]
    %v370 = vld [vmem:[%s0 + $0xb18] sm:$0xff]
    %v371 = vld [vmem:[%s0 + $0xb20] sm:$0xff]
    %v372 = vld [vmem:[%s0 + $0xb28] sm:$0xff]
    %v373 = vld [vmem:[%s0 + $0xb30] sm:$0xff]
    %v374 = vld [vmem:[%s0 + $0xb38] sm:$0xff]
    %v375 = vld [vmem:[%s0 + $0xb40] sm:$0xff]
    %v376 = vld [vmem:[%s0 + $0xb48] sm:$0xff]
    %v377 = vld [vmem:[%s0 + $0xb50] sm:$0xff]
    %v378 = vld [vmem:[%s0 + $0xb58] sm:$0xff]
    %v379 = vld [vmem:[%s0 + $0xb60] sm:$0xff]
    %v380 = vld [vmem:[%s0 + $0xb68] sm:$0xff]
    %v381 = vld [vmem:[%s0 + $0xb70] sm:$0xff]
    %v382 = vld [vmem:[%s0 + $0xb78] sm:$0xff]
    %v383 = vld [vmem:[%s0 + $0xb80] sm:$0xff]
    %v384 = vld [vmem:[%s0 + $0xb88] sm:$0xff]
    %v385 = vld [vmem:[%s0 + $0xb90] sm:$0xff]
    %v386 = vld [vmem:[%s0 + $0xb98] sm:$0xff]
    %v387 = vld [vmem:[%s0 + $0xba0] sm:$0xff]
    %v388 = vld [vmem:[%s0 + $0xba8] sm:$0xff]
    %v389 = vld [vmem:[%s0 + $0xbb0] sm:$0xff]
    %v390 = vld [vmem:[%s0 + $0xbb8] sm:$0xff]
    %v391 = vld [vmem:[%s0 + $0xbc0] sm:$0xff]
    %v392 = vld [vmem:[%s0 + $0xbc8] sm:$0xff]
    %v393 = vld [vmem:[%s0 + $0xbd0] sm:$0xff]
    %v394 = vld [vmem:[%s0 + $0xbd8] sm:$0xff]
    %v395 = vld [vmem:[%s0 + $0xbe0] sm:$0xff]
    %v396 = vld [vmem:[%s0 + $0xbe8] sm:$0xff]
    %v397 = vld [vmem:[%s0 + $0xbf0] sm:$0xff]
    %v398 = vld [vmem:[%s0 + $0xbf8] sm:$0xff]
    %v399 = vpack.c.bf16 %v17, %v15
    %v400 = vpack.c.bf16 %v18, %v16
    %v401 = vpack.c.bf16 %v21, %v19
    %v402 = vpack.c.bf16 %v22, %v20
    %v403 = vpack.c.bf16 %v25, %v23
    %v404 = vpack.c.bf16 %v26, %v24
    %v405 = vpack.c.bf16 %v29, %v27
    %v406 = vpack.c.bf16 %v30, %v28
    %v407 = vpack.c.bf16 %v33, %v31
    %v408 = vpack.c.bf16 %v34, %v32
    %v409 = vpack.c.bf16 %v37, %v35
    %v410 = vpack.c.bf16 %v38, %v36
    %v411 = vpack.c.bf16 %v41, %v39
    %v412 = vpack.c.bf16 %v42, %v40
    %v413 = vpack.c.bf16 %v45, %v43
    %v414 = vpack.c.bf16 %v46, %v44
    %v415 = vpack.c.bf16 %v49, %v47
    %v416 = vpack.c.bf16 %v50, %v48
    %v417 = vpack.c.bf16 %v53, %v51
    %v418 = vpack.c.bf16 %v54, %v52
    %v419 = vpack.c.bf16 %v57, %v55
    %v420 = vpack.c.bf16 %v58, %v56
    %v421 = vpack.c.bf16 %v61, %v59
    %v422 = vpack.c.bf16 %v62, %v60
    %v423 = vpack.c.bf16 %v65, %v63
    %v424 = vpack.c.bf16 %v66, %v64
    %v425 = vpack.c.bf16 %v69, %v67
    %v426 = vpack.c.bf16 %v70, %v68
    %v427 = vpack.c.bf16 %v73, %v71
    %v428 = vpack.c.bf16 %v74, %v72
    %v429 = vpack.c.bf16 %v77, %v75
    %v430 = vpack.c.bf16 %v78, %v76
    %v431 = vpack.c.bf16 %v81, %v79
    %v432 = vpack.c.bf16 %v82, %v80
    %v433 = vpack.c.bf16 %v85, %v83
    %v434 = vpack.c.bf16 %v86, %v84
    %v435 = vpack.c.bf16 %v89, %v87
    %v436 = vpack.c.bf16 %v90, %v88
    %v437 = vpack.c.bf16 %v93, %v91
    %v438 = vpack.c.bf16 %v94, %v92
    %v439 = vpack.c.bf16 %v97, %v95
    %v440 = vpack.c.bf16 %v98, %v96
    %v441 = vpack.c.bf16 %v101, %v99
    %v442 = vpack.c.bf16 %v102, %v100
    %v443 = vpack.c.bf16 %v105, %v103
    %v444 = vpack.c.bf16 %v106, %v104
    %v445 = vpack.c.bf16 %v109, %v107
    %v446 = vpack.c.bf16 %v110, %v108
    %v447 = vpack.c.bf16 %v113, %v111
    %v448 = vpack.c.bf16 %v114, %v112
    %v449 = vpack.c.bf16 %v117, %v115
    %v450 = vpack.c.bf16 %v118, %v116
    %v451 = vpack.c.bf16 %v121, %v119
    %v452 = vpack.c.bf16 %v122, %v120
    %v453 = vpack.c.bf16 %v125, %v123
    %v454 = vpack.c.bf16 %v126, %v124
    %v455 = vpack.c.bf16 %v129, %v127
    %v456 = vpack.c.bf16 %v130, %v128
    %v457 = vpack.c.bf16 %v133, %v131
    %v458 = vpack.c.bf16 %v134, %v132
    %v459 = vpack.c.bf16 %v137, %v135
    %v460 = vpack.c.bf16 %v138, %v136
    %v461 = vpack.c.bf16 %v141, %v139
    %v462 = vpack.c.bf16 %v142, %v140
    %v463 = vpack.c.bf16 %v145, %v143
    %v464 = vpack.c.bf16 %v146, %v144
    %v465 = vpack.c.bf16 %v149, %v147
    %v466 = vpack.c.bf16 %v150, %v148
    %v467 = vpack.c.bf16 %v153, %v151
    %v468 = vpack.c.bf16 %v154, %v152
    %v469 = vpack.c.bf16 %v157, %v155
    %v470 = vpack.c.bf16 %v158, %v156
    %v471 = vpack.c.bf16 %v161, %v159
    %v472 = vpack.c.bf16 %v162, %v160
    %v473 = vpack.c.bf16 %v165, %v163
    %v474 = vpack.c.bf16 %v166, %v164
    %v475 = vpack.c.bf16 %v169, %v167
    %v476 = vpack.c.bf16 %v170, %v168
    %v477 = vpack.c.bf16 %v173, %v171
    %v478 = vpack.c.bf16 %v174, %v172
    %v479 = vpack.c.bf16 %v177, %v175
    %v480 = vpack.c.bf16 %v178, %v176
    %v481 = vpack.c.bf16 %v181, %v179
    %v482 = vpack.c.bf16 %v182, %v180
    %v483 = vpack.c.bf16 %v185, %v183
    %v484 = vpack.c.bf16 %v186, %v184
    %v485 = vpack.c.bf16 %v189, %v187
    %v486 = vpack.c.bf16 %v190, %v188
    %v487 = vpack.c.bf16 %v193, %v191
    %v488 = vpack.c.bf16 %v194, %v192
    %v489 = vpack.c.bf16 %v197, %v195
    %v490 = vpack.c.bf16 %v198, %v196
    %v491 = vpack.c.bf16 %v201, %v199
    %v492 = vpack.c.bf16 %v202, %v200
    %v493 = vpack.c.bf16 %v205, %v203
    %v494 = vpack.c.bf16 %v206, %v204
    %v495 = vpack.c.bf16 %v209, %v207
    %v496 = vpack.c.bf16 %v210, %v208
    %v497 = vpack.c.bf16 %v213, %v211
    %v498 = vpack.c.bf16 %v214, %v212
    %v499 = vpack.c.bf16 %v217, %v215
    %v500 = vpack.c.bf16 %v218, %v216
    %v501 = vpack.c.bf16 %v221, %v219
    %v502 = vpack.c.bf16 %v222, %v220
    %v503 = vpack.c.bf16 %v225, %v223
    %v504 = vpack.c.bf16 %v226, %v224
    %v505 = vpack.c.bf16 %v229, %v227
    %v506 = vpack.c.bf16 %v230, %v228
    %v507 = vpack.c.bf16 %v233, %v231
    %v508 = vpack.c.bf16 %v234, %v232
    %v509 = vpack.c.bf16 %v237, %v235
    %v510 = vpack.c.bf16 %v238, %v236
    %v511 = vpack.c.bf16 %v241, %v239
    %v512 = vpack.c.bf16 %v242, %v240
    %v513 = vpack.c.bf16 %v245, %v243
    %v514 = vpack.c.bf16 %v246, %v244
    %v515 = vpack.c.bf16 %v249, %v247
    %v516 = vpack.c.bf16 %v250, %v248
    %v517 = vpack.c.bf16 %v253, %v251
    %v518 = vpack.c.bf16 %v254, %v252
    %v519 = vpack.c.bf16 %v257, %v255
    %v520 = vpack.c.bf16 %v258, %v256
    %v521 = vpack.c.bf16 %v261, %v259
    %v522 = vpack.c.bf16 %v262, %v260
    %v523 = vpack.c.bf16 %v265, %v263
    %v524 = vpack.c.bf16 %v266, %v264
    %v525 = vpack.c.bf16 %v269, %v267
    %v526 = vpack.c.bf16 %v270, %v268
    %v527 = vpack.c.bf16 %v273, %v271
    %v528 = vpack.c.bf16 %v274, %v272
    %v529 = vpack.c.bf16 %v277, %v275
    %v530 = vpack.c.bf16 %v278, %v276
    %v531 = vpack.c.bf16 %v281, %v279
    %v532 = vpack.c.bf16 %v282, %v280
    %v533 = vpack.c.bf16 %v285, %v283
    %v534 = vpack.c.bf16 %v286, %v284
    %v535 = vpack.c.bf16 %v289, %v287
    %v536 = vpack.c.bf16 %v290, %v288
    %v537 = vpack.c.bf16 %v293, %v291
    %v538 = vpack.c.bf16 %v294, %v292
    %v539 = vpack.c.bf16 %v297, %v295
    %v540 = vpack.c.bf16 %v298, %v296
    %v541 = vpack.c.bf16 %v301, %v299
    %v542 = vpack.c.bf16 %v302, %v300
    %v543 = vpack.c.bf16 %v305, %v303
    %v544 = vpack.c.bf16 %v306, %v304
    %v545 = vpack.c.bf16 %v309, %v307
    %v546 = vpack.c.bf16 %v310, %v308
    %v547 = vpack.c.bf16 %v313, %v311
    %v548 = vpack.c.bf16 %v314, %v312
    %v549 = vpack.c.bf16 %v317, %v315
    %v550 = vpack.c.bf16 %v318, %v316
    %v551 = vpack.c.bf16 %v321, %v319
    %v552 = vpack.c.bf16 %v322, %v320
    %v553 = vpack.c.bf16 %v325, %v323
    %v554 = vpack.c.bf16 %v326, %v324
    %v555 = vpack.c.bf16 %v329, %v327
    %v556 = vpack.c.bf16 %v330, %v328
    %v557 = vpack.c.bf16 %v333, %v331
    %v558 = vpack.c.bf16 %v334, %v332
    %v559 = vpack.c.bf16 %v337, %v335
    %v560 = vpack.c.bf16 %v338, %v336
    %v561 = vpack.c.bf16 %v341, %v339
    %v562 = vpack.c.bf16 %v342, %v340
    %v563 = vpack.c.bf16 %v345, %v343
    %v564 = vpack.c.bf16 %v346, %v344
    %v565 = vpack.c.bf16 %v349, %v347
    %v566 = vpack.c.bf16 %v350, %v348
    %v567 = vpack.c.bf16 %v353, %v351
    %v568 = vpack.c.bf16 %v354, %v352
    %v569 = vpack.c.bf16 %v357, %v355
    %v570 = vpack.c.bf16 %v358, %v356
    %v571 = vpack.c.bf16 %v361, %v359
    %v572 = vpack.c.bf16 %v362, %v360
    %v573 = vpack.c.bf16 %v365, %v363
    %v574 = vpack.c.bf16 %v366, %v364
    %v575 = vpack.c.bf16 %v369, %v367
    %v576 = vpack.c.bf16 %v370, %v368
    %v577 = vpack.c.bf16 %v373, %v371
    %v578 = vpack.c.bf16 %v374, %v372
    %v579 = vpack.c.bf16 %v377, %v375
    %v580 = vpack.c.bf16 %v378, %v376
    %v581 = vpack.c.bf16 %v381, %v379
    %v582 = vpack.c.bf16 %v382, %v380
    %v583 = vpack.c.bf16 %v385, %v383
    %v584 = vpack.c.bf16 %v386, %v384
    %v585 = vpack.c.bf16 %v389, %v387
    %v586 = vpack.c.bf16 %v390, %v388
    %v587 = vpack.c.bf16 %v393, %v391
    %v588 = vpack.c.bf16 %v394, %v392
    %v589 = vpack.c.bf16 %v397, %v395
    %v590 = vpack.c.bf16 %v398, %v396
    %v591 = vld [vmem:[%s1] sm:$0xff]
    %v592 = vld [vmem:[%s1 + $0x8] sm:$0xff]
    %v593 = vld [vmem:[%s1 + $0x10] sm:$0xff]
    %v594 = vld [vmem:[%s1 + $0x18] sm:$0xff]
    %v595 = vld [vmem:[%s1 + $0x20] sm:$0xff]
    %v596 = vld [vmem:[%s1 + $0x28] sm:$0xff]
    %v597 = vld [vmem:[%s1 + $0x30] sm:$0xff]
    %v598 = vld [vmem:[%s1 + $0x38] sm:$0xff]
    %v599 = vld [vmem:[%s1 + $0x40] sm:$0xff]
    %v600 = vld [vmem:[%s1 + $0x48] sm:$0xff]
    %v601 = vld [vmem:[%s1 + $0x50] sm:$0xff]
    %v602 = vld [vmem:[%s1 + $0x58] sm:$0xff]
    %v603 = vld [vmem:[%s1 + $0x60] sm:$0xff]
    %v604 = vld [vmem:[%s1 + $0x68] sm:$0xff]
    %v605 = vld [vmem:[%s1 + $0x70] sm:$0xff]
    %v606 = vld [vmem:[%s1 + $0x78] sm:$0xff]
    %v607 = vld [vmem:[%s1 + $0x80] sm:$0xff]
    %v608 = vld [vmem:[%s1 + $0x88] sm:$0xff]
    %v609 = vld [vmem:[%s1 + $0x90] sm:$0xff]
    %v610 = vld [vmem:[%s1 + $0x98] sm:$0xff]
    %v611 = vld [vmem:[%s1 + $0xa0] sm:$0xff]
    %v612 = vld [vmem:[%s1 + $0xa8] sm:$0xff]
    %v613 = vld [vmem:[%s1 + $0xb0] sm:$0xff]
    %v614 = vld [vmem:[%s1 + $0xb8] sm:$0xff]
    %v615 = vld [vmem:[%s1 + $0xc0] sm:$0xff]
    %v616 = vld [vmem:[%s1 + $0xc8] sm:$0xff]
    %v617 = vld [vmem:[%s1 + $0xd0] sm:$0xff]
    %v618 = vld [vmem:[%s1 + $0xd8] sm:$0xff]
    %v619 = vld [vmem:[%s1 + $0xe0] sm:$0xff]
    %v620 = vld [vmem:[%s1 + $0xe8] sm:$0xff]
    %v621 = vld [vmem:[%s1 + $0xf0] sm:$0xff]
    %v622 = vld [vmem:[%s1 + $0xf8] sm:$0xff]
    %v623 = vld [vmem:[%s1 + $0x100] sm:$0xff]
    %v624 = vld [vmem:[%s1 + $0x108] sm:$0xff]
    %v625 = vld [vmem:[%s1 + $0x110] sm:$0xff]
    %v626 = vld [vmem:[%s1 + $0x118] sm:$0xff]
    %v627 = vld [vmem:[%s1 + $0x120] sm:$0xff]
    %v628 = vld [vmem:[%s1 + $0x128] sm:$0xff]
    %v629 = vld [vmem:[%s1 + $0x130] sm:$0xff]
    %v630 = vld [vmem:[%s1 + $0x138] sm:$0xff]
    %v631 = vld [vmem:[%s1 + $0x140] sm:$0xff]
    %v632 = vld [vmem:[%s1 + $0x148] sm:$0xff]
    %v633 = vld [vmem:[%s1 + $0x150] sm:$0xff]
    %v634 = vld [vmem:[%s1 + $0x158] sm:$0xff]
    %v635 = vld [vmem:[%s1 + $0x160] sm:$0xff]
    %v636 = vld [vmem:[%s1 + $0x168] sm:$0xff]
    %v637 = vld [vmem:[%s1 + $0x170] sm:$0xff]
    %v638 = vld [vmem:[%s1 + $0x178] sm:$0xff]
    %v639 = vld [vmem:[%s1 + $0x180] sm:$0xff]
    %v640 = vld [vmem:[%s1 + $0x188] sm:$0xff]
    %v641 = vld [vmem:[%s1 + $0x190] sm:$0xff]
    %v642 = vld [vmem:[%s1 + $0x198] sm:$0xff]
    %v643 = vld [vmem:[%s1 + $0x1a0] sm:$0xff]
    %v644 = vld [vmem:[%s1 + $0x1a8] sm:$0xff]
    %v645 = vld [vmem:[%s1 + $0x1b0] sm:$0xff]
    %v646 = vld [vmem:[%s1 + $0x1b8] sm:$0xff]
    %v647 = vld [vmem:[%s1 + $0x1c0] sm:$0xff]
    %v648 = vld [vmem:[%s1 + $0x1c8] sm:$0xff]
    %v649 = vld [vmem:[%s1 + $0x1d0] sm:$0xff]
    %v650 = vld [vmem:[%s1 + $0x1d8] sm:$0xff]
    %v651 = vld [vmem:[%s1 + $0x1e0] sm:$0xff]
    %v652 = vld [vmem:[%s1 + $0x1e8] sm:$0xff]
    %v653 = vld [vmem:[%s1 + $0x1f0] sm:$0xff]
    %v654 = vld [vmem:[%s1 + $0x1f8] sm:$0xff]
    %v655 = vld [vmem:[%s1 + $0x200] sm:$0xff]
    %v656 = vld [vmem:[%s1 + $0x208] sm:$0xff]
    %v657 = vld [vmem:[%s1 + $0x210] sm:$0xff]
    %v658 = vld [vmem:[%s1 + $0x218] sm:$0xff]
    %v659 = vld [vmem:[%s1 + $0x220] sm:$0xff]
    %v660 = vld [vmem:[%s1 + $0x228] sm:$0xff]
    %v661 = vld [vmem:[%s1 + $0x230] sm:$0xff]
    %v662 = vld [vmem:[%s1 + $0x238] sm:$0xff]
    %v663 = vld [vmem:[%s1 + $0x240] sm:$0xff]
    %v664 = vld [vmem:[%s1 + $0x248] sm:$0xff]
    %v665 = vld [vmem:[%s1 + $0x250] sm:$0xff]
    %v666 = vld [vmem:[%s1 + $0x258] sm:$0xff]
    %v667 = vld [vmem:[%s1 + $0x260] sm:$0xff]
    %v668 = vld [vmem:[%s1 + $0x268] sm:$0xff]
    %v669 = vld [vmem:[%s1 + $0x270] sm:$0xff]
    %v670 = vld [vmem:[%s1 + $0x278] sm:$0xff]
    %v671 = vld [vmem:[%s1 + $0x280] sm:$0xff]
    %v672 = vld [vmem:[%s1 + $0x288] sm:$0xff]
    %v673 = vld [vmem:[%s1 + $0x290] sm:$0xff]
    %v674 = vld [vmem:[%s1 + $0x298] sm:$0xff]
    %v675 = vld [vmem:[%s1 + $0x2a0] sm:$0xff]
    %v676 = vld [vmem:[%s1 + $0x2a8] sm:$0xff]
    %v677 = vld [vmem:[%s1 + $0x2b0] sm:$0xff]
    %v678 = vld [vmem:[%s1 + $0x2b8] sm:$0xff]
    %v679 = vld [vmem:[%s1 + $0x2c0] sm:$0xff]
    %v680 = vld [vmem:[%s1 + $0x2c8] sm:$0xff]
    %v681 = vld [vmem:[%s1 + $0x2d0] sm:$0xff]
    %v682 = vld [vmem:[%s1 + $0x2d8] sm:$0xff]
    %v683 = vld [vmem:[%s1 + $0x2e0] sm:$0xff]
    %v684 = vld [vmem:[%s1 + $0x2e8] sm:$0xff]
    %v685 = vld [vmem:[%s1 + $0x2f0] sm:$0xff]
    %v686 = vld [vmem:[%s1 + $0x2f8] sm:$0xff]
    %v687 = vld [vmem:[%s1 + $0x300] sm:$0xff]
    %v688 = vld [vmem:[%s1 + $0x308] sm:$0xff]
    %v689 = vld [vmem:[%s1 + $0x310] sm:$0xff]
    %v690 = vld [vmem:[%s1 + $0x318] sm:$0xff]
    %v691 = vld [vmem:[%s1 + $0x320] sm:$0xff]
    %v692 = vld [vmem:[%s1 + $0x328] sm:$0xff]
    %v693 = vld [vmem:[%s1 + $0x330] sm:$0xff]
    %v694 = vld [vmem:[%s1 + $0x338] sm:$0xff]
    %v695 = vld [vmem:[%s1 + $0x340] sm:$0xff]
    %v696 = vld [vmem:[%s1 + $0x348] sm:$0xff]
    %v697 = vld [vmem:[%s1 + $0x350] sm:$0xff]
    %v698 = vld [vmem:[%s1 + $0x358] sm:$0xff]
    %v699 = vld [vmem:[%s1 + $0x360] sm:$0xff]
    %v700 = vld [vmem:[%s1 + $0x368] sm:$0xff]
    %v701 = vld [vmem:[%s1 + $0x370] sm:$0xff]
    %v702 = vld [vmem:[%s1 + $0x378] sm:$0xff]
    %v703 = vld [vmem:[%s1 + $0x380] sm:$0xff]
    %v704 = vld [vmem:[%s1 + $0x388] sm:$0xff]
    %v705 = vld [vmem:[%s1 + $0x390] sm:$0xff]
    %v706 = vld [vmem:[%s1 + $0x398] sm:$0xff]
    %v707 = vld [vmem:[%s1 + $0x3a0] sm:$0xff]
    %v708 = vld [vmem:[%s1 + $0x3a8] sm:$0xff]
    %v709 = vld [vmem:[%s1 + $0x3b0] sm:$0xff]
    %v710 = vld [vmem:[%s1 + $0x3b8] sm:$0xff]
    %v711 = vld [vmem:[%s1 + $0x3c0] sm:$0xff]
    %v712 = vld [vmem:[%s1 + $0x3c8] sm:$0xff]
    %v713 = vld [vmem:[%s1 + $0x3d0] sm:$0xff]
    %v714 = vld [vmem:[%s1 + $0x3d8] sm:$0xff]
    %v715 = vld [vmem:[%s1 + $0x3e0] sm:$0xff]
    %v716 = vld [vmem:[%s1 + $0x3e8] sm:$0xff]
    %v717 = vld [vmem:[%s1 + $0x3f0] sm:$0xff]
    %v718 = vld [vmem:[%s1 + $0x3f8] sm:$0xff]
    %v719 = vld [vmem:[%s1 + $0x400] sm:$0xff]
    %v720 = vld [vmem:[%s1 + $0x408] sm:$0xff]
    %v721 = vld [vmem:[%s1 + $0x410] sm:$0xff]
    %v722 = vld [vmem:[%s1 + $0x418] sm:$0xff]
    %v723 = vld [vmem:[%s1 + $0x420] sm:$0xff]
    %v724 = vld [vmem:[%s1 + $0x428] sm:$0xff]
    %v725 = vld [vmem:[%s1 + $0x430] sm:$0xff]
    %v726 = vld [vmem:[%s1 + $0x438] sm:$0xff]
    %v727 = vld [vmem:[%s1 + $0x440] sm:$0xff]
    %v728 = vld [vmem:[%s1 + $0x448] sm:$0xff]
    %v729 = vld [vmem:[%s1 + $0x450] sm:$0xff]
    %v730 = vld [vmem:[%s1 + $0x458] sm:$0xff]
    %v731 = vld [vmem:[%s1 + $0x460] sm:$0xff]
    %v732 = vld [vmem:[%s1 + $0x468] sm:$0xff]
    %v733 = vld [vmem:[%s1 + $0x470] sm:$0xff]
    %v734 = vld [vmem:[%s1 + $0x478] sm:$0xff]
    %v735 = vld [vmem:[%s1 + $0x480] sm:$0xff]
    %v736 = vld [vmem:[%s1 + $0x488] sm:$0xff]
    %v737 = vld [vmem:[%s1 + $0x490] sm:$0xff]
    %v738 = vld [vmem:[%s1 + $0x498] sm:$0xff]
    %v739 = vld [vmem:[%s1 + $0x4a0] sm:$0xff]
    %v740 = vld [vmem:[%s1 + $0x4a8] sm:$0xff]
    %v741 = vld [vmem:[%s1 + $0x4b0] sm:$0xff]
    %v742 = vld [vmem:[%s1 + $0x4b8] sm:$0xff]
    %v743 = vld [vmem:[%s1 + $0x4c0] sm:$0xff]
    %v744 = vld [vmem:[%s1 + $0x4c8] sm:$0xff]
    %v745 = vld [vmem:[%s1 + $0x4d0] sm:$0xff]
    %v746 = vld [vmem:[%s1 + $0x4d8] sm:$0xff]
    %v747 = vld [vmem:[%s1 + $0x4e0] sm:$0xff]
    %v748 = vld [vmem:[%s1 + $0x4e8] sm:$0xff]
    %v749 = vld [vmem:[%s1 + $0x4f0] sm:$0xff]
    %v750 = vld [vmem:[%s1 + $0x4f8] sm:$0xff]
    %v751 = vld [vmem:[%s1 + $0x500] sm:$0xff]
    %v752 = vld [vmem:[%s1 + $0x508] sm:$0xff]
    %v753 = vld [vmem:[%s1 + $0x510] sm:$0xff]
    %v754 = vld [vmem:[%s1 + $0x518] sm:$0xff]
    %v755 = vld [vmem:[%s1 + $0x520] sm:$0xff]
    %v756 = vld [vmem:[%s1 + $0x528] sm:$0xff]
    %v757 = vld [vmem:[%s1 + $0x530] sm:$0xff]
    %v758 = vld [vmem:[%s1 + $0x538] sm:$0xff]
    %v759 = vld [vmem:[%s1 + $0x540] sm:$0xff]
    %v760 = vld [vmem:[%s1 + $0x548] sm:$0xff]
    %v761 = vld [vmem:[%s1 + $0x550] sm:$0xff]
    %v762 = vld [vmem:[%s1 + $0x558] sm:$0xff]
    %v763 = vld [vmem:[%s1 + $0x560] sm:$0xff]
    %v764 = vld [vmem:[%s1 + $0x568] sm:$0xff]
    %v765 = vld [vmem:[%s1 + $0x570] sm:$0xff]
    %v766 = vld [vmem:[%s1 + $0x578] sm:$0xff]
    %v767 = vld [vmem:[%s1 + $0x580] sm:$0xff]
    %v768 = vld [vmem:[%s1 + $0x588] sm:$0xff]
    %v769 = vld [vmem:[%s1 + $0x590] sm:$0xff]
    %v770 = vld [vmem:[%s1 + $0x598] sm:$0xff]
    %v771 = vld [vmem:[%s1 + $0x5a0] sm:$0xff]
    %v772 = vld [vmem:[%s1 + $0x5a8] sm:$0xff]
    %v773 = vld [vmem:[%s1 + $0x5b0] sm:$0xff]
    %v774 = vld [vmem:[%s1 + $0x5b8] sm:$0xff]
    %v775 = vld [vmem:[%s1 + $0x5c0] sm:$0xff]
    %v776 = vld [vmem:[%s1 + $0x5c8] sm:$0xff]
    %v777 = vld [vmem:[%s1 + $0x5d0] sm:$0xff]
    %v778 = vld [vmem:[%s1 + $0x5d8] sm:$0xff]
    %v779 = vld [vmem:[%s1 + $0x5e0] sm:$0xff]
    %v780 = vld [vmem:[%s1 + $0x5e8] sm:$0xff]
    %v781 = vld [vmem:[%s1 + $0x5f0] sm:$0xff]
    %v782 = vld [vmem:[%s1 + $0x5f8] sm:$0xff]
    %v783 = vld [vmem:[%s1 + $0x600] sm:$0xff]
    %v784 = vld [vmem:[%s1 + $0x608] sm:$0xff]
    %v785 = vld [vmem:[%s1 + $0x610] sm:$0xff]
    %v786 = vld [vmem:[%s1 + $0x618] sm:$0xff]
    %v787 = vld [vmem:[%s1 + $0x620] sm:$0xff]
    %v788 = vld [vmem:[%s1 + $0x628] sm:$0xff]
    %v789 = vld [vmem:[%s1 + $0x630] sm:$0xff]
    %v790 = vld [vmem:[%s1 + $0x638] sm:$0xff]
    %v791 = vld [vmem:[%s1 + $0x640] sm:$0xff]
    %v792 = vld [vmem:[%s1 + $0x648] sm:$0xff]
    %v793 = vld [vmem:[%s1 + $0x650] sm:$0xff]
    %v794 = vld [vmem:[%s1 + $0x658] sm:$0xff]
    %v795 = vld [vmem:[%s1 + $0x660] sm:$0xff]
    %v796 = vld [vmem:[%s1 + $0x668] sm:$0xff]
    %v797 = vld [vmem:[%s1 + $0x670] sm:$0xff]
    %v798 = vld [vmem:[%s1 + $0x678] sm:$0xff]
    %v799 = vld [vmem:[%s1 + $0x680] sm:$0xff]
    %v800 = vld [vmem:[%s1 + $0x688] sm:$0xff]
    %v801 = vld [vmem:[%s1 + $0x690] sm:$0xff]
    %v802 = vld [vmem:[%s1 + $0x698] sm:$0xff]
    %v803 = vld [vmem:[%s1 + $0x6a0] sm:$0xff]
    %v804 = vld [vmem:[%s1 + $0x6a8] sm:$0xff]
    %v805 = vld [vmem:[%s1 + $0x6b0] sm:$0xff]
    %v806 = vld [vmem:[%s1 + $0x6b8] sm:$0xff]
    %v807 = vld [vmem:[%s1 + $0x6c0] sm:$0xff]
    %v808 = vld [vmem:[%s1 + $0x6c8] sm:$0xff]
    %v809 = vld [vmem:[%s1 + $0x6d0] sm:$0xff]
    %v810 = vld [vmem:[%s1 + $0x6d8] sm:$0xff]
    %v811 = vld [vmem:[%s1 + $0x6e0] sm:$0xff]
    %v812 = vld [vmem:[%s1 + $0x6e8] sm:$0xff]
    %v813 = vld [vmem:[%s1 + $0x6f0] sm:$0xff]
    %v814 = vld [vmem:[%s1 + $0x6f8] sm:$0xff]
    %v815 = vld [vmem:[%s1 + $0x700] sm:$0xff]
    %v816 = vld [vmem:[%s1 + $0x708] sm:$0xff]
    %v817 = vld [vmem:[%s1 + $0x710] sm:$0xff]
    %v818 = vld [vmem:[%s1 + $0x718] sm:$0xff]
    %v819 = vld [vmem:[%s1 + $0x720] sm:$0xff]
    %v820 = vld [vmem:[%s1 + $0x728] sm:$0xff]
    %v821 = vld [vmem:[%s1 + $0x730] sm:$0xff]
    %v822 = vld [vmem:[%s1 + $0x738] sm:$0xff]
    %v823 = vld [vmem:[%s1 + $0x740] sm:$0xff]
    %v824 = vld [vmem:[%s1 + $0x748] sm:$0xff]
    %v825 = vld [vmem:[%s1 + $0x750] sm:$0xff]
    %v826 = vld [vmem:[%s1 + $0x758] sm:$0xff]
    %v827 = vld [vmem:[%s1 + $0x760] sm:$0xff]
    %v828 = vld [vmem:[%s1 + $0x768] sm:$0xff]
    %v829 = vld [vmem:[%s1 + $0x770] sm:$0xff]
    %v830 = vld [vmem:[%s1 + $0x778] sm:$0xff]
    %v831 = vld [vmem:[%s1 + $0x780] sm:$0xff]
    %v832 = vld [vmem:[%s1 + $0x788] sm:$0xff]
    %v833 = vld [vmem:[%s1 + $0x790] sm:$0xff]
    %v834 = vld [vmem:[%s1 + $0x798] sm:$0xff]
    %v835 = vld [vmem:[%s1 + $0x7a0] sm:$0xff]
    %v836 = vld [vmem:[%s1 + $0x7a8] sm:$0xff]
    %v837 = vld [vmem:[%s1 + $0x7b0] sm:$0xff]
    %v838 = vld [vmem:[%s1 + $0x7b8] sm:$0xff]
    %v839 = vld [vmem:[%s1 + $0x7c0] sm:$0xff]
    %v840 = vld [vmem:[%s1 + $0x7c8] sm:$0xff]
    %v841 = vld [vmem:[%s1 + $0x7d0] sm:$0xff]
    %v842 = vld [vmem:[%s1 + $0x7d8] sm:$0xff]
    %v843 = vld [vmem:[%s1 + $0x7e0] sm:$0xff]
    %v844 = vld [vmem:[%s1 + $0x7e8] sm:$0xff]
    %v845 = vld [vmem:[%s1 + $0x7f0] sm:$0xff]
    %v846 = vld [vmem:[%s1 + $0x7f8] sm:$0xff]
    %v847 = vld [vmem:[%s1 + $0x800] sm:$0xff]
    %v848 = vld [vmem:[%s1 + $0x808] sm:$0xff]
    %v849 = vld [vmem:[%s1 + $0x810] sm:$0xff]
    %v850 = vld [vmem:[%s1 + $0x818] sm:$0xff]
    %v851 = vld [vmem:[%s1 + $0x820] sm:$0xff]
    %v852 = vld [vmem:[%s1 + $0x828] sm:$0xff]
    %v853 = vld [vmem:[%s1 + $0x830] sm:$0xff]
    %v854 = vld [vmem:[%s1 + $0x838] sm:$0xff]
    %v855 = vld [vmem:[%s1 + $0x840] sm:$0xff]
    %v856 = vld [vmem:[%s1 + $0x848] sm:$0xff]
    %v857 = vld [vmem:[%s1 + $0x850] sm:$0xff]
    %v858 = vld [vmem:[%s1 + $0x858] sm:$0xff]
    %v859 = vld [vmem:[%s1 + $0x860] sm:$0xff]
    %v860 = vld [vmem:[%s1 + $0x868] sm:$0xff]
    %v861 = vld [vmem:[%s1 + $0x870] sm:$0xff]
    %v862 = vld [vmem:[%s1 + $0x878] sm:$0xff]
    %v863 = vld [vmem:[%s1 + $0x880] sm:$0xff]
    %v864 = vld [vmem:[%s1 + $0x888] sm:$0xff]
    %v865 = vld [vmem:[%s1 + $0x890] sm:$0xff]
    %v866 = vld [vmem:[%s1 + $0x898] sm:$0xff]
    %v867 = vld [vmem:[%s1 + $0x8a0] sm:$0xff]
    %v868 = vld [vmem:[%s1 + $0x8a8] sm:$0xff]
    %v869 = vld [vmem:[%s1 + $0x8b0] sm:$0xff]
    %v870 = vld [vmem:[%s1 + $0x8b8] sm:$0xff]
    %v871 = vld [vmem:[%s1 + $0x8c0] sm:$0xff]
    %v872 = vld [vmem:[%s1 + $0x8c8] sm:$0xff]
    %v873 = vld [vmem:[%s1 + $0x8d0] sm:$0xff]
    %v874 = vld [vmem:[%s1 + $0x8d8] sm:$0xff]
    %v875 = vld [vmem:[%s1 + $0x8e0] sm:$0xff]
    %v876 = vld [vmem:[%s1 + $0x8e8] sm:$0xff]
    %v877 = vld [vmem:[%s1 + $0x8f0] sm:$0xff]
    %v878 = vld [vmem:[%s1 + $0x8f8] sm:$0xff]
    %v879 = vpack.c.bf16 %v603, %v591
    %v880 = vpack.c.bf16 %v604, %v592
    %v881 = vpack.c.bf16 %v605, %v593
    %v882 = vpack.c.bf16 %v606, %v594
    %v883 = vpack.c.bf16 %v607, %v595
    %v884 = vpack.c.bf16 %v608, %v596
    %v885 = vpack.c.bf16 %v609, %v597
    %v886 = vpack.c.bf16 %v610, %v598
    %v887 = vpack.c.bf16 %v611, %v599
    %v888 = vpack.c.bf16 %v612, %v600
    %v889 = vpack.c.bf16 %v613, %v601
    %v890 = vpack.c.bf16 %v614, %v602
    %v891 = vpack.c.bf16 %v627, %v615
    %v892 = vpack.c.bf16 %v628, %v616
    %v893 = vpack.c.bf16 %v629, %v617
    %v894 = vpack.c.bf16 %v630, %v618
    %v895 = vpack.c.bf16 %v631, %v619
    %v896 = vpack.c.bf16 %v632, %v620
    %v897 = vpack.c.bf16 %v633, %v621
    %v898 = vpack.c.bf16 %v634, %v622
    %v899 = vpack.c.bf16 %v635, %v623
    %v900 = vpack.c.bf16 %v636, %v624
    %v901 = vpack.c.bf16 %v637, %v625
    %v902 = vpack.c.bf16 %v638, %v626
    %v903 = vpack.c.bf16 %v651, %v639
    %v904 = vpack.c.bf16 %v652, %v640
    %v905 = vpack.c.bf16 %v653, %v641
    %v906 = vpack.c.bf16 %v654, %v642
    %v907 = vpack.c.bf16 %v655, %v643
    %v908 = vpack.c.bf16 %v656, %v644
    %v909 = vpack.c.bf16 %v657, %v645
    %v910 = vpack.c.bf16 %v658, %v646
    %v911 = vpack.c.bf16 %v659, %v647
    %v912 = vpack.c.bf16 %v660, %v648
    %v913 = vpack.c.bf16 %v661, %v649
    %v914 = vpack.c.bf16 %v662, %v650
    %v915 = vpack.c.bf16 %v675, %v663
    %v916 = vpack.c.bf16 %v676, %v664
    %v917 = vpack.c.bf16 %v677, %v665
    %v918 = vpack.c.bf16 %v678, %v666
    %v919 = vpack.c.bf16 %v679, %v667
    %v920 = vpack.c.bf16 %v680, %v668
    %v921 = vpack.c.bf16 %v681, %v669
    %v922 = vpack.c.bf16 %v682, %v670
    %v923 = vpack.c.bf16 %v683, %v671
    %v924 = vpack.c.bf16 %v684, %v672
    %v925 = vpack.c.bf16 %v685, %v673
    %v926 = vpack.c.bf16 %v686, %v674
    %v927 = vpack.c.bf16 %v699, %v687
    %v928 = vpack.c.bf16 %v700, %v688
    %v929 = vpack.c.bf16 %v701, %v689
    %v930 = vpack.c.bf16 %v702, %v690
    %v931 = vpack.c.bf16 %v703, %v691
    %v932 = vpack.c.bf16 %v704, %v692
    %v933 = vpack.c.bf16 %v705, %v693
    %v934 = vpack.c.bf16 %v706, %v694
    %v935 = vpack.c.bf16 %v707, %v695
    %v936 = vpack.c.bf16 %v708, %v696
    %v937 = vpack.c.bf16 %v709, %v697
    %v938 = vpack.c.bf16 %v710, %v698
    %v939 = vpack.c.bf16 %v723, %v711
    %v940 = vpack.c.bf16 %v724, %v712
    %v941 = vpack.c.bf16 %v725, %v713
    %v942 = vpack.c.bf16 %v726, %v714
    %v943 = vpack.c.bf16 %v727, %v715
    %v944 = vpack.c.bf16 %v728, %v716
    %v945 = vpack.c.bf16 %v729, %v717
    %v946 = vpack.c.bf16 %v730, %v718
    %v947 = vpack.c.bf16 %v731, %v719
    %v948 = vpack.c.bf16 %v732, %v720
    %v949 = vpack.c.bf16 %v733, %v721
    %v950 = vpack.c.bf16 %v734, %v722
    %v951 = vpack.c.bf16 %v747, %v735
    %v952 = vpack.c.bf16 %v748, %v736
    %v953 = vpack.c.bf16 %v749, %v737
    %v954 = vpack.c.bf16 %v750, %v738
    %v955 = vpack.c.bf16 %v751, %v739
    %v956 = vpack.c.bf16 %v752, %v740
    %v957 = vpack.c.bf16 %v753, %v741
    %v958 = vpack.c.bf16 %v754, %v742
    %v959 = vpack.c.bf16 %v755, %v743
    %v960 = vpack.c.bf16 %v756, %v744
    %v961 = vpack.c.bf16 %v757, %v745
    %v962 = vpack.c.bf16 %v758, %v746
    %v963 = vpack.c.bf16 %v771, %v759
    %v964 = vpack.c.bf16 %v772, %v760
    %v965 = vpack.c.bf16 %v773, %v761
    %v966 = vpack.c.bf16 %v774, %v762
    %v967 = vpack.c.bf16 %v775, %v763
    %v968 = vpack.c.bf16 %v776, %v764
    %v969 = vpack.c.bf16 %v777, %v765
    %v970 = vpack.c.bf16 %v778, %v766
    %v971 = vpack.c.bf16 %v779, %v767
    %v972 = vpack.c.bf16 %v780, %v768
    %v973 = vpack.c.bf16 %v781, %v769
    %v974 = vpack.c.bf16 %v782, %v770
    %v975 = vpack.c.bf16 %v795, %v783
    %v976 = vpack.c.bf16 %v796, %v784
    %v977 = vpack.c.bf16 %v797, %v785
    %v978 = vpack.c.bf16 %v798, %v786
    %v979 = vpack.c.bf16 %v799, %v787
    %v980 = vpack.c.bf16 %v800, %v788
    %v981 = vpack.c.bf16 %v801, %v789
    %v982 = vpack.c.bf16 %v802, %v790
    %v983 = vpack.c.bf16 %v803, %v791
    %v984 = vpack.c.bf16 %v804, %v792
    %v985 = vpack.c.bf16 %v805, %v793
    %v986 = vpack.c.bf16 %v806, %v794
    %v987 = vpack.c.bf16 %v819, %v807
    %v988 = vpack.c.bf16 %v820, %v808
    %v989 = vpack.c.bf16 %v821, %v809
    %v990 = vpack.c.bf16 %v822, %v810
    %v991 = vpack.c.bf16 %v823, %v811
    %v992 = vpack.c.bf16 %v824, %v812
    %v993 = vpack.c.bf16 %v825, %v813
    %v994 = vpack.c.bf16 %v826, %v814
    %v995 = vpack.c.bf16 %v827, %v815
    %v996 = vpack.c.bf16 %v828, %v816
    %v997 = vpack.c.bf16 %v829, %v817
    %v998 = vpack.c.bf16 %v830, %v818
    %v999 = vpack.c.bf16 %v843, %v831
    %v1000 = vpack.c.bf16 %v844, %v832
    %v1001 = vpack.c.bf16 %v845, %v833
    %v1002 = vpack.c.bf16 %v846, %v834
    %v1003 = vpack.c.bf16 %v847, %v835
    %v1004 = vpack.c.bf16 %v848, %v836
    %v1005 = vpack.c.bf16 %v849, %v837
    %v1006 = vpack.c.bf16 %v850, %v838
    %v1007 = vpack.c.bf16 %v851, %v839
    %v1008 = vpack.c.bf16 %v852, %v840
    %v1009 = vpack.c.bf16 %v853, %v841
    %v1010 = vpack.c.bf16 %v854, %v842
    %v1011 = vpack.c.bf16 %v867, %v855
    %v1012 = vpack.c.bf16 %v868, %v856
    %v1013 = vpack.c.bf16 %v869, %v857
    %v1014 = vpack.c.bf16 %v870, %v858
    %v1015 = vpack.c.bf16 %v871, %v859
    %v1016 = vpack.c.bf16 %v872, %v860
    %v1017 = vpack.c.bf16 %v873, %v861
    %v1018 = vpack.c.bf16 %v874, %v862
    %v1019 = vpack.c.bf16 %v875, %v863
    %v1020 = vpack.c.bf16 %v876, %v864
    %v1021 = vpack.c.bf16 %v877, %v865
    %v1022 = vpack.c.bf16 %v878, %v866
    %1023 = vmatpush.bf16.msra.mxu0 %v413
    %1024 = vmatpush.bf16.msra.mxu0 %v411
    %1025 = vmatpush.bf16.msra.mxu0 %v409
    %1026 = vmatpush.bf16.msra.mxu0 %v407
    %1027 = vmatpush.bf16.msra.mxu0 %v405
    %1028 = vmatpush.bf16.msra.mxu0 %v403
    %1029 = vmatpush.bf16.msra.mxu0 %v401
    %1030 = vmatpush.bf16.msra.mxu0 %v399
    %1031 = vmatmul.bf16.gmra.mxu0 %v879
    %v1032 = vpop.f32.mrf.mxu0
    %v1033 = vadd.f32 0.0, %v1032
    %v1034 = vpop.f32.mrf.mxu0
    %v1035 = vadd.f32 0.0, %v1034
    %1036 = vmatmul.bf16.gmra.mxu0 %v891
    %v1037 = vpop.f32.mrf.mxu0
    %v1038 = vadd.f32 0.0, %v1037
    %v1039 = vpop.f32.mrf.mxu0
    %v1040 = vadd.f32 0.0, %v1039
    %1041 = vmatmul.bf16.gmra.mxu0 %v903
    %v1042 = vpop.f32.mrf.mxu0
    %v1043 = vadd.f32 0.0, %v1042
    %v1044 = vpop.f32.mrf.mxu0
    %v1045 = vadd.f32 0.0, %v1044
    %1046 = vmatmul.bf16.gmra.mxu0 %v915
    %v1047 = vpop.f32.mrf.mxu0
    %v1048 = vadd.f32 0.0, %v1047
    %v1049 = vpop.f32.mrf.mxu0
    %v1050 = vadd.f32 0.0, %v1049
    %1051 = vmatmul.bf16.gmra.mxu0 %v927
    %v1052 = vpop.f32.mrf.mxu0
    %v1053 = vadd.f32 0.0, %v1052
    %v1054 = vpop.f32.mrf.mxu0
    %v1055 = vadd.f32 0.0, %v1054
    %1056 = vmatmul.bf16.gmra.mxu0 %v939
    %v1057 = vpop.f32.mrf.mxu0
    %v1058 = vadd.f32 0.0, %v1057
    %v1059 = vpop.f32.mrf.mxu0
    %v1060 = vadd.f32 0.0, %v1059
    %1061 = vmatmul.bf16.gmra.mxu0 %v951
    %v1062 = vpop.f32.mrf.mxu0
    %v1063 = vadd.f32 0.0, %v1062
    %v1064 = vpop.f32.mrf.mxu0
    %v1065 = vadd.f32 0.0, %v1064
    %1066 = vmatmul.bf16.gmra.mxu0 %v963
    %v1067 = vpop.f32.mrf.mxu0
    %v1068 = vadd.f32 0.0, %v1067
    %v1069 = vpop.f32.mrf.mxu0
    %v1070 = vadd.f32 0.0, %v1069
    %1071 = vmatmul.bf16.gmra.mxu0 %v975
    %v1072 = vpop.f32.mrf.mxu0
    %v1073 = vadd.f32 0.0, %v1072
    %v1074 = vpop.f32.mrf.mxu0
    %v1075 = vadd.f32 0.0, %v1074
    %1076 = vmatmul.bf16.gmra.mxu0 %v987
    %v1077 = vpop.f32.mrf.mxu0
    %v1078 = vadd.f32 0.0, %v1077
    %v1079 = vpop.f32.mrf.mxu0
    %v1080 = vadd.f32 0.0, %v1079
    %1081 = vmatmul.bf16.gmra.mxu0 %v999
    %v1082 = vpop.f32.mrf.mxu0
    %v1083 = vadd.f32 0.0, %v1082
    %v1084 = vpop.f32.mrf.mxu0
    %v1085 = vadd.f32 0.0, %v1084
    %1086 = vmatmul.bf16.gmra.mxu0 %v1011
    %v1087 = vpop.f32.mrf.mxu0
    %v1088 = vadd.f32 0.0, %v1087
    %v1089 = vpop.f32.mrf.mxu0
    %v1090 = vadd.f32 0.0, %v1089
    %1091 = vdwg.mxu0
    %1092 = vmatpush.bf16.msra.mxu0 %v429
    %1093 = vmatpush.bf16.msra.mxu0 %v427
    %1094 = vmatpush.bf16.msra.mxu0 %v425
    %1095 = vmatpush.bf16.msra.mxu0 %v423
    %1096 = vmatpush.bf16.msra.mxu0 %v421
    %1097 = vmatpush.bf16.msra.mxu0 %v419
    %1098 = vmatpush.bf16.msra.mxu0 %v417
    %1099 = vmatpush.bf16.msra.mxu0 %v415
    %1100 = vmatmul.bf16.gmra.mxu0 %v880
    %v1101 = vpop.f32.mrf.mxu0
    %v1102 = vadd.f32 %v1033, %v1101
    %v1103 = vpop.f32.mrf.mxu0
    %v1104 = vadd.f32 %v1035, %v1103
    %1105 = vmatmul.bf16.gmra.mxu0 %v892
    %v1106 = vpop.f32.mrf.mxu0
    %v1107 = vadd.f32 %v1038, %v1106
    %v1108 = vpop.f32.mrf.mxu0
    %v1109 = vadd.f32 %v1040, %v1108
    %1110 = vmatmul.bf16.gmra.mxu0 %v904
    %v1111 = vpop.f32.mrf.mxu0
    %v1112 = vadd.f32 %v1043, %v1111
    %v1113 = vpop.f32.mrf.mxu0
    %v1114 = vadd.f32 %v1045, %v1113
    %1115 = vmatmul.bf16.gmra.mxu0 %v916
    %v1116 = vpop.f32.mrf.mxu0
    %v1117 = vadd.f32 %v1048, %v1116
    %v1118 = vpop.f32.mrf.mxu0
    %v1119 = vadd.f32 %v1050, %v1118
    %1120 = vmatmul.bf16.gmra.mxu0 %v928
    %v1121 = vpop.f32.mrf.mxu0
    %v1122 = vadd.f32 %v1053, %v1121
    %v1123 = vpop.f32.mrf.mxu0
    %v1124 = vadd.f32 %v1055, %v1123
    %1125 = vmatmul.bf16.gmra.mxu0 %v940
    %v1126 = vpop.f32.mrf.mxu0
    %v1127 = vadd.f32 %v1058, %v1126
    %v1128 = vpop.f32.mrf.mxu0
    %v1129 = vadd.f32 %v1060, %v1128
    %1130 = vmatmul.bf16.gmra.mxu0 %v952
    %v1131 = vpop.f32.mrf.mxu0
    %v1132 = vadd.f32 %v1063, %v1131
    %v1133 = vpop.f32.mrf.mxu0
    %v1134 = vadd.f32 %v1065, %v1133
    %1135 = vmatmul.bf16.gmra.mxu0 %v964
    %v1136 = vpop.f32.mrf.mxu0
    %v1137 = vadd.f32 %v1068, %v1136
    %v1138 = vpop.f32.mrf.mxu0
    %v1139 = vadd.f32 %v1070, %v1138
    %1140 = vmatmul.bf16.gmra.mxu0 %v976
    %v1141 = vpop.f32.mrf.mxu0
    %v1142 = vadd.f32 %v1073, %v1141
    %v1143 = vpop.f32.mrf.mxu0
    %v1144 = vadd.f32 %v1075, %v1143
    %1145 = vmatmul.bf16.gmra.mxu0 %v988
    %v1146 = vpop.f32.mrf.mxu0
    %v1147 = vadd.f32 %v1078, %v1146
    %v1148 = vpop.f32.mrf.mxu0
    %v1149 = vadd.f32 %v1080, %v1148
    %1150 = vmatmul.bf16.gmra.mxu0 %v1000
    %v1151 = vpop.f32.mrf.mxu0
    %v1152 = vadd.f32 %v1083, %v1151
    %v1153 = vpop.f32.mrf.mxu0
    %v1154 = vadd.f32 %v1085, %v1153
    %1155 = vmatmul.bf16.gmra.mxu0 %v1012
    %v1156 = vpop.f32.mrf.mxu0
    %v1157 = vadd.f32 %v1088, %v1156
    %v1158 = vpop.f32.mrf.mxu0
    %v1159 = vadd.f32 %v1090, %v1158
    %1160 = vdwg.mxu0
    %1161 = vmatpush.bf16.msra.mxu0 %v445
    %1162 = vmatpush.bf16.msra.mxu0 %v443
    %1163 = vmatpush.bf16.msra.mxu0 %v441
    %1164 = vmatpush.bf16.msra.mxu0 %v439
    %1165 = vmatpush.bf16.msra.mxu0 %v437
    %1166 = vmatpush.bf16.msra.mxu0 %v435
    %1167 = vmatpush.bf16.msra.mxu0 %v433
    %1168 = vmatpush.bf16.msra.mxu0 %v431
    %1169 = vmatmul.bf16.gmra.mxu0 %v881
    %v1170 = vpop.f32.mrf.mxu0
    %v1171 = vadd.f32 %v1102, %v1170
    %v1172 = vpop.f32.mrf.mxu0
    %v1173 = vadd.f32 %v1104, %v1172
    %1174 = vmatmul.bf16.gmra.mxu0 %v893
    %v1175 = vpop.f32.mrf.mxu0
    %v1176 = vadd.f32 %v1107, %v1175
    %v1177 = vpop.f32.mrf.mxu0
    %v1178 = vadd.f32 %v1109, %v1177
    %1179 = vmatmul.bf16.gmra.mxu0 %v905
    %v1180 = vpop.f32.mrf.mxu0
    %v1181 = vadd.f32 %v1112, %v1180
    %v1182 = vpop.f32.mrf.mxu0
    %v1183 = vadd.f32 %v1114, %v1182
    %1184 = vmatmul.bf16.gmra.mxu0 %v917
    %v1185 = vpop.f32.mrf.mxu0
    %v1186 = vadd.f32 %v1117, %v1185
    %v1187 = vpop.f32.mrf.mxu0
    %v1188 = vadd.f32 %v1119, %v1187
    %1189 = vmatmul.bf16.gmra.mxu0 %v929
    %v1190 = vpop.f32.mrf.mxu0
    %v1191 = vadd.f32 %v1122, %v1190
    %v1192 = vpop.f32.mrf.mxu0
    %v1193 = vadd.f32 %v1124, %v1192
    %1194 = vmatmul.bf16.gmra.mxu0 %v941
    %v1195 = vpop.f32.mrf.mxu0
    %v1196 = vadd.f32 %v1127, %v1195
    %v1197 = vpop.f32.mrf.mxu0
    %v1198 = vadd.f32 %v1129, %v1197
    %1199 = vmatmul.bf16.gmra.mxu0 %v953
    %v1200 = vpop.f32.mrf.mxu0
    %v1201 = vadd.f32 %v1132, %v1200
    %v1202 = vpop.f32.mrf.mxu0
    %v1203 = vadd.f32 %v1134, %v1202
    %1204 = vmatmul.bf16.gmra.mxu0 %v965
    %v1205 = vpop.f32.mrf.mxu0
    %v1206 = vadd.f32 %v1137, %v1205
    %v1207 = vpop.f32.mrf.mxu0
    %v1208 = vadd.f32 %v1139, %v1207
    %1209 = vmatmul.bf16.gmra.mxu0 %v977
    %v1210 = vpop.f32.mrf.mxu0
    %v1211 = vadd.f32 %v1142, %v1210
    %v1212 = vpop.f32.mrf.mxu0
    %v1213 = vadd.f32 %v1144, %v1212
    %1214 = vmatmul.bf16.gmra.mxu0 %v989
    %v1215 = vpop.f32.mrf.mxu0
    %v1216 = vadd.f32 %v1147, %v1215
    %v1217 = vpop.f32.mrf.mxu0
    %v1218 = vadd.f32 %v1149, %v1217
    %1219 = vmatmul.bf16.gmra.mxu0 %v1001
    %v1220 = vpop.f32.mrf.mxu0
    %v1221 = vadd.f32 %v1152, %v1220
    %v1222 = vpop.f32.mrf.mxu0
    %v1223 = vadd.f32 %v1154, %v1222
    %1224 = vmatmul.bf16.gmra.mxu0 %v1013
    %v1225 = vpop.f32.mrf.mxu0
    %v1226 = vadd.f32 %v1157, %v1225
    %v1227 = vpop.f32.mrf.mxu0
    %v1228 = vadd.f32 %v1159, %v1227
    %1229 = vdwg.mxu0
    %1230 = vmatpush.bf16.msra.mxu0 %v461
    %1231 = vmatpush.bf16.msra.mxu0 %v459
    %1232 = vmatpush.bf16.msra.mxu0 %v457
    %1233 = vmatpush.bf16.msra.mxu0 %v455
    %1234 = vmatpush.bf16.msra.mxu0 %v453
    %1235 = vmatpush.bf16.msra.mxu0 %v451
    %1236 = vmatpush.bf16.msra.mxu0 %v449
    %1237 = vmatpush.bf16.msra.mxu0 %v447
    %1238 = vmatmul.bf16.gmra.mxu0 %v882
    %v1239 = vpop.f32.mrf.mxu0
    %v1240 = vadd.f32 %v1171, %v1239
    %v1241 = vpop.f32.mrf.mxu0
    %v1242 = vadd.f32 %v1173, %v1241
    %1243 = vmatmul.bf16.gmra.mxu0 %v894
    %v1244 = vpop.f32.mrf.mxu0
    %v1245 = vadd.f32 %v1176, %v1244
    %v1246 = vpop.f32.mrf.mxu0
    %v1247 = vadd.f32 %v1178, %v1246
    %1248 = vmatmul.bf16.gmra.mxu0 %v906
    %v1249 = vpop.f32.mrf.mxu0
    %v1250 = vadd.f32 %v1181, %v1249
    %v1251 = vpop.f32.mrf.mxu0
    %v1252 = vadd.f32 %v1183, %v1251
    %1253 = vmatmul.bf16.gmra.mxu0 %v918
    %v1254 = vpop.f32.mrf.mxu0
    %v1255 = vadd.f32 %v1186, %v1254
    %v1256 = vpop.f32.mrf.mxu0
    %v1257 = vadd.f32 %v1188, %v1256
    %1258 = vmatmul.bf16.gmra.mxu0 %v930
    %v1259 = vpop.f32.mrf.mxu0
    %v1260 = vadd.f32 %v1191, %v1259
    %v1261 = vpop.f32.mrf.mxu0
    %v1262 = vadd.f32 %v1193, %v1261
    %1263 = vmatmul.bf16.gmra.mxu0 %v942
    %v1264 = vpop.f32.mrf.mxu0
    %v1265 = vadd.f32 %v1196, %v1264
    %v1266 = vpop.f32.mrf.mxu0
    %v1267 = vadd.f32 %v1198, %v1266
    %1268 = vmatmul.bf16.gmra.mxu0 %v954
    %v1269 = vpop.f32.mrf.mxu0
    %v1270 = vadd.f32 %v1201, %v1269
    %v1271 = vpop.f32.mrf.mxu0
    %v1272 = vadd.f32 %v1203, %v1271
    %1273 = vmatmul.bf16.gmra.mxu0 %v966
    %v1274 = vpop.f32.mrf.mxu0
    %v1275 = vadd.f32 %v1206, %v1274
    %v1276 = vpop.f32.mrf.mxu0
    %v1277 = vadd.f32 %v1208, %v1276
    %1278 = vmatmul.bf16.gmra.mxu0 %v978
    %v1279 = vpop.f32.mrf.mxu0
    %v1280 = vadd.f32 %v1211, %v1279
    %v1281 = vpop.f32.mrf.mxu0
    %v1282 = vadd.f32 %v1213, %v1281
    %1283 = vmatmul.bf16.gmra.mxu0 %v990
    %v1284 = vpop.f32.mrf.mxu0
    %v1285 = vadd.f32 %v1216, %v1284
    %v1286 = vpop.f32.mrf.mxu0
    %v1287 = vadd.f32 %v1218, %v1286
    %1288 = vmatmul.bf16.gmra.mxu0 %v1002
    %v1289 = vpop.f32.mrf.mxu0
    %v1290 = vadd.f32 %v1221, %v1289
    %v1291 = vpop.f32.mrf.mxu0
    %v1292 = vadd.f32 %v1223, %v1291
    %1293 = vmatmul.bf16.gmra.mxu0 %v1014
    %v1294 = vpop.f32.mrf.mxu0
    %v1295 = vadd.f32 %v1226, %v1294
    %v1296 = vpop.f32.mrf.mxu0
    %v1297 = vadd.f32 %v1228, %v1296
    %1298 = vdwg.mxu0
    %1299 = vmatpush.bf16.msra.mxu0 %v477
    %1300 = vmatpush.bf16.msra.mxu0 %v475
    %1301 = vmatpush.bf16.msra.mxu0 %v473
    %1302 = vmatpush.bf16.msra.mxu0 %v471
    %1303 = vmatpush.bf16.msra.mxu0 %v469
    %1304 = vmatpush.bf16.msra.mxu0 %v467
    %1305 = vmatpush.bf16.msra.mxu0 %v465
    %1306 = vmatpush.bf16.msra.mxu0 %v463
    %1307 = vmatmul.bf16.gmra.mxu0 %v883
    %v1308 = vpop.f32.mrf.mxu0
    %v1309 = vadd.f32 %v1240, %v1308
    %v1310 = vpop.f32.mrf.mxu0
    %v1311 = vadd.f32 %v1242, %v1310
    %1312 = vmatmul.bf16.gmra.mxu0 %v895
    %v1313 = vpop.f32.mrf.mxu0
    %v1314 = vadd.f32 %v1245, %v1313
    %v1315 = vpop.f32.mrf.mxu0
    %v1316 = vadd.f32 %v1247, %v1315
    %1317 = vmatmul.bf16.gmra.mxu0 %v907
    %v1318 = vpop.f32.mrf.mxu0
    %v1319 = vadd.f32 %v1250, %v1318
    %v1320 = vpop.f32.mrf.mxu0
    %v1321 = vadd.f32 %v1252, %v1320
    %1322 = vmatmul.bf16.gmra.mxu0 %v919
    %v1323 = vpop.f32.mrf.mxu0
    %v1324 = vadd.f32 %v1255, %v1323
    %v1325 = vpop.f32.mrf.mxu0
    %v1326 = vadd.f32 %v1257, %v1325
    %1327 = vmatmul.bf16.gmra.mxu0 %v931
    %v1328 = vpop.f32.mrf.mxu0
    %v1329 = vadd.f32 %v1260, %v1328
    %v1330 = vpop.f32.mrf.mxu0
    %v1331 = vadd.f32 %v1262, %v1330
    %1332 = vmatmul.bf16.gmra.mxu0 %v943
    %v1333 = vpop.f32.mrf.mxu0
    %v1334 = vadd.f32 %v1265, %v1333
    %v1335 = vpop.f32.mrf.mxu0
    %v1336 = vadd.f32 %v1267, %v1335
    %1337 = vmatmul.bf16.gmra.mxu0 %v955
    %v1338 = vpop.f32.mrf.mxu0
    %v1339 = vadd.f32 %v1270, %v1338
    %v1340 = vpop.f32.mrf.mxu0
    %v1341 = vadd.f32 %v1272, %v1340
    %1342 = vmatmul.bf16.gmra.mxu0 %v967
    %v1343 = vpop.f32.mrf.mxu0
    %v1344 = vadd.f32 %v1275, %v1343
    %v1345 = vpop.f32.mrf.mxu0
    %v1346 = vadd.f32 %v1277, %v1345
    %1347 = vmatmul.bf16.gmra.mxu0 %v979
    %v1348 = vpop.f32.mrf.mxu0
    %v1349 = vadd.f32 %v1280, %v1348
    %v1350 = vpop.f32.mrf.mxu0
    %v1351 = vadd.f32 %v1282, %v1350
    %1352 = vmatmul.bf16.gmra.mxu0 %v991
    %v1353 = vpop.f32.mrf.mxu0
    %v1354 = vadd.f32 %v1285, %v1353
    %v1355 = vpop.f32.mrf.mxu0
    %v1356 = vadd.f32 %v1287, %v1355
    %1357 = vmatmul.bf16.gmra.mxu0 %v1003
    %v1358 = vpop.f32.mrf.mxu0
    %v1359 = vadd.f32 %v1290, %v1358
    %v1360 = vpop.f32.mrf.mxu0
    %v1361 = vadd.f32 %v1292, %v1360
    %1362 = vmatmul.bf16.gmra.mxu0 %v1015
    %v1363 = vpop.f32.mrf.mxu0
    %v1364 = vadd.f32 %v1295, %v1363
    %v1365 = vpop.f32.mrf.mxu0
    %v1366 = vadd.f32 %v1297, %v1365
    %1367 = vdwg.mxu0
    %1368 = vmatpush.bf16.msra.mxu0 %v493
    %1369 = vmatpush.bf16.msra.mxu0 %v491
    %1370 = vmatpush.bf16.msra.mxu0 %v489
    %1371 = vmatpush.bf16.msra.mxu0 %v487
    %1372 = vmatpush.bf16.msra.mxu0 %v485
    %1373 = vmatpush.bf16.msra.mxu0 %v483
    %1374 = vmatpush.bf16.msra.mxu0 %v481
    %1375 = vmatpush.bf16.msra.mxu0 %v479
    %1376 = vmatmul.bf16.gmra.mxu0 %v884
    %v1377 = vpop.f32.mrf.mxu0
    %v1378 = vadd.f32 %v1309, %v1377
    %v1379 = vpop.f32.mrf.mxu0
    %v1380 = vadd.f32 %v1311, %v1379
    %1381 = vmatmul.bf16.gmra.mxu0 %v896
    %v1382 = vpop.f32.mrf.mxu0
    %v1383 = vadd.f32 %v1314, %v1382
    %v1384 = vpop.f32.mrf.mxu0
    %v1385 = vadd.f32 %v1316, %v1384
    %1386 = vmatmul.bf16.gmra.mxu0 %v908
    %v1387 = vpop.f32.mrf.mxu0
    %v1388 = vadd.f32 %v1319, %v1387
    %v1389 = vpop.f32.mrf.mxu0
    %v1390 = vadd.f32 %v1321, %v1389
    %1391 = vmatmul.bf16.gmra.mxu0 %v920
    %v1392 = vpop.f32.mrf.mxu0
    %v1393 = vadd.f32 %v1324, %v1392
    %v1394 = vpop.f32.mrf.mxu0
    %v1395 = vadd.f32 %v1326, %v1394
    %1396 = vmatmul.bf16.gmra.mxu0 %v932
    %v1397 = vpop.f32.mrf.mxu0
    %v1398 = vadd.f32 %v1329, %v1397
    %v1399 = vpop.f32.mrf.mxu0
    %v1400 = vadd.f32 %v1331, %v1399
    %1401 = vmatmul.bf16.gmra.mxu0 %v944
    %v1402 = vpop.f32.mrf.mxu0
    %v1403 = vadd.f32 %v1334, %v1402
    %v1404 = vpop.f32.mrf.mxu0
    %v1405 = vadd.f32 %v1336, %v1404
    %1406 = vmatmul.bf16.gmra.mxu0 %v956
    %v1407 = vpop.f32.mrf.mxu0
    %v1408 = vadd.f32 %v1339, %v1407
    %v1409 = vpop.f32.mrf.mxu0
    %v1410 = vadd.f32 %v1341, %v1409
    %1411 = vmatmul.bf16.gmra.mxu0 %v968
    %v1412 = vpop.f32.mrf.mxu0
    %v1413 = vadd.f32 %v1344, %v1412
    %v1414 = vpop.f32.mrf.mxu0
    %v1415 = vadd.f32 %v1346, %v1414
    %1416 = vmatmul.bf16.gmra.mxu0 %v980
    %v1417 = vpop.f32.mrf.mxu0
    %v1418 = vadd.f32 %v1349, %v1417
    %v1419 = vpop.f32.mrf.mxu0
    %v1420 = vadd.f32 %v1351, %v1419
    %1421 = vmatmul.bf16.gmra.mxu0 %v992
    %v1422 = vpop.f32.mrf.mxu0
    %v1423 = vadd.f32 %v1354, %v1422
    %v1424 = vpop.f32.mrf.mxu0
    %v1425 = vadd.f32 %v1356, %v1424
    %1426 = vmatmul.bf16.gmra.mxu0 %v1004
    %v1427 = vpop.f32.mrf.mxu0
    %v1428 = vadd.f32 %v1359, %v1427
    %v1429 = vpop.f32.mrf.mxu0
    %v1430 = vadd.f32 %v1361, %v1429
    %1431 = vmatmul.bf16.gmra.mxu0 %v1016
    %v1432 = vpop.f32.mrf.mxu0
    %v1433 = vadd.f32 %v1364, %v1432
    %v1434 = vpop.f32.mrf.mxu0
    %v1435 = vadd.f32 %v1366, %v1434
    %1436 = vdwg.mxu0
    %1437 = vmatpush.bf16.msra.mxu0 %v509
    %1438 = vmatpush.bf16.msra.mxu0 %v507
    %1439 = vmatpush.bf16.msra.mxu0 %v505
    %1440 = vmatpush.bf16.msra.mxu0 %v503
    %1441 = vmatpush.bf16.msra.mxu0 %v501
    %1442 = vmatpush.bf16.msra.mxu0 %v499
    %1443 = vmatpush.bf16.msra.mxu0 %v497
    %1444 = vmatpush.bf16.msra.mxu0 %v495
    %1445 = vmatmul.bf16.gmra.mxu0 %v885
    %v1446 = vpop.f32.mrf.mxu0
    %v1447 = vadd.f32 %v1378, %v1446
    %v1448 = vpop.f32.mrf.mxu0
    %v1449 = vadd.f32 %v1380, %v1448
    %1450 = vmatmul.bf16.gmra.mxu0 %v897
    %v1451 = vpop.f32.mrf.mxu0
    %v1452 = vadd.f32 %v1383, %v1451
    %v1453 = vpop.f32.mrf.mxu0
    %v1454 = vadd.f32 %v1385, %v1453
    %1455 = vmatmul.bf16.gmra.mxu0 %v909
    %v1456 = vpop.f32.mrf.mxu0
    %v1457 = vadd.f32 %v1388, %v1456
    %v1458 = vpop.f32.mrf.mxu0
    %v1459 = vadd.f32 %v1390, %v1458
    %1460 = vmatmul.bf16.gmra.mxu0 %v921
    %v1461 = vpop.f32.mrf.mxu0
    %v1462 = vadd.f32 %v1393, %v1461
    %v1463 = vpop.f32.mrf.mxu0
    %v1464 = vadd.f32 %v1395, %v1463
    %1465 = vmatmul.bf16.gmra.mxu0 %v933
    %v1466 = vpop.f32.mrf.mxu0
    %v1467 = vadd.f32 %v1398, %v1466
    %v1468 = vpop.f32.mrf.mxu0
    %v1469 = vadd.f32 %v1400, %v1468
    %1470 = vmatmul.bf16.gmra.mxu0 %v945
    %v1471 = vpop.f32.mrf.mxu0
    %v1472 = vadd.f32 %v1403, %v1471
    %v1473 = vpop.f32.mrf.mxu0
    %v1474 = vadd.f32 %v1405, %v1473
    %1475 = vmatmul.bf16.gmra.mxu0 %v957
    %v1476 = vpop.f32.mrf.mxu0
    %v1477 = vadd.f32 %v1408, %v1476
    %v1478 = vpop.f32.mrf.mxu0
    %v1479 = vadd.f32 %v1410, %v1478
    %1480 = vmatmul.bf16.gmra.mxu0 %v969
    %v1481 = vpop.f32.mrf.mxu0
    %v1482 = vadd.f32 %v1413, %v1481
    %v1483 = vpop.f32.mrf.mxu0
    %v1484 = vadd.f32 %v1415, %v1483
    %1485 = vmatmul.bf16.gmra.mxu0 %v981
    %v1486 = vpop.f32.mrf.mxu0
    %v1487 = vadd.f32 %v1418, %v1486
    %v1488 = vpop.f32.mrf.mxu0
    %v1489 = vadd.f32 %v1420, %v1488
    %1490 = vmatmul.bf16.gmra.mxu0 %v993
    %v1491 = vpop.f32.mrf.mxu0
    %v1492 = vadd.f32 %v1423, %v1491
    %v1493 = vpop.f32.mrf.mxu0
    %v1494 = vadd.f32 %v1425, %v1493
    %1495 = vmatmul.bf16.gmra.mxu0 %v1005
    %v1496 = vpop.f32.mrf.mxu0
    %v1497 = vadd.f32 %v1428, %v1496
    %v1498 = vpop.f32.mrf.mxu0
    %v1499 = vadd.f32 %v1430, %v1498
    %1500 = vmatmul.bf16.gmra.mxu0 %v1017
    %v1501 = vpop.f32.mrf.mxu0
    %v1502 = vadd.f32 %v1433, %v1501
    %v1503 = vpop.f32.mrf.mxu0
    %v1504 = vadd.f32 %v1435, %v1503
    %1505 = vdwg.mxu0
    %1506 = vmatpush.bf16.msra.mxu0 %v525
    %1507 = vmatpush.bf16.msra.mxu0 %v523
    %1508 = vmatpush.bf16.msra.mxu0 %v521
    %1509 = vmatpush.bf16.msra.mxu0 %v519
    %1510 = vmatpush.bf16.msra.mxu0 %v517
    %1511 = vmatpush.bf16.msra.mxu0 %v515
    %1512 = vmatpush.bf16.msra.mxu0 %v513
    %1513 = vmatpush.bf16.msra.mxu0 %v511
    %1514 = vmatmul.bf16.gmra.mxu0 %v886
    %v1515 = vpop.f32.mrf.mxu0
    %v1516 = vadd.f32 %v1447, %v1515
    %v1517 = vpop.f32.mrf.mxu0
    %v1518 = vadd.f32 %v1449, %v1517
    %1519 = vmatmul.bf16.gmra.mxu0 %v898
    %v1520 = vpop.f32.mrf.mxu0
    %v1521 = vadd.f32 %v1452, %v1520
    %v1522 = vpop.f32.mrf.mxu0
    %v1523 = vadd.f32 %v1454, %v1522
    %1524 = vmatmul.bf16.gmra.mxu0 %v910
    %v1525 = vpop.f32.mrf.mxu0
    %v1526 = vadd.f32 %v1457, %v1525
    %v1527 = vpop.f32.mrf.mxu0
    %v1528 = vadd.f32 %v1459, %v1527
    %1529 = vmatmul.bf16.gmra.mxu0 %v922
    %v1530 = vpop.f32.mrf.mxu0
    %v1531 = vadd.f32 %v1462, %v1530
    %v1532 = vpop.f32.mrf.mxu0
    %v1533 = vadd.f32 %v1464, %v1532
    %1534 = vmatmul.bf16.gmra.mxu0 %v934
    %v1535 = vpop.f32.mrf.mxu0
    %v1536 = vadd.f32 %v1467, %v1535
    %v1537 = vpop.f32.mrf.mxu0
    %v1538 = vadd.f32 %v1469, %v1537
    %1539 = vmatmul.bf16.gmra.mxu0 %v946
    %v1540 = vpop.f32.mrf.mxu0
    %v1541 = vadd.f32 %v1472, %v1540
    %v1542 = vpop.f32.mrf.mxu0
    %v1543 = vadd.f32 %v1474, %v1542
    %1544 = vmatmul.bf16.gmra.mxu0 %v958
    %v1545 = vpop.f32.mrf.mxu0
    %v1546 = vadd.f32 %v1477, %v1545
    %v1547 = vpop.f32.mrf.mxu0
    %v1548 = vadd.f32 %v1479, %v1547
    %1549 = vmatmul.bf16.gmra.mxu0 %v970
    %v1550 = vpop.f32.mrf.mxu0
    %v1551 = vadd.f32 %v1482, %v1550
    %v1552 = vpop.f32.mrf.mxu0
    %v1553 = vadd.f32 %v1484, %v1552
    %1554 = vmatmul.bf16.gmra.mxu0 %v982
    %v1555 = vpop.f32.mrf.mxu0
    %v1556 = vadd.f32 %v1487, %v1555
    %v1557 = vpop.f32.mrf.mxu0
    %v1558 = vadd.f32 %v1489, %v1557
    %1559 = vmatmul.bf16.gmra.mxu0 %v994
    %v1560 = vpop.f32.mrf.mxu0
    %v1561 = vadd.f32 %v1492, %v1560
    %v1562 = vpop.f32.mrf.mxu0
    %v1563 = vadd.f32 %v1494, %v1562
    %1564 = vmatmul.bf16.gmra.mxu0 %v1006
    %v1565 = vpop.f32.mrf.mxu0
    %v1566 = vadd.f32 %v1497, %v1565
    %v1567 = vpop.f32.mrf.mxu0
    %v1568 = vadd.f32 %v1499, %v1567
    %1569 = vmatmul.bf16.gmra.mxu0 %v1018
    %v1570 = vpop.f32.mrf.mxu0
    %v1571 = vadd.f32 %v1502, %v1570
    %v1572 = vpop.f32.mrf.mxu0
    %v1573 = vadd.f32 %v1504, %v1572
    %1574 = vdwg.mxu0
    %1575 = vmatpush.bf16.msra.mxu0 %v541
    %1576 = vmatpush.bf16.msra.mxu0 %v539
    %1577 = vmatpush.bf16.msra.mxu0 %v537
    %1578 = vmatpush.bf16.msra.mxu0 %v535
    %1579 = vmatpush.bf16.msra.mxu0 %v533
    %1580 = vmatpush.bf16.msra.mxu0 %v531
    %1581 = vmatpush.bf16.msra.mxu0 %v529
    %1582 = vmatpush.bf16.msra.mxu0 %v527
    %1583 = vmatmul.bf16.gmra.mxu0 %v887
    %v1584 = vpop.f32.mrf.mxu0
    %v1585 = vadd.f32 %v1516, %v1584
    %v1586 = vpop.f32.mrf.mxu0
    %v1587 = vadd.f32 %v1518, %v1586
    %1588 = vmatmul.bf16.gmra.mxu0 %v899
    %v1589 = vpop.f32.mrf.mxu0
    %v1590 = vadd.f32 %v1521, %v1589
    %v1591 = vpop.f32.mrf.mxu0
    %v1592 = vadd.f32 %v1523, %v1591
    %1593 = vmatmul.bf16.gmra.mxu0 %v911
    %v1594 = vpop.f32.mrf.mxu0
    %v1595 = vadd.f32 %v1526, %v1594
    %v1596 = vpop.f32.mrf.mxu0
    %v1597 = vadd.f32 %v1528, %v1596
    %1598 = vmatmul.bf16.gmra.mxu0 %v923
    %v1599 = vpop.f32.mrf.mxu0
    %v1600 = vadd.f32 %v1531, %v1599
    %v1601 = vpop.f32.mrf.mxu0
    %v1602 = vadd.f32 %v1533, %v1601
    %1603 = vmatmul.bf16.gmra.mxu0 %v935
    %v1604 = vpop.f32.mrf.mxu0
    %v1605 = vadd.f32 %v1536, %v1604
    %v1606 = vpop.f32.mrf.mxu0
    %v1607 = vadd.f32 %v1538, %v1606
    %1608 = vmatmul.bf16.gmra.mxu0 %v947
    %v1609 = vpop.f32.mrf.mxu0
    %v1610 = vadd.f32 %v1541, %v1609
    %v1611 = vpop.f32.mrf.mxu0
    %v1612 = vadd.f32 %v1543, %v1611
    %1613 = vmatmul.bf16.gmra.mxu0 %v959
    %v1614 = vpop.f32.mrf.mxu0
    %v1615 = vadd.f32 %v1546, %v1614
    %v1616 = vpop.f32.mrf.mxu0
    %v1617 = vadd.f32 %v1548, %v1616
    %1618 = vmatmul.bf16.gmra.mxu0 %v971
    %v1619 = vpop.f32.mrf.mxu0
    %v1620 = vadd.f32 %v1551, %v1619
    %v1621 = vpop.f32.mrf.mxu0
    %v1622 = vadd.f32 %v1553, %v1621
    %1623 = vmatmul.bf16.gmra.mxu0 %v983
    %v1624 = vpop.f32.mrf.mxu0
    %v1625 = vadd.f32 %v1556, %v1624
    %v1626 = vpop.f32.mrf.mxu0
    %v1627 = vadd.f32 %v1558, %v1626
    %1628 = vmatmul.bf16.gmra.mxu0 %v995
    %v1629 = vpop.f32.mrf.mxu0
    %v1630 = vadd.f32 %v1561, %v1629
    %v1631 = vpop.f32.mrf.mxu0
    %v1632 = vadd.f32 %v1563, %v1631
    %1633 = vmatmul.bf16.gmra.mxu0 %v1007
    %v1634 = vpop.f32.mrf.mxu0
    %v1635 = vadd.f32 %v1566, %v1634
    %v1636 = vpop.f32.mrf.mxu0
    %v1637 = vadd.f32 %v1568, %v1636
    %1638 = vmatmul.bf16.gmra.mxu0 %v1019
    %v1639 = vpop.f32.mrf.mxu0
    %v1640 = vadd.f32 %v1571, %v1639
    %v1641 = vpop.f32.mrf.mxu0
    %v1642 = vadd.f32 %v1573, %v1641
    %1643 = vdwg.mxu0
    %1644 = vmatpush.bf16.msra.mxu0 %v557
    %1645 = vmatpush.bf16.msra.mxu0 %v555
    %1646 = vmatpush.bf16.msra.mxu0 %v553
    %1647 = vmatpush.bf16.msra.mxu0 %v551
    %1648 = vmatpush.bf16.msra.mxu0 %v549
    %1649 = vmatpush.bf16.msra.mxu0 %v547
    %1650 = vmatpush.bf16.msra.mxu0 %v545
    %1651 = vmatpush.bf16.msra.mxu0 %v543
    %1652 = vmatmul.bf16.gmra.mxu0 %v888
    %v1653 = vpop.f32.mrf.mxu0
    %v1654 = vadd.f32 %v1585, %v1653
    %v1655 = vpop.f32.mrf.mxu0
    %v1656 = vadd.f32 %v1587, %v1655
    %1657 = vmatmul.bf16.gmra.mxu0 %v900
    %v1658 = vpop.f32.mrf.mxu0
    %v1659 = vadd.f32 %v1590, %v1658
    %v1660 = vpop.f32.mrf.mxu0
    %v1661 = vadd.f32 %v1592, %v1660
    %1662 = vmatmul.bf16.gmra.mxu0 %v912
    %v1663 = vpop.f32.mrf.mxu0
    %v1664 = vadd.f32 %v1595, %v1663
    %v1665 = vpop.f32.mrf.mxu0
    %v1666 = vadd.f32 %v1597, %v1665
    %1667 = vmatmul.bf16.gmra.mxu0 %v924
    %v1668 = vpop.f32.mrf.mxu0
    %v1669 = vadd.f32 %v1600, %v1668
    %v1670 = vpop.f32.mrf.mxu0
    %v1671 = vadd.f32 %v1602, %v1670
    %1672 = vmatmul.bf16.gmra.mxu0 %v936
    %v1673 = vpop.f32.mrf.mxu0
    %v1674 = vadd.f32 %v1605, %v1673
    %v1675 = vpop.f32.mrf.mxu0
    %v1676 = vadd.f32 %v1607, %v1675
    %1677 = vmatmul.bf16.gmra.mxu0 %v948
    %v1678 = vpop.f32.mrf.mxu0
    %v1679 = vadd.f32 %v1610, %v1678
    %v1680 = vpop.f32.mrf.mxu0
    %v1681 = vadd.f32 %v1612, %v1680
    %1682 = vmatmul.bf16.gmra.mxu0 %v960
    %v1683 = vpop.f32.mrf.mxu0
    %v1684 = vadd.f32 %v1615, %v1683
    %v1685 = vpop.f32.mrf.mxu0
    %v1686 = vadd.f32 %v1617, %v1685
    %1687 = vmatmul.bf16.gmra.mxu0 %v972
    %v1688 = vpop.f32.mrf.mxu0
    %v1689 = vadd.f32 %v1620, %v1688
    %v1690 = vpop.f32.mrf.mxu0
    %v1691 = vadd.f32 %v1622, %v1690
    %1692 = vmatmul.bf16.gmra.mxu0 %v984
    %v1693 = vpop.f32.mrf.mxu0
    %v1694 = vadd.f32 %v1625, %v1693
    %v1695 = vpop.f32.mrf.mxu0
    %v1696 = vadd.f32 %v1627, %v1695
    %1697 = vmatmul.bf16.gmra.mxu0 %v996
    %v1698 = vpop.f32.mrf.mxu0
    %v1699 = vadd.f32 %v1630, %v1698
    %v1700 = vpop.f32.mrf.mxu0
    %v1701 = vadd.f32 %v1632, %v1700
    %1702 = vmatmul.bf16.gmra.mxu0 %v1008
    %v1703 = vpop.f32.mrf.mxu0
    %v1704 = vadd.f32 %v1635, %v1703
    %v1705 = vpop.f32.mrf.mxu0
    %v1706 = vadd.f32 %v1637, %v1705
    %1707 = vmatmul.bf16.gmra.mxu0 %v1020
    %v1708 = vpop.f32.mrf.mxu0
    %v1709 = vadd.f32 %v1640, %v1708
    %v1710 = vpop.f32.mrf.mxu0
    %v1711 = vadd.f32 %v1642, %v1710
    %1712 = vdwg.mxu0
    %1713 = vmatpush.bf16.msra.mxu0 %v573
    %1714 = vmatpush.bf16.msra.mxu0 %v571
    %1715 = vmatpush.bf16.msra.mxu0 %v569
    %1716 = vmatpush.bf16.msra.mxu0 %v567
    %1717 = vmatpush.bf16.msra.mxu0 %v565
    %1718 = vmatpush.bf16.msra.mxu0 %v563
    %1719 = vmatpush.bf16.msra.mxu0 %v561
    %1720 = vmatpush.bf16.msra.mxu0 %v559
    %1721 = vmatmul.bf16.gmra.mxu0 %v889
    %v1722 = vpop.f32.mrf.mxu0
    %v1723 = vadd.f32 %v1654, %v1722
    %v1724 = vpop.f32.mrf.mxu0
    %v1725 = vadd.f32 %v1656, %v1724
    %1726 = vmatmul.bf16.gmra.mxu0 %v901
    %v1727 = vpop.f32.mrf.mxu0
    %v1728 = vadd.f32 %v1659, %v1727
    %v1729 = vpop.f32.mrf.mxu0
    %v1730 = vadd.f32 %v1661, %v1729
    %1731 = vmatmul.bf16.gmra.mxu0 %v913
    %v1732 = vpop.f32.mrf.mxu0
    %v1733 = vadd.f32 %v1664, %v1732
    %v1734 = vpop.f32.mrf.mxu0
    %v1735 = vadd.f32 %v1666, %v1734
    %1736 = vmatmul.bf16.gmra.mxu0 %v925
    %v1737 = vpop.f32.mrf.mxu0
    %v1738 = vadd.f32 %v1669, %v1737
    %v1739 = vpop.f32.mrf.mxu0
    %v1740 = vadd.f32 %v1671, %v1739
    %1741 = vmatmul.bf16.gmra.mxu0 %v937
    %v1742 = vpop.f32.mrf.mxu0
    %v1743 = vadd.f32 %v1674, %v1742
    %v1744 = vpop.f32.mrf.mxu0
    %v1745 = vadd.f32 %v1676, %v1744
    %1746 = vmatmul.bf16.gmra.mxu0 %v949
    %v1747 = vpop.f32.mrf.mxu0
    %v1748 = vadd.f32 %v1679, %v1747
    %v1749 = vpop.f32.mrf.mxu0
    %v1750 = vadd.f32 %v1681, %v1749
    %1751 = vmatmul.bf16.gmra.mxu0 %v961
    %v1752 = vpop.f32.mrf.mxu0
    %v1753 = vadd.f32 %v1684, %v1752
    %v1754 = vpop.f32.mrf.mxu0
    %v1755 = vadd.f32 %v1686, %v1754
    %1756 = vmatmul.bf16.gmra.mxu0 %v973
    %v1757 = vpop.f32.mrf.mxu0
    %v1758 = vadd.f32 %v1689, %v1757
    %v1759 = vpop.f32.mrf.mxu0
    %v1760 = vadd.f32 %v1691, %v1759
    %1761 = vmatmul.bf16.gmra.mxu0 %v985
    %v1762 = vpop.f32.mrf.mxu0
    %v1763 = vadd.f32 %v1694, %v1762
    %v1764 = vpop.f32.mrf.mxu0
    %v1765 = vadd.f32 %v1696, %v1764
    %1766 = vmatmul.bf16.gmra.mxu0 %v997
    %v1767 = vpop.f32.mrf.mxu0
    %v1768 = vadd.f32 %v1699, %v1767
    %v1769 = vpop.f32.mrf.mxu0
    %v1770 = vadd.f32 %v1701, %v1769
    %1771 = vmatmul.bf16.gmra.mxu0 %v1009
    %v1772 = vpop.f32.mrf.mxu0
    %v1773 = vadd.f32 %v1704, %v1772
    %v1774 = vpop.f32.mrf.mxu0
    %v1775 = vadd.f32 %v1706, %v1774
    %1776 = vmatmul.bf16.gmra.mxu0 %v1021
    %v1777 = vpop.f32.mrf.mxu0
    %v1778 = vadd.f32 %v1709, %v1777
    %v1779 = vpop.f32.mrf.mxu0
    %v1780 = vadd.f32 %v1711, %v1779
    %1781 = vdwg.mxu0
    %1782 = vmatpush.bf16.msra.mxu0 %v589
    %1783 = vmatpush.bf16.msra.mxu0 %v587
    %1784 = vmatpush.bf16.msra.mxu0 %v585
    %1785 = vmatpush.bf16.msra.mxu0 %v583
    %1786 = vmatpush.bf16.msra.mxu0 %v581
    %1787 = vmatpush.bf16.msra.mxu0 %v579
    %1788 = vmatpush.bf16.msra.mxu0 %v577
    %1789 = vmatpush.bf16.msra.mxu0 %v575
    %1790 = vmatmul.bf16.gmra.mxu0 %v890
    %v1791 = vpop.f32.mrf.mxu0
    %v1792 = vadd.f32 %v1723, %v1791
    %v1793 = vpop.f32.mrf.mxu0
    %v1794 = vadd.f32 %v1725, %v1793
    %1795 = vmatmul.bf16.gmra.mxu0 %v902
    %v1796 = vpop.f32.mrf.mxu0
    %v1797 = vadd.f32 %v1728, %v1796
    %v1798 = vpop.f32.mrf.mxu0
    %v1799 = vadd.f32 %v1730, %v1798
    %1800 = vmatmul.bf16.gmra.mxu0 %v914
    %v1801 = vpop.f32.mrf.mxu0
    %v1802 = vadd.f32 %v1733, %v1801
    %v1803 = vpop.f32.mrf.mxu0
    %v1804 = vadd.f32 %v1735, %v1803
    %1805 = vmatmul.bf16.gmra.mxu0 %v926
    %v1806 = vpop.f32.mrf.mxu0
    %v1807 = vadd.f32 %v1738, %v1806
    %v1808 = vpop.f32.mrf.mxu0
    %v1809 = vadd.f32 %v1740, %v1808
    %1810 = vmatmul.bf16.gmra.mxu0 %v938
    %v1811 = vpop.f32.mrf.mxu0
    %v1812 = vadd.f32 %v1743, %v1811
    %v1813 = vpop.f32.mrf.mxu0
    %v1814 = vadd.f32 %v1745, %v1813
    %1815 = vmatmul.bf16.gmra.mxu0 %v950
    %v1816 = vpop.f32.mrf.mxu0
    %v1817 = vadd.f32 %v1748, %v1816
    %v1818 = vpop.f32.mrf.mxu0
    %v1819 = vadd.f32 %v1750, %v1818
    %1820 = vmatmul.bf16.gmra.mxu0 %v962
    %v1821 = vpop.f32.mrf.mxu0
    %v1822 = vadd.f32 %v1753, %v1821
    %v1823 = vpop.f32.mrf.mxu0
    %v1824 = vadd.f32 %v1755, %v1823
    %1825 = vmatmul.bf16.gmra.mxu0 %v974
    %v1826 = vpop.f32.mrf.mxu0
    %v1827 = vadd.f32 %v1758, %v1826
    %v1828 = vpop.f32.mrf.mxu0
    %v1829 = vadd.f32 %v1760, %v1828
    %1830 = vmatmul.bf16.gmra.mxu0 %v986
    %v1831 = vpop.f32.mrf.mxu0
    %v1832 = vadd.f32 %v1763, %v1831
    %v1833 = vpop.f32.mrf.mxu0
    %v1834 = vadd.f32 %v1765, %v1833
    %1835 = vmatmul.bf16.gmra.mxu0 %v998
    %v1836 = vpop.f32.mrf.mxu0
    %v1837 = vadd.f32 %v1768, %v1836
    %v1838 = vpop.f32.mrf.mxu0
    %v1839 = vadd.f32 %v1770, %v1838
    %1840 = vmatmul.bf16.gmra.mxu0 %v1010
    %v1841 = vpop.f32.mrf.mxu0
    %v1842 = vadd.f32 %v1773, %v1841
    %v1843 = vpop.f32.mrf.mxu0
    %v1844 = vadd.f32 %v1775, %v1843
    %1845 = vmatmul.bf16.gmra.mxu0 %v1022
    %v1846 = vpop.f32.mrf.mxu0
    %v1847 = vadd.f32 %v1778, %v1846
    %v1848 = vpop.f32.mrf.mxu0
    %v1849 = vadd.f32 %v1780, %v1848
    %1850 = vdwg.mxu0
    %1851 = vmatpush.bf16.msra.mxu0 %v414
    %1852 = vmatpush.bf16.msra.mxu0 %v412
    %1853 = vmatpush.bf16.msra.mxu0 %v410
    %1854 = vmatpush.bf16.msra.mxu0 %v408
    %1855 = vmatpush.bf16.msra.mxu0 %v406
    %1856 = vmatpush.bf16.msra.mxu0 %v404
    %1857 = vmatpush.bf16.msra.mxu0 %v402
    %1858 = vmatpush.bf16.msra.mxu0 %v400
    %1859 = vmatmul.bf16.gmra.mxu0 %v879
    %v1860 = vpop.f32.mrf.mxu0
    %v1861 = vadd.f32 0.0, %v1860
    %v1862 = vpop.f32.mrf.mxu0
    %v1863 = vadd.f32 0.0, %v1862
    %1864 = vmatmul.bf16.gmra.mxu0 %v891
    %v1865 = vpop.f32.mrf.mxu0
    %v1866 = vadd.f32 0.0, %v1865
    %v1867 = vpop.f32.mrf.mxu0
    %v1868 = vadd.f32 0.0, %v1867
    %1869 = vmatmul.bf16.gmra.mxu0 %v903
    %v1870 = vpop.f32.mrf.mxu0
    %v1871 = vadd.f32 0.0, %v1870
    %v1872 = vpop.f32.mrf.mxu0
    %v1873 = vadd.f32 0.0, %v1872
    %1874 = vmatmul.bf16.gmra.mxu0 %v915
    %v1875 = vpop.f32.mrf.mxu0
    %v1876 = vadd.f32 0.0, %v1875
    %v1877 = vpop.f32.mrf.mxu0
    %v1878 = vadd.f32 0.0, %v1877
    %1879 = vmatmul.bf16.gmra.mxu0 %v927
    %v1880 = vpop.f32.mrf.mxu0
    %v1881 = vadd.f32 0.0, %v1880
    %v1882 = vpop.f32.mrf.mxu0
    %v1883 = vadd.f32 0.0, %v1882
    %1884 = vmatmul.bf16.gmra.mxu0 %v939
    %v1885 = vpop.f32.mrf.mxu0
    %v1886 = vadd.f32 0.0, %v1885
    %v1887 = vpop.f32.mrf.mxu0
    %v1888 = vadd.f32 0.0, %v1887
    %1889 = vmatmul.bf16.gmra.mxu0 %v951
    %v1890 = vpop.f32.mrf.mxu0
    %v1891 = vadd.f32 0.0, %v1890
    %v1892 = vpop.f32.mrf.mxu0
    %v1893 = vadd.f32 0.0, %v1892
    %1894 = vmatmul.bf16.gmra.mxu0 %v963
    %v1895 = vpop.f32.mrf.mxu0
    %v1896 = vadd.f32 0.0, %v1895
    %v1897 = vpop.f32.mrf.mxu0
    %v1898 = vadd.f32 0.0, %v1897
    %1899 = vmatmul.bf16.gmra.mxu0 %v975
    %v1900 = vpop.f32.mrf.mxu0
    %v1901 = vadd.f32 0.0, %v1900
    %v1902 = vpop.f32.mrf.mxu0
    %v1903 = vadd.f32 0.0, %v1902
    %1904 = vmatmul.bf16.gmra.mxu0 %v987
    %v1905 = vpop.f32.mrf.mxu0
    %v1906 = vadd.f32 0.0, %v1905
    %v1907 = vpop.f32.mrf.mxu0
    %v1908 = vadd.f32 0.0, %v1907
    %1909 = vmatmul.bf16.gmra.mxu0 %v999
    %v1910 = vpop.f32.mrf.mxu0
    %v1911 = vadd.f32 0.0, %v1910
    %v1912 = vpop.f32.mrf.mxu0
    %v1913 = vadd.f32 0.0, %v1912
    %1914 = vmatmul.bf16.gmra.mxu0 %v1011
    %v1915 = vpop.f32.mrf.mxu0
    %v1916 = vadd.f32 0.0, %v1915
    %v1917 = vpop.f32.mrf.mxu0
    %v1918 = vadd.f32 0.0, %v1917
    %1919 = vdwg.mxu0
    %1920 = vmatpush.bf16.msra.mxu0 %v430
    %1921 = vmatpush.bf16.msra.mxu0 %v428
    %1922 = vmatpush.bf16.msra.mxu0 %v426
    %1923 = vmatpush.bf16.msra.mxu0 %v424
    %1924 = vmatpush.bf16.msra.mxu0 %v422
    %1925 = vmatpush.bf16.msra.mxu0 %v420
    %1926 = vmatpush.bf16.msra.mxu0 %v418
    %1927 = vmatpush.bf16.msra.mxu0 %v416
    %1928 = vmatmul.bf16.gmra.mxu0 %v880
    %v1929 = vpop.f32.mrf.mxu0
    %v1930 = vadd.f32 %v1861, %v1929
    %v1931 = vpop.f32.mrf.mxu0
    %v1932 = vadd.f32 %v1863, %v1931
    %1933 = vmatmul.bf16.gmra.mxu0 %v892
    %v1934 = vpop.f32.mrf.mxu0
    %v1935 = vadd.f32 %v1866, %v1934
    %v1936 = vpop.f32.mrf.mxu0
    %v1937 = vadd.f32 %v1868, %v1936
    %1938 = vmatmul.bf16.gmra.mxu0 %v904
    %v1939 = vpop.f32.mrf.mxu0
    %v1940 = vadd.f32 %v1871, %v1939
    %v1941 = vpop.f32.mrf.mxu0
    %v1942 = vadd.f32 %v1873, %v1941
    %1943 = vmatmul.bf16.gmra.mxu0 %v916
    %v1944 = vpop.f32.mrf.mxu0
    %v1945 = vadd.f32 %v1876, %v1944
    %v1946 = vpop.f32.mrf.mxu0
    %v1947 = vadd.f32 %v1878, %v1946
    %1948 = vmatmul.bf16.gmra.mxu0 %v928
    %v1949 = vpop.f32.mrf.mxu0
    %v1950 = vadd.f32 %v1881, %v1949
    %v1951 = vpop.f32.mrf.mxu0
    %v1952 = vadd.f32 %v1883, %v1951
    %1953 = vmatmul.bf16.gmra.mxu0 %v940
    %v1954 = vpop.f32.mrf.mxu0
    %v1955 = vadd.f32 %v1886, %v1954
    %v1956 = vpop.f32.mrf.mxu0
    %v1957 = vadd.f32 %v1888, %v1956
    %1958 = vmatmul.bf16.gmra.mxu0 %v952
    %v1959 = vpop.f32.mrf.mxu0
    %v1960 = vadd.f32 %v1891, %v1959
    %v1961 = vpop.f32.mrf.mxu0
    %v1962 = vadd.f32 %v1893, %v1961
    %1963 = vmatmul.bf16.gmra.mxu0 %v964
    %v1964 = vpop.f32.mrf.mxu0
    %v1965 = vadd.f32 %v1896, %v1964
    %v1966 = vpop.f32.mrf.mxu0
    %v1967 = vadd.f32 %v1898, %v1966
    %1968 = vmatmul.bf16.gmra.mxu0 %v976
    %v1969 = vpop.f32.mrf.mxu0
    %v1970 = vadd.f32 %v1901, %v1969
    %v1971 = vpop.f32.mrf.mxu0
    %v1972 = vadd.f32 %v1903, %v1971
    %1973 = vmatmul.bf16.gmra.mxu0 %v988
    %v1974 = vpop.f32.mrf.mxu0
    %v1975 = vadd.f32 %v1906, %v1974
    %v1976 = vpop.f32.mrf.mxu0
    %v1977 = vadd.f32 %v1908, %v1976
    %1978 = vmatmul.bf16.gmra.mxu0 %v1000
    %v1979 = vpop.f32.mrf.mxu0
    %v1980 = vadd.f32 %v1911, %v1979
    %v1981 = vpop.f32.mrf.mxu0
    %v1982 = vadd.f32 %v1913, %v1981
    %1983 = vmatmul.bf16.gmra.mxu0 %v1012
    %v1984 = vpop.f32.mrf.mxu0
    %v1985 = vadd.f32 %v1916, %v1984
    %v1986 = vpop.f32.mrf.mxu0
    %v1987 = vadd.f32 %v1918, %v1986
    %1988 = vdwg.mxu0
    %1989 = vmatpush.bf16.msra.mxu0 %v446
    %1990 = vmatpush.bf16.msra.mxu0 %v444
    %1991 = vmatpush.bf16.msra.mxu0 %v442
    %1992 = vmatpush.bf16.msra.mxu0 %v440
    %1993 = vmatpush.bf16.msra.mxu0 %v438
    %1994 = vmatpush.bf16.msra.mxu0 %v436
    %1995 = vmatpush.bf16.msra.mxu0 %v434
    %1996 = vmatpush.bf16.msra.mxu0 %v432
    %1997 = vmatmul.bf16.gmra.mxu0 %v881
    %v1998 = vpop.f32.mrf.mxu0
    %v1999 = vadd.f32 %v1930, %v1998
    %v2000 = vpop.f32.mrf.mxu0
    %v2001 = vadd.f32 %v1932, %v2000
    %2002 = vmatmul.bf16.gmra.mxu0 %v893
    %v2003 = vpop.f32.mrf.mxu0
    %v2004 = vadd.f32 %v1935, %v2003
    %v2005 = vpop.f32.mrf.mxu0
    %v2006 = vadd.f32 %v1937, %v2005
    %2007 = vmatmul.bf16.gmra.mxu0 %v905
    %v2008 = vpop.f32.mrf.mxu0
    %v2009 = vadd.f32 %v1940, %v2008
    %v2010 = vpop.f32.mrf.mxu0
    %v2011 = vadd.f32 %v1942, %v2010
    %2012 = vmatmul.bf16.gmra.mxu0 %v917
    %v2013 = vpop.f32.mrf.mxu0
    %v2014 = vadd.f32 %v1945, %v2013
    %v2015 = vpop.f32.mrf.mxu0
    %v2016 = vadd.f32 %v1947, %v2015
    %2017 = vmatmul.bf16.gmra.mxu0 %v929
    %v2018 = vpop.f32.mrf.mxu0
    %v2019 = vadd.f32 %v1950, %v2018
    %v2020 = vpop.f32.mrf.mxu0
    %v2021 = vadd.f32 %v1952, %v2020
    %2022 = vmatmul.bf16.gmra.mxu0 %v941
    %v2023 = vpop.f32.mrf.mxu0
    %v2024 = vadd.f32 %v1955, %v2023
    %v2025 = vpop.f32.mrf.mxu0
    %v2026 = vadd.f32 %v1957, %v2025
    %2027 = vmatmul.bf16.gmra.mxu0 %v953
    %v2028 = vpop.f32.mrf.mxu0
    %v2029 = vadd.f32 %v1960, %v2028
    %v2030 = vpop.f32.mrf.mxu0
    %v2031 = vadd.f32 %v1962, %v2030
    %2032 = vmatmul.bf16.gmra.mxu0 %v965
    %v2033 = vpop.f32.mrf.mxu0
    %v2034 = vadd.f32 %v1965, %v2033
    %v2035 = vpop.f32.mrf.mxu0
    %v2036 = vadd.f32 %v1967, %v2035
    %2037 = vmatmul.bf16.gmra.mxu0 %v977
    %v2038 = vpop.f32.mrf.mxu0
    %v2039 = vadd.f32 %v1970, %v2038
    %v2040 = vpop.f32.mrf.mxu0
    %v2041 = vadd.f32 %v1972, %v2040
    %2042 = vmatmul.bf16.gmra.mxu0 %v989
    %v2043 = vpop.f32.mrf.mxu0
    %v2044 = vadd.f32 %v1975, %v2043
    %v2045 = vpop.f32.mrf.mxu0
    %v2046 = vadd.f32 %v1977, %v2045
    %2047 = vmatmul.bf16.gmra.mxu0 %v1001
    %v2048 = vpop.f32.mrf.mxu0
    %v2049 = vadd.f32 %v1980, %v2048
    %v2050 = vpop.f32.mrf.mxu0
    %v2051 = vadd.f32 %v1982, %v2050
    %2052 = vmatmul.bf16.gmra.mxu0 %v1013
    %v2053 = vpop.f32.mrf.mxu0
    %v2054 = vadd.f32 %v1985, %v2053
    %v2055 = vpop.f32.mrf.mxu0
    %v2056 = vadd.f32 %v1987, %v2055
    %2057 = vdwg.mxu0
    %2058 = vmatpush.bf16.msra.mxu0 %v462
    %2059 = vmatpush.bf16.msra.mxu0 %v460
    %2060 = vmatpush.bf16.msra.mxu0 %v458
    %2061 = vmatpush.bf16.msra.mxu0 %v456
    %2062 = vmatpush.bf16.msra.mxu0 %v454
    %2063 = vmatpush.bf16.msra.mxu0 %v452
    %2064 = vmatpush.bf16.msra.mxu0 %v450
    %2065 = vmatpush.bf16.msra.mxu0 %v448
    %2066 = vmatmul.bf16.gmra.mxu0 %v882
    %v2067 = vpop.f32.mrf.mxu0
    %v2068 = vadd.f32 %v1999, %v2067
    %v2069 = vpop.f32.mrf.mxu0
    %v2070 = vadd.f32 %v2001, %v2069
    %2071 = vmatmul.bf16.gmra.mxu0 %v894
    %v2072 = vpop.f32.mrf.mxu0
    %v2073 = vadd.f32 %v2004, %v2072
    %v2074 = vpop.f32.mrf.mxu0
    %v2075 = vadd.f32 %v2006, %v2074
    %2076 = vmatmul.bf16.gmra.mxu0 %v906
    %v2077 = vpop.f32.mrf.mxu0
    %v2078 = vadd.f32 %v2009, %v2077
    %v2079 = vpop.f32.mrf.mxu0
    %v2080 = vadd.f32 %v2011, %v2079
    %2081 = vmatmul.bf16.gmra.mxu0 %v918
    %v2082 = vpop.f32.mrf.mxu0
    %v2083 = vadd.f32 %v2014, %v2082
    %v2084 = vpop.f32.mrf.mxu0
    %v2085 = vadd.f32 %v2016, %v2084
    %2086 = vmatmul.bf16.gmra.mxu0 %v930
    %v2087 = vpop.f32.mrf.mxu0
    %v2088 = vadd.f32 %v2019, %v2087
    %v2089 = vpop.f32.mrf.mxu0
    %v2090 = vadd.f32 %v2021, %v2089
    %2091 = vmatmul.bf16.gmra.mxu0 %v942
    %v2092 = vpop.f32.mrf.mxu0
    %v2093 = vadd.f32 %v2024, %v2092
    %v2094 = vpop.f32.mrf.mxu0
    %v2095 = vadd.f32 %v2026, %v2094
    %2096 = vmatmul.bf16.gmra.mxu0 %v954
    %v2097 = vpop.f32.mrf.mxu0
    %v2098 = vadd.f32 %v2029, %v2097
    %v2099 = vpop.f32.mrf.mxu0
    %v2100 = vadd.f32 %v2031, %v2099
    %2101 = vmatmul.bf16.gmra.mxu0 %v966
    %v2102 = vpop.f32.mrf.mxu0
    %v2103 = vadd.f32 %v2034, %v2102
    %v2104 = vpop.f32.mrf.mxu0
    %v2105 = vadd.f32 %v2036, %v2104
    %2106 = vmatmul.bf16.gmra.mxu0 %v978
    %v2107 = vpop.f32.mrf.mxu0
    %v2108 = vadd.f32 %v2039, %v2107
    %v2109 = vpop.f32.mrf.mxu0
    %v2110 = vadd.f32 %v2041, %v2109
    %2111 = vmatmul.bf16.gmra.mxu0 %v990
    %v2112 = vpop.f32.mrf.mxu0
    %v2113 = vadd.f32 %v2044, %v2112
    %v2114 = vpop.f32.mrf.mxu0
    %v2115 = vadd.f32 %v2046, %v2114
    %2116 = vmatmul.bf16.gmra.mxu0 %v1002
    %v2117 = vpop.f32.mrf.mxu0
    %v2118 = vadd.f32 %v2049, %v2117
    %v2119 = vpop.f32.mrf.mxu0
    %v2120 = vadd.f32 %v2051, %v2119
    %2121 = vmatmul.bf16.gmra.mxu0 %v1014
    %v2122 = vpop.f32.mrf.mxu0
    %v2123 = vadd.f32 %v2054, %v2122
    %v2124 = vpop.f32.mrf.mxu0
    %v2125 = vadd.f32 %v2056, %v2124
    %2126 = vdwg.mxu0
    %2127 = vmatpush.bf16.msra.mxu0 %v478
    %2128 = vmatpush.bf16.msra.mxu0 %v476
    %2129 = vmatpush.bf16.msra.mxu0 %v474
    %2130 = vmatpush.bf16.msra.mxu0 %v472
    %2131 = vmatpush.bf16.msra.mxu0 %v470
    %2132 = vmatpush.bf16.msra.mxu0 %v468
    %2133 = vmatpush.bf16.msra.mxu0 %v466
    %2134 = vmatpush.bf16.msra.mxu0 %v464
    %2135 = vmatmul.bf16.gmra.mxu0 %v883
    %v2136 = vpop.f32.mrf.mxu0
    %v2137 = vadd.f32 %v2068, %v2136
    %v2138 = vpop.f32.mrf.mxu0
    %v2139 = vadd.f32 %v2070, %v2138
    %2140 = vmatmul.bf16.gmra.mxu0 %v895
    %v2141 = vpop.f32.mrf.mxu0
    %v2142 = vadd.f32 %v2073, %v2141
    %v2143 = vpop.f32.mrf.mxu0
    %v2144 = vadd.f32 %v2075, %v2143
    %2145 = vmatmul.bf16.gmra.mxu0 %v907
    %v2146 = vpop.f32.mrf.mxu0
    %v2147 = vadd.f32 %v2078, %v2146
    %v2148 = vpop.f32.mrf.mxu0
    %v2149 = vadd.f32 %v2080, %v2148
    %2150 = vmatmul.bf16.gmra.mxu0 %v919
    %v2151 = vpop.f32.mrf.mxu0
    %v2152 = vadd.f32 %v2083, %v2151
    %v2153 = vpop.f32.mrf.mxu0
    %v2154 = vadd.f32 %v2085, %v2153
    %2155 = vmatmul.bf16.gmra.mxu0 %v931
    %v2156 = vpop.f32.mrf.mxu0
    %v2157 = vadd.f32 %v2088, %v2156
    %v2158 = vpop.f32.mrf.mxu0
    %v2159 = vadd.f32 %v2090, %v2158
    %2160 = vmatmul.bf16.gmra.mxu0 %v943
    %v2161 = vpop.f32.mrf.mxu0
    %v2162 = vadd.f32 %v2093, %v2161
    %v2163 = vpop.f32.mrf.mxu0
    %v2164 = vadd.f32 %v2095, %v2163
    %2165 = vmatmul.bf16.gmra.mxu0 %v955
    %v2166 = vpop.f32.mrf.mxu0
    %v2167 = vadd.f32 %v2098, %v2166
    %v2168 = vpop.f32.mrf.mxu0
    %v2169 = vadd.f32 %v2100, %v2168
    %2170 = vmatmul.bf16.gmra.mxu0 %v967
    %v2171 = vpop.f32.mrf.mxu0
    %v2172 = vadd.f32 %v2103, %v2171
    %v2173 = vpop.f32.mrf.mxu0
    %v2174 = vadd.f32 %v2105, %v2173
    %2175 = vmatmul.bf16.gmra.mxu0 %v979
    %v2176 = vpop.f32.mrf.mxu0
    %v2177 = vadd.f32 %v2108, %v2176
    %v2178 = vpop.f32.mrf.mxu0
    %v2179 = vadd.f32 %v2110, %v2178
    %2180 = vmatmul.bf16.gmra.mxu0 %v991
    %v2181 = vpop.f32.mrf.mxu0
    %v2182 = vadd.f32 %v2113, %v2181
    %v2183 = vpop.f32.mrf.mxu0
    %v2184 = vadd.f32 %v2115, %v2183
    %2185 = vmatmul.bf16.gmra.mxu0 %v1003
    %v2186 = vpop.f32.mrf.mxu0
    %v2187 = vadd.f32 %v2118, %v2186
    %v2188 = vpop.f32.mrf.mxu0
    %v2189 = vadd.f32 %v2120, %v2188
    %2190 = vmatmul.bf16.gmra.mxu0 %v1015
    %v2191 = vpop.f32.mrf.mxu0
    %v2192 = vadd.f32 %v2123, %v2191
    %v2193 = vpop.f32.mrf.mxu0
    %v2194 = vadd.f32 %v2125, %v2193
    %2195 = vdwg.mxu0
    %2196 = vmatpush.bf16.msra.mxu0 %v494
    %2197 = vmatpush.bf16.msra.mxu0 %v492
    %2198 = vmatpush.bf16.msra.mxu0 %v490
    %2199 = vmatpush.bf16.msra.mxu0 %v488
    %2200 = vmatpush.bf16.msra.mxu0 %v486
    %2201 = vmatpush.bf16.msra.mxu0 %v484
    %2202 = vmatpush.bf16.msra.mxu0 %v482
    %2203 = vmatpush.bf16.msra.mxu0 %v480
    %2204 = vmatmul.bf16.gmra.mxu0 %v884
    %v2205 = vpop.f32.mrf.mxu0
    %v2206 = vadd.f32 %v2137, %v2205
    %v2207 = vpop.f32.mrf.mxu0
    %v2208 = vadd.f32 %v2139, %v2207
    %2209 = vmatmul.bf16.gmra.mxu0 %v896
    %v2210 = vpop.f32.mrf.mxu0
    %v2211 = vadd.f32 %v2142, %v2210
    %v2212 = vpop.f32.mrf.mxu0
    %v2213 = vadd.f32 %v2144, %v2212
    %2214 = vmatmul.bf16.gmra.mxu0 %v908
    %v2215 = vpop.f32.mrf.mxu0
    %v2216 = vadd.f32 %v2147, %v2215
    %v2217 = vpop.f32.mrf.mxu0
    %v2218 = vadd.f32 %v2149, %v2217
    %2219 = vmatmul.bf16.gmra.mxu0 %v920
    %v2220 = vpop.f32.mrf.mxu0
    %v2221 = vadd.f32 %v2152, %v2220
    %v2222 = vpop.f32.mrf.mxu0
    %v2223 = vadd.f32 %v2154, %v2222
    %2224 = vmatmul.bf16.gmra.mxu0 %v932
    %v2225 = vpop.f32.mrf.mxu0
    %v2226 = vadd.f32 %v2157, %v2225
    %v2227 = vpop.f32.mrf.mxu0
    %v2228 = vadd.f32 %v2159, %v2227
    %2229 = vmatmul.bf16.gmra.mxu0 %v944
    %v2230 = vpop.f32.mrf.mxu0
    %v2231 = vadd.f32 %v2162, %v2230
    %v2232 = vpop.f32.mrf.mxu0
    %v2233 = vadd.f32 %v2164, %v2232
    %2234 = vmatmul.bf16.gmra.mxu0 %v956
    %v2235 = vpop.f32.mrf.mxu0
    %v2236 = vadd.f32 %v2167, %v2235
    %v2237 = vpop.f32.mrf.mxu0
    %v2238 = vadd.f32 %v2169, %v2237
    %2239 = vmatmul.bf16.gmra.mxu0 %v968
    %v2240 = vpop.f32.mrf.mxu0
    %v2241 = vadd.f32 %v2172, %v2240
    %v2242 = vpop.f32.mrf.mxu0
    %v2243 = vadd.f32 %v2174, %v2242
    %2244 = vmatmul.bf16.gmra.mxu0 %v980
    %v2245 = vpop.f32.mrf.mxu0
    %v2246 = vadd.f32 %v2177, %v2245
    %v2247 = vpop.f32.mrf.mxu0
    %v2248 = vadd.f32 %v2179, %v2247
    %2249 = vmatmul.bf16.gmra.mxu0 %v992
    %v2250 = vpop.f32.mrf.mxu0
    %v2251 = vadd.f32 %v2182, %v2250
    %v2252 = vpop.f32.mrf.mxu0
    %v2253 = vadd.f32 %v2184, %v2252
    %2254 = vmatmul.bf16.gmra.mxu0 %v1004
    %v2255 = vpop.f32.mrf.mxu0
    %v2256 = vadd.f32 %v2187, %v2255
    %v2257 = vpop.f32.mrf.mxu0
    %v2258 = vadd.f32 %v2189, %v2257
    %2259 = vmatmul.bf16.gmra.mxu0 %v1016
    %v2260 = vpop.f32.mrf.mxu0
    %v2261 = vadd.f32 %v2192, %v2260
    %v2262 = vpop.f32.mrf.mxu0
    %v2263 = vadd.f32 %v2194, %v2262
    %2264 = vdwg.mxu0
    %2265 = vmatpush.bf16.msra.mxu0 %v510
    %2266 = vmatpush.bf16.msra.mxu0 %v508
    %2267 = vmatpush.bf16.msra.mxu0 %v506
    %2268 = vmatpush.bf16.msra.mxu0 %v504
    %2269 = vmatpush.bf16.msra.mxu0 %v502
    %2270 = vmatpush.bf16.msra.mxu0 %v500
    %2271 = vmatpush.bf16.msra.mxu0 %v498
    %2272 = vmatpush.bf16.msra.mxu0 %v496
    %2273 = vmatmul.bf16.gmra.mxu0 %v885
    %v2274 = vpop.f32.mrf.mxu0
    %v2275 = vadd.f32 %v2206, %v2274
    %v2276 = vpop.f32.mrf.mxu0
    %v2277 = vadd.f32 %v2208, %v2276
    %2278 = vmatmul.bf16.gmra.mxu0 %v897
    %v2279 = vpop.f32.mrf.mxu0
    %v2280 = vadd.f32 %v2211, %v2279
    %v2281 = vpop.f32.mrf.mxu0
    %v2282 = vadd.f32 %v2213, %v2281
    %2283 = vmatmul.bf16.gmra.mxu0 %v909
    %v2284 = vpop.f32.mrf.mxu0
    %v2285 = vadd.f32 %v2216, %v2284
    %v2286 = vpop.f32.mrf.mxu0
    %v2287 = vadd.f32 %v2218, %v2286
    %2288 = vmatmul.bf16.gmra.mxu0 %v921
    %v2289 = vpop.f32.mrf.mxu0
    %v2290 = vadd.f32 %v2221, %v2289
    %v2291 = vpop.f32.mrf.mxu0
    %v2292 = vadd.f32 %v2223, %v2291
    %2293 = vmatmul.bf16.gmra.mxu0 %v933
    %v2294 = vpop.f32.mrf.mxu0
    %v2295 = vadd.f32 %v2226, %v2294
    %v2296 = vpop.f32.mrf.mxu0
    %v2297 = vadd.f32 %v2228, %v2296
    %2298 = vmatmul.bf16.gmra.mxu0 %v945
    %v2299 = vpop.f32.mrf.mxu0
    %v2300 = vadd.f32 %v2231, %v2299
    %v2301 = vpop.f32.mrf.mxu0
    %v2302 = vadd.f32 %v2233, %v2301
    %2303 = vmatmul.bf16.gmra.mxu0 %v957
    %v2304 = vpop.f32.mrf.mxu0
    %v2305 = vadd.f32 %v2236, %v2304
    %v2306 = vpop.f32.mrf.mxu0
    %v2307 = vadd.f32 %v2238, %v2306
    %2308 = vmatmul.bf16.gmra.mxu0 %v969
    %v2309 = vpop.f32.mrf.mxu0
    %v2310 = vadd.f32 %v2241, %v2309
    %v2311 = vpop.f32.mrf.mxu0
    %v2312 = vadd.f32 %v2243, %v2311
    %2313 = vmatmul.bf16.gmra.mxu0 %v981
    %v2314 = vpop.f32.mrf.mxu0
    %v2315 = vadd.f32 %v2246, %v2314
    %v2316 = vpop.f32.mrf.mxu0
    %v2317 = vadd.f32 %v2248, %v2316
    %2318 = vmatmul.bf16.gmra.mxu0 %v993
    %v2319 = vpop.f32.mrf.mxu0
    %v2320 = vadd.f32 %v2251, %v2319
    %v2321 = vpop.f32.mrf.mxu0
    %v2322 = vadd.f32 %v2253, %v2321
    %2323 = vmatmul.bf16.gmra.mxu0 %v1005
    %v2324 = vpop.f32.mrf.mxu0
    %v2325 = vadd.f32 %v2256, %v2324
    %v2326 = vpop.f32.mrf.mxu0
    %v2327 = vadd.f32 %v2258, %v2326
    %2328 = vmatmul.bf16.gmra.mxu0 %v1017
    %v2329 = vpop.f32.mrf.mxu0
    %v2330 = vadd.f32 %v2261, %v2329
    %v2331 = vpop.f32.mrf.mxu0
    %v2332 = vadd.f32 %v2263, %v2331
    %2333 = vdwg.mxu0
    %2334 = vmatpush.bf16.msra.mxu0 %v526
    %2335 = vmatpush.bf16.msra.mxu0 %v524
    %2336 = vmatpush.bf16.msra.mxu0 %v522
    %2337 = vmatpush.bf16.msra.mxu0 %v520
    %2338 = vmatpush.bf16.msra.mxu0 %v518
    %2339 = vmatpush.bf16.msra.mxu0 %v516
    %2340 = vmatpush.bf16.msra.mxu0 %v514
    %2341 = vmatpush.bf16.msra.mxu0 %v512
    %2342 = vmatmul.bf16.gmra.mxu0 %v886
    %v2343 = vpop.f32.mrf.mxu0
    %v2344 = vadd.f32 %v2275, %v2343
    %v2345 = vpop.f32.mrf.mxu0
    %v2346 = vadd.f32 %v2277, %v2345
    %2347 = vmatmul.bf16.gmra.mxu0 %v898
    %v2348 = vpop.f32.mrf.mxu0
    %v2349 = vadd.f32 %v2280, %v2348
    %v2350 = vpop.f32.mrf.mxu0
    %v2351 = vadd.f32 %v2282, %v2350
    %2352 = vmatmul.bf16.gmra.mxu0 %v910
    %v2353 = vpop.f32.mrf.mxu0
    %v2354 = vadd.f32 %v2285, %v2353
    %v2355 = vpop.f32.mrf.mxu0
    %v2356 = vadd.f32 %v2287, %v2355
    %2357 = vmatmul.bf16.gmra.mxu0 %v922
    %v2358 = vpop.f32.mrf.mxu0
    %v2359 = vadd.f32 %v2290, %v2358
    %v2360 = vpop.f32.mrf.mxu0
    %v2361 = vadd.f32 %v2292, %v2360
    %2362 = vmatmul.bf16.gmra.mxu0 %v934
    %v2363 = vpop.f32.mrf.mxu0
    %v2364 = vadd.f32 %v2295, %v2363
    %v2365 = vpop.f32.mrf.mxu0
    %v2366 = vadd.f32 %v2297, %v2365
    %2367 = vmatmul.bf16.gmra.mxu0 %v946
    %v2368 = vpop.f32.mrf.mxu0
    %v2369 = vadd.f32 %v2300, %v2368
    %v2370 = vpop.f32.mrf.mxu0
    %v2371 = vadd.f32 %v2302, %v2370
    %2372 = vmatmul.bf16.gmra.mxu0 %v958
    %v2373 = vpop.f32.mrf.mxu0
    %v2374 = vadd.f32 %v2305, %v2373
    %v2375 = vpop.f32.mrf.mxu0
    %v2376 = vadd.f32 %v2307, %v2375
    %2377 = vmatmul.bf16.gmra.mxu0 %v970
    %v2378 = vpop.f32.mrf.mxu0
    %v2379 = vadd.f32 %v2310, %v2378
    %v2380 = vpop.f32.mrf.mxu0
    %v2381 = vadd.f32 %v2312, %v2380
    %2382 = vmatmul.bf16.gmra.mxu0 %v982
    %v2383 = vpop.f32.mrf.mxu0
    %v2384 = vadd.f32 %v2315, %v2383
    %v2385 = vpop.f32.mrf.mxu0
    %v2386 = vadd.f32 %v2317, %v2385
    %2387 = vmatmul.bf16.gmra.mxu0 %v994
    %v2388 = vpop.f32.mrf.mxu0
    %v2389 = vadd.f32 %v2320, %v2388
    %v2390 = vpop.f32.mrf.mxu0
    %v2391 = vadd.f32 %v2322, %v2390
    %2392 = vmatmul.bf16.gmra.mxu0 %v1006
    %v2393 = vpop.f32.mrf.mxu0
    %v2394 = vadd.f32 %v2325, %v2393
    %v2395 = vpop.f32.mrf.mxu0
    %v2396 = vadd.f32 %v2327, %v2395
    %2397 = vmatmul.bf16.gmra.mxu0 %v1018
    %v2398 = vpop.f32.mrf.mxu0
    %v2399 = vadd.f32 %v2330, %v2398
    %v2400 = vpop.f32.mrf.mxu0
    %v2401 = vadd.f32 %v2332, %v2400
    %2402 = vdwg.mxu0
    %2403 = vmatpush.bf16.msra.mxu0 %v542
    %2404 = vmatpush.bf16.msra.mxu0 %v540
    %2405 = vmatpush.bf16.msra.mxu0 %v538
    %2406 = vmatpush.bf16.msra.mxu0 %v536
    %2407 = vmatpush.bf16.msra.mxu0 %v534
    %2408 = vmatpush.bf16.msra.mxu0 %v532
    %2409 = vmatpush.bf16.msra.mxu0 %v530
    %2410 = vmatpush.bf16.msra.mxu0 %v528
    %2411 = vmatmul.bf16.gmra.mxu0 %v887
    %v2412 = vpop.f32.mrf.mxu0
    %v2413 = vadd.f32 %v2344, %v2412
    %v2414 = vpop.f32.mrf.mxu0
    %v2415 = vadd.f32 %v2346, %v2414
    %2416 = vmatmul.bf16.gmra.mxu0 %v899
    %v2417 = vpop.f32.mrf.mxu0
    %v2418 = vadd.f32 %v2349, %v2417
    %v2419 = vpop.f32.mrf.mxu0
    %v2420 = vadd.f32 %v2351, %v2419
    %2421 = vmatmul.bf16.gmra.mxu0 %v911
    %v2422 = vpop.f32.mrf.mxu0
    %v2423 = vadd.f32 %v2354, %v2422
    %v2424 = vpop.f32.mrf.mxu0
    %v2425 = vadd.f32 %v2356, %v2424
    %2426 = vmatmul.bf16.gmra.mxu0 %v923
    %v2427 = vpop.f32.mrf.mxu0
    %v2428 = vadd.f32 %v2359, %v2427
    %v2429 = vpop.f32.mrf.mxu0
    %v2430 = vadd.f32 %v2361, %v2429
    %2431 = vmatmul.bf16.gmra.mxu0 %v935
    %v2432 = vpop.f32.mrf.mxu0
    %v2433 = vadd.f32 %v2364, %v2432
    %v2434 = vpop.f32.mrf.mxu0
    %v2435 = vadd.f32 %v2366, %v2434
    %2436 = vmatmul.bf16.gmra.mxu0 %v947
    %v2437 = vpop.f32.mrf.mxu0
    %v2438 = vadd.f32 %v2369, %v2437
    %v2439 = vpop.f32.mrf.mxu0
    %v2440 = vadd.f32 %v2371, %v2439
    %2441 = vmatmul.bf16.gmra.mxu0 %v959
    %v2442 = vpop.f32.mrf.mxu0
    %v2443 = vadd.f32 %v2374, %v2442
    %v2444 = vpop.f32.mrf.mxu0
    %v2445 = vadd.f32 %v2376, %v2444
    %2446 = vmatmul.bf16.gmra.mxu0 %v971
    %v2447 = vpop.f32.mrf.mxu0
    %v2448 = vadd.f32 %v2379, %v2447
    %v2449 = vpop.f32.mrf.mxu0
    %v2450 = vadd.f32 %v2381, %v2449
    %2451 = vmatmul.bf16.gmra.mxu0 %v983
    %v2452 = vpop.f32.mrf.mxu0
    %v2453 = vadd.f32 %v2384, %v2452
    %v2454 = vpop.f32.mrf.mxu0
    %v2455 = vadd.f32 %v2386, %v2454
    %2456 = vmatmul.bf16.gmra.mxu0 %v995
    %v2457 = vpop.f32.mrf.mxu0
    %v2458 = vadd.f32 %v2389, %v2457
    %v2459 = vpop.f32.mrf.mxu0
    %v2460 = vadd.f32 %v2391, %v2459
    %2461 = vmatmul.bf16.gmra.mxu0 %v1007
    %v2462 = vpop.f32.mrf.mxu0
    %v2463 = vadd.f32 %v2394, %v2462
    %v2464 = vpop.f32.mrf.mxu0
    %v2465 = vadd.f32 %v2396, %v2464
    %2466 = vmatmul.bf16.gmra.mxu0 %v1019
    %v2467 = vpop.f32.mrf.mxu0
    %v2468 = vadd.f32 %v2399, %v2467
    %v2469 = vpop.f32.mrf.mxu0
    %v2470 = vadd.f32 %v2401, %v2469
    %2471 = vdwg.mxu0
    %2472 = vmatpush.bf16.msra.mxu0 %v558
    %2473 = vmatpush.bf16.msra.mxu0 %v556
    %2474 = vmatpush.bf16.msra.mxu0 %v554
    %2475 = vmatpush.bf16.msra.mxu0 %v552
    %2476 = vmatpush.bf16.msra.mxu0 %v550
    %2477 = vmatpush.bf16.msra.mxu0 %v548
    %2478 = vmatpush.bf16.msra.mxu0 %v546
    %2479 = vmatpush.bf16.msra.mxu0 %v544
    %2480 = vmatmul.bf16.gmra.mxu0 %v888
    %v2481 = vpop.f32.mrf.mxu0
    %v2482 = vadd.f32 %v2413, %v2481
    %v2483 = vpop.f32.mrf.mxu0
    %v2484 = vadd.f32 %v2415, %v2483
    %2485 = vmatmul.bf16.gmra.mxu0 %v900
    %v2486 = vpop.f32.mrf.mxu0
    %v2487 = vadd.f32 %v2418, %v2486
    %v2488 = vpop.f32.mrf.mxu0
    %v2489 = vadd.f32 %v2420, %v2488
    %2490 = vmatmul.bf16.gmra.mxu0 %v912
    %v2491 = vpop.f32.mrf.mxu0
    %v2492 = vadd.f32 %v2423, %v2491
    %v2493 = vpop.f32.mrf.mxu0
    %v2494 = vadd.f32 %v2425, %v2493
    %2495 = vmatmul.bf16.gmra.mxu0 %v924
    %v2496 = vpop.f32.mrf.mxu0
    %v2497 = vadd.f32 %v2428, %v2496
    %v2498 = vpop.f32.mrf.mxu0
    %v2499 = vadd.f32 %v2430, %v2498
    %2500 = vmatmul.bf16.gmra.mxu0 %v936
    %v2501 = vpop.f32.mrf.mxu0
    %v2502 = vadd.f32 %v2433, %v2501
    %v2503 = vpop.f32.mrf.mxu0
    %v2504 = vadd.f32 %v2435, %v2503
    %2505 = vmatmul.bf16.gmra.mxu0 %v948
    %v2506 = vpop.f32.mrf.mxu0
    %v2507 = vadd.f32 %v2438, %v2506
    %v2508 = vpop.f32.mrf.mxu0
    %v2509 = vadd.f32 %v2440, %v2508
    %2510 = vmatmul.bf16.gmra.mxu0 %v960
    %v2511 = vpop.f32.mrf.mxu0
    %v2512 = vadd.f32 %v2443, %v2511
    %v2513 = vpop.f32.mrf.mxu0
    %v2514 = vadd.f32 %v2445, %v2513
    %2515 = vmatmul.bf16.gmra.mxu0 %v972
    %v2516 = vpop.f32.mrf.mxu0
    %v2517 = vadd.f32 %v2448, %v2516
    %v2518 = vpop.f32.mrf.mxu0
    %v2519 = vadd.f32 %v2450, %v2518
    %2520 = vmatmul.bf16.gmra.mxu0 %v984
    %v2521 = vpop.f32.mrf.mxu0
    %v2522 = vadd.f32 %v2453, %v2521
    %v2523 = vpop.f32.mrf.mxu0
    %v2524 = vadd.f32 %v2455, %v2523
    %2525 = vmatmul.bf16.gmra.mxu0 %v996
    %v2526 = vpop.f32.mrf.mxu0
    %v2527 = vadd.f32 %v2458, %v2526
    %v2528 = vpop.f32.mrf.mxu0
    %v2529 = vadd.f32 %v2460, %v2528
    %2530 = vmatmul.bf16.gmra.mxu0 %v1008
    %v2531 = vpop.f32.mrf.mxu0
    %v2532 = vadd.f32 %v2463, %v2531
    %v2533 = vpop.f32.mrf.mxu0
    %v2534 = vadd.f32 %v2465, %v2533
    %2535 = vmatmul.bf16.gmra.mxu0 %v1020
    %v2536 = vpop.f32.mrf.mxu0
    %v2537 = vadd.f32 %v2468, %v2536
    %v2538 = vpop.f32.mrf.mxu0
    %v2539 = vadd.f32 %v2470, %v2538
    %2540 = vdwg.mxu0
    %2541 = vmatpush.bf16.msra.mxu0 %v574
    %2542 = vmatpush.bf16.msra.mxu0 %v572
    %2543 = vmatpush.bf16.msra.mxu0 %v570
    %2544 = vmatpush.bf16.msra.mxu0 %v568
    %2545 = vmatpush.bf16.msra.mxu0 %v566
    %2546 = vmatpush.bf16.msra.mxu0 %v564
    %2547 = vmatpush.bf16.msra.mxu0 %v562
    %2548 = vmatpush.bf16.msra.mxu0 %v560
    %2549 = vmatmul.bf16.gmra.mxu0 %v889
    %v2550 = vpop.f32.mrf.mxu0
    %v2551 = vadd.f32 %v2482, %v2550
    %v2552 = vpop.f32.mrf.mxu0
    %v2553 = vadd.f32 %v2484, %v2552
    %2554 = vmatmul.bf16.gmra.mxu0 %v901
    %v2555 = vpop.f32.mrf.mxu0
    %v2556 = vadd.f32 %v2487, %v2555
    %v2557 = vpop.f32.mrf.mxu0
    %v2558 = vadd.f32 %v2489, %v2557
    %2559 = vmatmul.bf16.gmra.mxu0 %v913
    %v2560 = vpop.f32.mrf.mxu0
    %v2561 = vadd.f32 %v2492, %v2560
    %v2562 = vpop.f32.mrf.mxu0
    %v2563 = vadd.f32 %v2494, %v2562
    %2564 = vmatmul.bf16.gmra.mxu0 %v925
    %v2565 = vpop.f32.mrf.mxu0
    %v2566 = vadd.f32 %v2497, %v2565
    %v2567 = vpop.f32.mrf.mxu0
    %v2568 = vadd.f32 %v2499, %v2567
    %2569 = vmatmul.bf16.gmra.mxu0 %v937
    %v2570 = vpop.f32.mrf.mxu0
    %v2571 = vadd.f32 %v2502, %v2570
    %v2572 = vpop.f32.mrf.mxu0
    %v2573 = vadd.f32 %v2504, %v2572
    %2574 = vmatmul.bf16.gmra.mxu0 %v949
    %v2575 = vpop.f32.mrf.mxu0
    %v2576 = vadd.f32 %v2507, %v2575
    %v2577 = vpop.f32.mrf.mxu0
    %v2578 = vadd.f32 %v2509, %v2577
    %2579 = vmatmul.bf16.gmra.mxu0 %v961
    %v2580 = vpop.f32.mrf.mxu0
    %v2581 = vadd.f32 %v2512, %v2580
    %v2582 = vpop.f32.mrf.mxu0
    %v2583 = vadd.f32 %v2514, %v2582
    %2584 = vmatmul.bf16.gmra.mxu0 %v973
    %v2585 = vpop.f32.mrf.mxu0
    %v2586 = vadd.f32 %v2517, %v2585
    %v2587 = vpop.f32.mrf.mxu0
    %v2588 = vadd.f32 %v2519, %v2587
    %2589 = vmatmul.bf16.gmra.mxu0 %v985
    %v2590 = vpop.f32.mrf.mxu0
    %v2591 = vadd.f32 %v2522, %v2590
    %v2592 = vpop.f32.mrf.mxu0
    %v2593 = vadd.f32 %v2524, %v2592
    %2594 = vmatmul.bf16.gmra.mxu0 %v997
    %v2595 = vpop.f32.mrf.mxu0
    %v2596 = vadd.f32 %v2527, %v2595
    %v2597 = vpop.f32.mrf.mxu0
    %v2598 = vadd.f32 %v2529, %v2597
    %2599 = vmatmul.bf16.gmra.mxu0 %v1009
    %v2600 = vpop.f32.mrf.mxu0
    %v2601 = vadd.f32 %v2532, %v2600
    %v2602 = vpop.f32.mrf.mxu0
    %v2603 = vadd.f32 %v2534, %v2602
    %2604 = vmatmul.bf16.gmra.mxu0 %v1021
    %v2605 = vpop.f32.mrf.mxu0
    %v2606 = vadd.f32 %v2537, %v2605
    %v2607 = vpop.f32.mrf.mxu0
    %v2608 = vadd.f32 %v2539, %v2607
    %2609 = vdwg.mxu0
    %2610 = vmatpush.bf16.msra.mxu0 %v590
    %2611 = vmatpush.bf16.msra.mxu0 %v588
    %2612 = vmatpush.bf16.msra.mxu0 %v586
    %2613 = vmatpush.bf16.msra.mxu0 %v584
    %2614 = vmatpush.bf16.msra.mxu0 %v582
    %2615 = vmatpush.bf16.msra.mxu0 %v580
    %2616 = vmatpush.bf16.msra.mxu0 %v578
    %2617 = vmatpush.bf16.msra.mxu0 %v576
    %2618 = vmatmul.bf16.gmra.mxu0 %v890
    %v2619 = vpop.f32.mrf.mxu0
    %v2620 = vadd.f32 %v2551, %v2619
    %v2621 = vpop.f32.mrf.mxu0
    %v2622 = vadd.f32 %v2553, %v2621
    %2623 = vmatmul.bf16.gmra.mxu0 %v902
    %v2624 = vpop.f32.mrf.mxu0
    %v2625 = vadd.f32 %v2556, %v2624
    %v2626 = vpop.f32.mrf.mxu0
    %v2627 = vadd.f32 %v2558, %v2626
    %2628 = vmatmul.bf16.gmra.mxu0 %v914
    %v2629 = vpop.f32.mrf.mxu0
    %v2630 = vadd.f32 %v2561, %v2629
    %v2631 = vpop.f32.mrf.mxu0
    %v2632 = vadd.f32 %v2563, %v2631
    %2633 = vmatmul.bf16.gmra.mxu0 %v926
    %v2634 = vpop.f32.mrf.mxu0
    %v2635 = vadd.f32 %v2566, %v2634
    %v2636 = vpop.f32.mrf.mxu0
    %v2637 = vadd.f32 %v2568, %v2636
    %2638 = vmatmul.bf16.gmra.mxu0 %v938
    %v2639 = vpop.f32.mrf.mxu0
    %v2640 = vadd.f32 %v2571, %v2639
    %v2641 = vpop.f32.mrf.mxu0
    %v2642 = vadd.f32 %v2573, %v2641
    %2643 = vmatmul.bf16.gmra.mxu0 %v950
    %v2644 = vpop.f32.mrf.mxu0
    %v2645 = vadd.f32 %v2576, %v2644
    %v2646 = vpop.f32.mrf.mxu0
    %v2647 = vadd.f32 %v2578, %v2646
    %2648 = vmatmul.bf16.gmra.mxu0 %v962
    %v2649 = vpop.f32.mrf.mxu0
    %v2650 = vadd.f32 %v2581, %v2649
    %v2651 = vpop.f32.mrf.mxu0
    %v2652 = vadd.f32 %v2583, %v2651
    %2653 = vmatmul.bf16.gmra.mxu0 %v974
    %v2654 = vpop.f32.mrf.mxu0
    %v2655 = vadd.f32 %v2586, %v2654
    %v2656 = vpop.f32.mrf.mxu0
    %v2657 = vadd.f32 %v2588, %v2656
    %2658 = vmatmul.bf16.gmra.mxu0 %v986
    %v2659 = vpop.f32.mrf.mxu0
    %v2660 = vadd.f32 %v2591, %v2659
    %v2661 = vpop.f32.mrf.mxu0
    %v2662 = vadd.f32 %v2593, %v2661
    %2663 = vmatmul.bf16.gmra.mxu0 %v998
    %v2664 = vpop.f32.mrf.mxu0
    %v2665 = vadd.f32 %v2596, %v2664
    %v2666 = vpop.f32.mrf.mxu0
    %v2667 = vadd.f32 %v2598, %v2666
    %2668 = vmatmul.bf16.gmra.mxu0 %v1010
    %v2669 = vpop.f32.mrf.mxu0
    %v2670 = vadd.f32 %v2601, %v2669
    %v2671 = vpop.f32.mrf.mxu0
    %v2672 = vadd.f32 %v2603, %v2671
    %2673 = vmatmul.bf16.gmra.mxu0 %v1022
    %v2674 = vpop.f32.mrf.mxu0
    %v2675 = vadd.f32 %v2606, %v2674
    %v2676 = vpop.f32.mrf.mxu0
    %v2677 = vadd.f32 %v2608, %v2676
    %2678 = vdwg.mxu0
    %vm2679 = vcmask 556032
    %v2680 = vsel %vm2679, %v2620, 0.0
    %v2681 = vadd.f32 %v1792, %v2680
    %2682 = vadd.xlane.f32.xlu0 %v2681
    %v2683 = vpop.xlane.xlu0 %2682
    %v2684 = vsel %vm2679, %v2622, 0.0
    %v2685 = vadd.f32 %v1794, %v2684
    %2686 = vadd.xlane.f32.xlu0 %v2685
    %v2687 = vpop.xlane.xlu0 %2686
    %v2688 = vsel %vm2679, %v2625, 0.0
    %v2689 = vadd.f32 %v1797, %v2688
    %2690 = vadd.xlane.f32.xlu0 %v2689
    %v2691 = vpop.xlane.xlu0 %2690
    %v2692 = vsel %vm2679, %v2627, 0.0
    %v2693 = vadd.f32 %v1799, %v2692
    %2694 = vadd.xlane.f32.xlu0 %v2693
    %v2695 = vpop.xlane.xlu0 %2694
    %v2696 = vsel %vm2679, %v2630, 0.0
    %v2697 = vadd.f32 %v1802, %v2696
    %2698 = vadd.xlane.f32.xlu0 %v2697
    %v2699 = vpop.xlane.xlu0 %2698
    %v2700 = vsel %vm2679, %v2632, 0.0
    %v2701 = vadd.f32 %v1804, %v2700
    %2702 = vadd.xlane.f32.xlu0 %v2701
    %v2703 = vpop.xlane.xlu0 %2702
    %v2704 = vsel %vm2679, %v2635, 0.0
    %v2705 = vadd.f32 %v1807, %v2704
    %2706 = vadd.xlane.f32.xlu0 %v2705
    %v2707 = vpop.xlane.xlu0 %2706
    %v2708 = vsel %vm2679, %v2637, 0.0
    %v2709 = vadd.f32 %v1809, %v2708
    %2710 = vadd.xlane.f32.xlu0 %v2709
    %v2711 = vpop.xlane.xlu0 %2710
    %v2712 = vsel %vm2679, %v2640, 0.0
    %v2713 = vadd.f32 %v1812, %v2712
    %2714 = vadd.xlane.f32.xlu0 %v2713
    %v2715 = vpop.xlane.xlu0 %2714
    %v2716 = vsel %vm2679, %v2642, 0.0
    %v2717 = vadd.f32 %v1814, %v2716
    %2718 = vadd.xlane.f32.xlu0 %v2717
    %v2719 = vpop.xlane.xlu0 %2718
    %v2720 = vsel %vm2679, %v2645, 0.0
    %v2721 = vadd.f32 %v1817, %v2720
    %2722 = vadd.xlane.f32.xlu0 %v2721
    %v2723 = vpop.xlane.xlu0 %2722
    %v2724 = vsel %vm2679, %v2647, 0.0
    %v2725 = vadd.f32 %v1819, %v2724
    %2726 = vadd.xlane.f32.xlu0 %v2725
    %v2727 = vpop.xlane.xlu0 %2726
    %v2728 = vsel %vm2679, %v2650, 0.0
    %v2729 = vadd.f32 %v1822, %v2728
    %2730 = vadd.xlane.f32.xlu0 %v2729
    %v2731 = vpop.xlane.xlu0 %2730
    %v2732 = vsel %vm2679, %v2652, 0.0
    %v2733 = vadd.f32 %v1824, %v2732
    %2734 = vadd.xlane.f32.xlu0 %v2733
    %v2735 = vpop.xlane.xlu0 %2734
    %v2736 = vsel %vm2679, %v2655, 0.0
    %v2737 = vadd.f32 %v1827, %v2736
    %2738 = vadd.xlane.f32.xlu0 %v2737
    %v2739 = vpop.xlane.xlu0 %2738
    %v2740 = vsel %vm2679, %v2657, 0.0
    %v2741 = vadd.f32 %v1829, %v2740
    %2742 = vadd.xlane.f32.xlu0 %v2741
    %v2743 = vpop.xlane.xlu0 %2742
    %v2744 = vsel %vm2679, %v2660, 0.0
    %v2745 = vadd.f32 %v1832, %v2744
    %2746 = vadd.xlane.f32.xlu0 %v2745
    %v2747 = vpop.xlane.xlu0 %2746
    %v2748 = vsel %vm2679, %v2662, 0.0
    %v2749 = vadd.f32 %v1834, %v2748
    %2750 = vadd.xlane.f32.xlu0 %v2749
    %v2751 = vpop.xlane.xlu0 %2750
    %v2752 = vsel %vm2679, %v2665, 0.0
    %v2753 = vadd.f32 %v1837, %v2752
    %2754 = vadd.xlane.f32.xlu0 %v2753
    %v2755 = vpop.xlane.xlu0 %2754
    %v2756 = vsel %vm2679, %v2667, 0.0
    %v2757 = vadd.f32 %v1839, %v2756
    %2758 = vadd.xlane.f32.xlu0 %v2757
    %v2759 = vpop.xlane.xlu0 %2758
    %v2760 = vsel %vm2679, %v2670, 0.0
    %v2761 = vadd.f32 %v1842, %v2760
    %2762 = vadd.xlane.f32.xlu0 %v2761
    %v2763 = vpop.xlane.xlu0 %2762
    %v2764 = vsel %vm2679, %v2672, 0.0
    %v2765 = vadd.f32 %v1844, %v2764
    %2766 = vadd.xlane.f32.xlu0 %v2765
    %v2767 = vpop.xlane.xlu0 %2766
    %v2768 = vsel %vm2679, %v2675, 0.0
    %v2769 = vadd.f32 %v1847, %v2768
    %2770 = vadd.xlane.f32.xlu0 %v2769
    %v2771 = vpop.xlane.xlu0 %2770
    %v2772 = vsel %vm2679, %v2677, 0.0
    %v2773 = vadd.f32 %v1849, %v2772
    %2774 = vadd.xlane.f32.xlu0 %v2773
    %v2775 = vpop.xlane.xlu0 %2774
    %v2776 = vrcp.pop 196.0
    %v2777 = vmul.f32 196.0, %v2776
    %v2778 = vsub.f32 1.0, %v2777
    %v2779 = vmul.f32 %v2776, %v2778
    %v2780 = vadd.f32 %v2776, %v2779
    %vm2781 = vweird.f32 %v2776
    %v2782 = vsel %vm2781, %v2776, %v2780
    %v2783 = vmul.f32 %v2683, %v2782
    %v2784 = vmul.f32 %v2687, %v2782
    %v2785 = vmul.f32 %v2691, %v2782
    %v2786 = vmul.f32 %v2695, %v2782
    %v2787 = vmul.f32 %v2699, %v2782
    %v2788 = vmul.f32 %v2703, %v2782
    %v2789 = vmul.f32 %v2707, %v2782
    %v2790 = vmul.f32 %v2711, %v2782
    %v2791 = vmul.f32 %v2715, %v2782
    %v2792 = vmul.f32 %v2719, %v2782
    %v2793 = vmul.f32 %v2723, %v2782
    %v2794 = vmul.f32 %v2727, %v2782
    %v2795 = vmul.f32 %v2731, %v2782
    %v2796 = vmul.f32 %v2735, %v2782
    %v2797 = vmul.f32 %v2739, %v2782
    %v2798 = vmul.f32 %v2743, %v2782
    %v2799 = vmul.f32 %v2747, %v2782
    %v2800 = vmul.f32 %v2751, %v2782
    %v2801 = vmul.f32 %v2755, %v2782
    %v2802 = vmul.f32 %v2759, %v2782
    %v2803 = vmul.f32 %v2763, %v2782
    %v2804 = vmul.f32 %v2767, %v2782
    %v2805 = vmul.f32 %v2771, %v2782
    %v2806 = vmul.f32 %v2775, %v2782
    %v2807 = vsub.f32 %v1792, %v2783
    %v2808 = vsub.f32 %v2620, %v2783
    %v2809 = vsub.f32 %v1794, %v2784
    %v2810 = vsub.f32 %v2622, %v2784
    %v2811 = vsub.f32 %v1797, %v2785
    %v2812 = vsub.f32 %v2625, %v2785
    %v2813 = vsub.f32 %v1799, %v2786
    %v2814 = vsub.f32 %v2627, %v2786
    %v2815 = vsub.f32 %v1802, %v2787
    %v2816 = vsub.f32 %v2630, %v2787
    %v2817 = vsub.f32 %v1804, %v2788
    %v2818 = vsub.f32 %v2632, %v2788
    %v2819 = vsub.f32 %v1807, %v2789
    %v2820 = vsub.f32 %v2635, %v2789
    %v2821 = vsub.f32 %v1809, %v2790
    %v2822 = vsub.f32 %v2637, %v2790
    %v2823 = vsub.f32 %v1812, %v2791
    %v2824 = vsub.f32 %v2640, %v2791
    %v2825 = vsub.f32 %v1814, %v2792
    %v2826 = vsub.f32 %v2642, %v2792
    %v2827 = vsub.f32 %v1817, %v2793
    %v2828 = vsub.f32 %v2645, %v2793
    %v2829 = vsub.f32 %v1819, %v2794
    %v2830 = vsub.f32 %v2647, %v2794
    %v2831 = vsub.f32 %v1822, %v2795
    %v2832 = vsub.f32 %v2650, %v2795
    %v2833 = vsub.f32 %v1824, %v2796
    %v2834 = vsub.f32 %v2652, %v2796
    %v2835 = vsub.f32 %v1827, %v2797
    %v2836 = vsub.f32 %v2655, %v2797
    %v2837 = vsub.f32 %v1829, %v2798
    %v2838 = vsub.f32 %v2657, %v2798
    %v2839 = vsub.f32 %v1832, %v2799
    %v2840 = vsub.f32 %v2660, %v2799
    %v2841 = vsub.f32 %v1834, %v2800
    %v2842 = vsub.f32 %v2662, %v2800
    %v2843 = vsub.f32 %v1837, %v2801
    %v2844 = vsub.f32 %v2665, %v2801
    %v2845 = vsub.f32 %v1839, %v2802
    %v2846 = vsub.f32 %v2667, %v2802
    %v2847 = vsub.f32 %v1842, %v2803
    %v2848 = vsub.f32 %v2670, %v2803
    %v2849 = vsub.f32 %v1844, %v2804
    %v2850 = vsub.f32 %v2672, %v2804
    %v2851 = vsub.f32 %v1847, %v2805
    %v2852 = vsub.f32 %v2675, %v2805
    %v2853 = vsub.f32 %v1849, %v2806
    %v2854 = vsub.f32 %v2677, %v2806
    %v2855 = vmul.f32 %v2807, %v2807
    %v2856 = vmul.f32 %v2808, %v2808
    %v2857 = vmul.f32 %v2809, %v2809
    %v2858 = vmul.f32 %v2810, %v2810
    %v2859 = vmul.f32 %v2811, %v2811
    %v2860 = vmul.f32 %v2812, %v2812
    %v2861 = vmul.f32 %v2813, %v2813
    %v2862 = vmul.f32 %v2814, %v2814
    %v2863 = vmul.f32 %v2815, %v2815
    %v2864 = vmul.f32 %v2816, %v2816
    %v2865 = vmul.f32 %v2817, %v2817
    %v2866 = vmul.f32 %v2818, %v2818
    %v2867 = vmul.f32 %v2819, %v2819
    %v2868 = vmul.f32 %v2820, %v2820
    %v2869 = vmul.f32 %v2821, %v2821
    %v2870 = vmul.f32 %v2822, %v2822
    %v2871 = vmul.f32 %v2823, %v2823
    %v2872 = vmul.f32 %v2824, %v2824
    %v2873 = vmul.f32 %v2825, %v2825
    %v2874 = vmul.f32 %v2826, %v2826
    %v2875 = vmul.f32 %v2827, %v2827
    %v2876 = vmul.f32 %v2828, %v2828
    %v2877 = vmul.f32 %v2829, %v2829
    %v2878 = vmul.f32 %v2830, %v2830
    %v2879 = vmul.f32 %v2831, %v2831
    %v2880 = vmul.f32 %v2832, %v2832
    %v2881 = vmul.f32 %v2833, %v2833
    %v2882 = vmul.f32 %v2834, %v2834
    %v2883 = vmul.f32 %v2835, %v2835
    %v2884 = vmul.f32 %v2836, %v2836
    %v2885 = vmul.f32 %v2837, %v2837
    %v2886 = vmul.f32 %v2838, %v2838
    %v2887 = vmul.f32 %v2839, %v2839
    %v2888 = vmul.f32 %v2840, %v2840
    %v2889 = vmul.f32 %v2841, %v2841
    %v2890 = vmul.f32 %v2842, %v2842
    %v2891 = vmul.f32 %v2843, %v2843
    %v2892 = vmul.f32 %v2844, %v2844
    %v2893 = vmul.f32 %v2845, %v2845
    %v2894 = vmul.f32 %v2846, %v2846
    %v2895 = vmul.f32 %v2847, %v2847
    %v2896 = vmul.f32 %v2848, %v2848
    %v2897 = vmul.f32 %v2849, %v2849
    %v2898 = vmul.f32 %v2850, %v2850
    %v2899 = vmul.f32 %v2851, %v2851
    %v2900 = vmul.f32 %v2852, %v2852
    %v2901 = vmul.f32 %v2853, %v2853
    %v2902 = vmul.f32 %v2854, %v2854
    %v2903 = vsel %vm2679, %v2856, 0.0
    %v2904 = vadd.f32 %v2855, %v2903
    %2905 = vadd.xlane.f32.xlu0 %v2904
    %v2906 = vpop.xlane.xlu0 %2905
    %v2907 = vsel %vm2679, %v2858, 0.0
    %v2908 = vadd.f32 %v2857, %v2907
    %2909 = vadd.xlane.f32.xlu0 %v2908
    %v2910 = vpop.xlane.xlu0 %2909
    %v2911 = vsel %vm2679, %v2860, 0.0
    %v2912 = vadd.f32 %v2859, %v2911
    %2913 = vadd.xlane.f32.xlu0 %v2912
    %v2914 = vpop.xlane.xlu0 %2913
    %v2915 = vsel %vm2679, %v2862, 0.0
    %v2916 = vadd.f32 %v2861, %v2915
    %2917 = vadd.xlane.f32.xlu0 %v2916
    %v2918 = vpop.xlane.xlu0 %2917
    %v2919 = vsel %vm2679, %v2864, 0.0
    %v2920 = vadd.f32 %v2863, %v2919
    %2921 = vadd.xlane.f32.xlu0 %v2920
    %v2922 = vpop.xlane.xlu0 %2921
    %v2923 = vsel %vm2679, %v2866, 0.0
    %v2924 = vadd.f32 %v2865, %v2923
    %2925 = vadd.xlane.f32.xlu0 %v2924
    %v2926 = vpop.xlane.xlu0 %2925
    %v2927 = vsel %vm2679, %v2868, 0.0
    %v2928 = vadd.f32 %v2867, %v2927
    %2929 = vadd.xlane.f32.xlu0 %v2928
    %v2930 = vpop.xlane.xlu0 %2929
    %v2931 = vsel %vm2679, %v2870, 0.0
    %v2932 = vadd.f32 %v2869, %v2931
    %2933 = vadd.xlane.f32.xlu0 %v2932
    %v2934 = vpop.xlane.xlu0 %2933
    %v2935 = vsel %vm2679, %v2872, 0.0
    %v2936 = vadd.f32 %v2871, %v2935
    %2937 = vadd.xlane.f32.xlu0 %v2936
    %v2938 = vpop.xlane.xlu0 %2937
    %v2939 = vsel %vm2679, %v2874, 0.0
    %v2940 = vadd.f32 %v2873, %v2939
    %2941 = vadd.xlane.f32.xlu0 %v2940
    %v2942 = vpop.xlane.xlu0 %2941
    %v2943 = vsel %vm2679, %v2876, 0.0
    %v2944 = vadd.f32 %v2875, %v2943
    %2945 = vadd.xlane.f32.xlu0 %v2944
    %v2946 = vpop.xlane.xlu0 %2945
    %v2947 = vsel %vm2679, %v2878, 0.0
    %v2948 = vadd.f32 %v2877, %v2947
    %2949 = vadd.xlane.f32.xlu0 %v2948
    %v2950 = vpop.xlane.xlu0 %2949
    %v2951 = vsel %vm2679, %v2880, 0.0
    %v2952 = vadd.f32 %v2879, %v2951
    %2953 = vadd.xlane.f32.xlu0 %v2952
    %v2954 = vpop.xlane.xlu0 %2953
    %v2955 = vsel %vm2679, %v2882, 0.0
    %v2956 = vadd.f32 %v2881, %v2955
    %2957 = vadd.xlane.f32.xlu0 %v2956
    %v2958 = vpop.xlane.xlu0 %2957
    %v2959 = vsel %vm2679, %v2884, 0.0
    %v2960 = vadd.f32 %v2883, %v2959
    %2961 = vadd.xlane.f32.xlu0 %v2960
    %v2962 = vpop.xlane.xlu0 %2961
    %v2963 = vsel %vm2679, %v2886, 0.0
    %v2964 = vadd.f32 %v2885, %v2963
    %2965 = vadd.xlane.f32.xlu0 %v2964
    %v2966 = vpop.xlane.xlu0 %2965
    %v2967 = vsel %vm2679, %v2888, 0.0
    %v2968 = vadd.f32 %v2887, %v2967
    %2969 = vadd.xlane.f32.xlu0 %v2968
    %v2970 = vpop.xlane.xlu0 %2969
    %v2971 = vsel %vm2679, %v2890, 0.0
    %v2972 = vadd.f32 %v2889, %v2971
    %2973 = vadd.xlane.f32.xlu0 %v2972
    %v2974 = vpop.xlane.xlu0 %2973
    %v2975 = vsel %vm2679, %v2892, 0.0
    %v2976 = vadd.f32 %v2891, %v2975
    %2977 = vadd.xlane.f32.xlu0 %v2976
    %v2978 = vpop.xlane.xlu0 %2977
    %v2979 = vsel %vm2679, %v2894, 0.0
    %v2980 = vadd.f32 %v2893, %v2979
    %2981 = vadd.xlane.f32.xlu0 %v2980
    %v2982 = vpop.xlane.xlu0 %2981
    %v2983 = vsel %vm2679, %v2896, 0.0
    %v2984 = vadd.f32 %v2895, %v2983
    %2985 = vadd.xlane.f32.xlu0 %v2984
    %v2986 = vpop.xlane.xlu0 %2985
    %v2987 = vsel %vm2679, %v2898, 0.0
    %v2988 = vadd.f32 %v2897, %v2987
    %2989 = vadd.xlane.f32.xlu0 %v2988
    %v2990 = vpop.xlane.xlu0 %2989
    %v2991 = vsel %vm2679, %v2900, 0.0
    %v2992 = vadd.f32 %v2899, %v2991
    %2993 = vadd.xlane.f32.xlu0 %v2992
    %v2994 = vpop.xlane.xlu0 %2993
    %v2995 = vsel %vm2679, %v2902, 0.0
    %v2996 = vadd.f32 %v2901, %v2995
    %2997 = vadd.xlane.f32.xlu0 %v2996
    %v2998 = vpop.xlane.xlu0 %2997
    %v2999 = vmul.f32 %v2906, %v2782
    %v3000 = vmul.f32 %v2910, %v2782
    %v3001 = vmul.f32 %v2914, %v2782
    %v3002 = vmul.f32 %v2918, %v2782
    %v3003 = vmul.f32 %v2922, %v2782
    %v3004 = vmul.f32 %v2926, %v2782
    %v3005 = vmul.f32 %v2930, %v2782
    %v3006 = vmul.f32 %v2934, %v2782
    %v3007 = vmul.f32 %v2938, %v2782
    %v3008 = vmul.f32 %v2942, %v2782
    %v3009 = vmul.f32 %v2946, %v2782
    %v3010 = vmul.f32 %v2950, %v2782
    %v3011 = vmul.f32 %v2954, %v2782
    %v3012 = vmul.f32 %v2958, %v2782
    %v3013 = vmul.f32 %v2962, %v2782
    %v3014 = vmul.f32 %v2966, %v2782
    %v3015 = vmul.f32 %v2970, %v2782
    %v3016 = vmul.f32 %v2974, %v2782
    %v3017 = vmul.f32 %v2978, %v2782
    %v3018 = vmul.f32 %v2982, %v2782
    %v3019 = vmul.f32 %v2986, %v2782
    %v3020 = vmul.f32 %v2990, %v2782
    %v3021 = vmul.f32 %v2994, %v2782
    %v3022 = vmul.f32 %v2998, %v2782
    %v3023 = vadd.f32 %v2999, 1e-05
    %v3024 = vadd.f32 %v3000, 1e-05
    %v3025 = vadd.f32 %v3001, 1e-05
    %v3026 = vadd.f32 %v3002, 1e-05
    %v3027 = vadd.f32 %v3003, 1e-05
    %v3028 = vadd.f32 %v3004, 1e-05
    %v3029 = vadd.f32 %v3005, 1e-05
    %v3030 = vadd.f32 %v3006, 1e-05
    %v3031 = vadd.f32 %v3007, 1e-05
    %v3032 = vadd.f32 %v3008, 1e-05
    %v3033 = vadd.f32 %v3009, 1e-05
    %v3034 = vadd.f32 %v3010, 1e-05
    %v3035 = vadd.f32 %v3011, 1e-05
    %v3036 = vadd.f32 %v3012, 1e-05
    %v3037 = vadd.f32 %v3013, 1e-05
    %v3038 = vadd.f32 %v3014, 1e-05
    %v3039 = vadd.f32 %v3015, 1e-05
    %v3040 = vadd.f32 %v3016, 1e-05
    %v3041 = vadd.f32 %v3017, 1e-05
    %v3042 = vadd.f32 %v3018, 1e-05
    %v3043 = vadd.f32 %v3019, 1e-05
    %v3044 = vadd.f32 %v3020, 1e-05
    %v3045 = vadd.f32 %v3021, 1e-05
    %v3046 = vadd.f32 %v3022, 1e-05
    %v3047 = vrsqrt.pop %v3023
    %v3048 = vmul.f32 %v3047, %v3023
    %v3049 = vmul.f32 %v3048, %v3047
    %v3050 = vmul.f32 0.5, %v3049
    %v3051 = vsub.f32 1.5, %v3050
    %v3052 = vmul.f32 %v3047, %v3051
    %vm3053 = vweird.f32 %v3023
    %vm3054 = vweird.f32 %v3047
    %vm3055 = vmor %vm3053, %vm3054
    %v3056 = vsel %vm3055, %v3047, %v3052
    %v3057 = vrsqrt.pop %v3024
    %v3058 = vmul.f32 %v3057, %v3024
    %v3059 = vmul.f32 %v3058, %v3057
    %v3060 = vmul.f32 0.5, %v3059
    %v3061 = vsub.f32 1.5, %v3060
    %v3062 = vmul.f32 %v3057, %v3061
    %vm3063 = vweird.f32 %v3024
    %vm3064 = vweird.f32 %v3057
    %vm3065 = vmor %vm3063, %vm3064
    %v3066 = vsel %vm3065, %v3057, %v3062
    %v3067 = vrsqrt.pop %v3025
    %v3068 = vmul.f32 %v3067, %v3025
    %v3069 = vmul.f32 %v3068, %v3067
    %v3070 = vmul.f32 0.5, %v3069
    %v3071 = vsub.f32 1.5, %v3070
    %v3072 = vmul.f32 %v3067, %v3071
    %vm3073 = vweird.f32 %v3025
    %vm3074 = vweird.f32 %v3067
    %vm3075 = vmor %vm3073, %vm3074
    %v3076 = vsel %vm3075, %v3067, %v3072
    %v3077 = vrsqrt.pop %v3026
    %v3078 = vmul.f32 %v3077, %v3026
    %v3079 = vmul.f32 %v3078, %v3077
    %v3080 = vmul.f32 0.5, %v3079
    %v3081 = vsub.f32 1.5, %v3080
    %v3082 = vmul.f32 %v3077, %v3081
    %vm3083 = vweird.f32 %v3026
    %vm3084 = vweird.f32 %v3077
    %vm3085 = vmor %vm3083, %vm3084
    %v3086 = vsel %vm3085, %v3077, %v3082
    %v3087 = vrsqrt.pop %v3027
    %v3088 = vmul.f32 %v3087, %v3027
    %v3089 = vmul.f32 %v3088, %v3087
    %v3090 = vmul.f32 0.5, %v3089
    %v3091 = vsub.f32 1.5, %v3090
    %v3092 = vmul.f32 %v3087, %v3091
    %vm3093 = vweird.f32 %v3027
    %vm3094 = vweird.f32 %v3087
    %vm3095 = vmor %vm3093, %vm3094
    %v3096 = vsel %vm3095, %v3087, %v3092
    %v3097 = vrsqrt.pop %v3028
    %v3098 = vmul.f32 %v3097, %v3028
    %v3099 = vmul.f32 %v3098, %v3097
    %v3100 = vmul.f32 0.5, %v3099
    %v3101 = vsub.f32 1.5, %v3100
    %v3102 = vmul.f32 %v3097, %v3101
    %vm3103 = vweird.f32 %v3028
    %vm3104 = vweird.f32 %v3097
    %vm3105 = vmor %vm3103, %vm3104
    %v3106 = vsel %vm3105, %v3097, %v3102
    %v3107 = vrsqrt.pop %v3029
    %v3108 = vmul.f32 %v3107, %v3029
    %v3109 = vmul.f32 %v3108, %v3107
    %v3110 = vmul.f32 0.5, %v3109
    %v3111 = vsub.f32 1.5, %v3110
    %v3112 = vmul.f32 %v3107, %v3111
    %vm3113 = vweird.f32 %v3029
    %vm3114 = vweird.f32 %v3107
    %vm3115 = vmor %vm3113, %vm3114
    %v3116 = vsel %vm3115, %v3107, %v3112
    %v3117 = vrsqrt.pop %v3030
    %v3118 = vmul.f32 %v3117, %v3030
    %v3119 = vmul.f32 %v3118, %v3117
    %v3120 = vmul.f32 0.5, %v3119
    %v3121 = vsub.f32 1.5, %v3120
    %v3122 = vmul.f32 %v3117, %v3121
    %vm3123 = vweird.f32 %v3030
    %vm3124 = vweird.f32 %v3117
    %vm3125 = vmor %vm3123, %vm3124
    %v3126 = vsel %vm3125, %v3117, %v3122
    %v3127 = vrsqrt.pop %v3031
    %v3128 = vmul.f32 %v3127, %v3031
    %v3129 = vmul.f32 %v3128, %v3127
    %v3130 = vmul.f32 0.5, %v3129
    %v3131 = vsub.f32 1.5, %v3130
    %v3132 = vmul.f32 %v3127, %v3131
    %vm3133 = vweird.f32 %v3031
    %vm3134 = vweird.f32 %v3127
    %vm3135 = vmor %vm3133, %vm3134
    %v3136 = vsel %vm3135, %v3127, %v3132
    %v3137 = vrsqrt.pop %v3032
    %v3138 = vmul.f32 %v3137, %v3032
    %v3139 = vmul.f32 %v3138, %v3137
    %v3140 = vmul.f32 0.5, %v3139
    %v3141 = vsub.f32 1.5, %v3140
    %v3142 = vmul.f32 %v3137, %v3141
    %vm3143 = vweird.f32 %v3032
    %vm3144 = vweird.f32 %v3137
    %vm3145 = vmor %vm3143, %vm3144
    %v3146 = vsel %vm3145, %v3137, %v3142
    %v3147 = vrsqrt.pop %v3033
    %v3148 = vmul.f32 %v3147, %v3033
    %v3149 = vmul.f32 %v3148, %v3147
    %v3150 = vmul.f32 0.5, %v3149
    %v3151 = vsub.f32 1.5, %v3150
    %v3152 = vmul.f32 %v3147, %v3151
    %vm3153 = vweird.f32 %v3033
    %vm3154 = vweird.f32 %v3147
    %vm3155 = vmor %vm3153, %vm3154
    %v3156 = vsel %vm3155, %v3147, %v3152
    %v3157 = vrsqrt.pop %v3034
    %v3158 = vmul.f32 %v3157, %v3034
    %v3159 = vmul.f32 %v3158, %v3157
    %v3160 = vmul.f32 0.5, %v3159
    %v3161 = vsub.f32 1.5, %v3160
    %v3162 = vmul.f32 %v3157, %v3161
    %vm3163 = vweird.f32 %v3034
    %vm3164 = vweird.f32 %v3157
    %vm3165 = vmor %vm3163, %vm3164
    %v3166 = vsel %vm3165, %v3157, %v3162
    %v3167 = vrsqrt.pop %v3035
    %v3168 = vmul.f32 %v3167, %v3035
    %v3169 = vmul.f32 %v3168, %v3167
    %v3170 = vmul.f32 0.5, %v3169
    %v3171 = vsub.f32 1.5, %v3170
    %v3172 = vmul.f32 %v3167, %v3171
    %vm3173 = vweird.f32 %v3035
    %vm3174 = vweird.f32 %v3167
    %vm3175 = vmor %vm3173, %vm3174
    %v3176 = vsel %vm3175, %v3167, %v3172
    %v3177 = vrsqrt.pop %v3036
    %v3178 = vmul.f32 %v3177, %v3036
    %v3179 = vmul.f32 %v3178, %v3177
    %v3180 = vmul.f32 0.5, %v3179
    %v3181 = vsub.f32 1.5, %v3180
    %v3182 = vmul.f32 %v3177, %v3181
    %vm3183 = vweird.f32 %v3036
    %vm3184 = vweird.f32 %v3177
    %vm3185 = vmor %vm3183, %vm3184
    %v3186 = vsel %vm3185, %v3177, %v3182
    %v3187 = vrsqrt.pop %v3037
    %v3188 = vmul.f32 %v3187, %v3037
    %v3189 = vmul.f32 %v3188, %v3187
    %v3190 = vmul.f32 0.5, %v3189
    %v3191 = vsub.f32 1.5, %v3190
    %v3192 = vmul.f32 %v3187, %v3191
    %vm3193 = vweird.f32 %v3037
    %vm3194 = vweird.f32 %v3187
    %vm3195 = vmor %vm3193, %vm3194
    %v3196 = vsel %vm3195, %v3187, %v3192
    %v3197 = vrsqrt.pop %v3038
    %v3198 = vmul.f32 %v3197, %v3038
    %v3199 = vmul.f32 %v3198, %v3197
    %v3200 = vmul.f32 0.5, %v3199
    %v3201 = vsub.f32 1.5, %v3200
    %v3202 = vmul.f32 %v3197, %v3201
    %vm3203 = vweird.f32 %v3038
    %vm3204 = vweird.f32 %v3197
    %vm3205 = vmor %vm3203, %vm3204
    %v3206 = vsel %vm3205, %v3197, %v3202
    %v3207 = vrsqrt.pop %v3039
    %v3208 = vmul.f32 %v3207, %v3039
    %v3209 = vmul.f32 %v3208, %v3207
    %v3210 = vmul.f32 0.5, %v3209
    %v3211 = vsub.f32 1.5, %v3210
    %v3212 = vmul.f32 %v3207, %v3211
    %vm3213 = vweird.f32 %v3039
    %vm3214 = vweird.f32 %v3207
    %vm3215 = vmor %vm3213, %vm3214
    %v3216 = vsel %vm3215, %v3207, %v3212
    %v3217 = vrsqrt.pop %v3040
    %v3218 = vmul.f32 %v3217, %v3040
    %v3219 = vmul.f32 %v3218, %v3217
    %v3220 = vmul.f32 0.5, %v3219
    %v3221 = vsub.f32 1.5, %v3220
    %v3222 = vmul.f32 %v3217, %v3221
    %vm3223 = vweird.f32 %v3040
    %vm3224 = vweird.f32 %v3217
    %vm3225 = vmor %vm3223, %vm3224
    %v3226 = vsel %vm3225, %v3217, %v3222
    %v3227 = vrsqrt.pop %v3041
    %v3228 = vmul.f32 %v3227, %v3041
    %v3229 = vmul.f32 %v3228, %v3227
    %v3230 = vmul.f32 0.5, %v3229
    %v3231 = vsub.f32 1.5, %v3230
    %v3232 = vmul.f32 %v3227, %v3231
    %vm3233 = vweird.f32 %v3041
    %vm3234 = vweird.f32 %v3227
    %vm3235 = vmor %vm3233, %vm3234
    %v3236 = vsel %vm3235, %v3227, %v3232
    %v3237 = vrsqrt.pop %v3042
    %v3238 = vmul.f32 %v3237, %v3042
    %v3239 = vmul.f32 %v3238, %v3237
    %v3240 = vmul.f32 0.5, %v3239
    %v3241 = vsub.f32 1.5, %v3240
    %v3242 = vmul.f32 %v3237, %v3241
    %vm3243 = vweird.f32 %v3042
    %vm3244 = vweird.f32 %v3237
    %vm3245 = vmor %vm3243, %vm3244
    %v3246 = vsel %vm3245, %v3237, %v3242
    %v3247 = vrsqrt.pop %v3043
    %v3248 = vmul.f32 %v3247, %v3043
    %v3249 = vmul.f32 %v3248, %v3247
    %v3250 = vmul.f32 0.5, %v3249
    %v3251 = vsub.f32 1.5, %v3250
    %v3252 = vmul.f32 %v3247, %v3251
    %vm3253 = vweird.f32 %v3043
    %vm3254 = vweird.f32 %v3247
    %vm3255 = vmor %vm3253, %vm3254
    %v3256 = vsel %vm3255, %v3247, %v3252
    %v3257 = vrsqrt.pop %v3044
    %v3258 = vmul.f32 %v3257, %v3044
    %v3259 = vmul.f32 %v3258, %v3257
    %v3260 = vmul.f32 0.5, %v3259
    %v3261 = vsub.f32 1.5, %v3260
    %v3262 = vmul.f32 %v3257, %v3261
    %vm3263 = vweird.f32 %v3044
    %vm3264 = vweird.f32 %v3257
    %vm3265 = vmor %vm3263, %vm3264
    %v3266 = vsel %vm3265, %v3257, %v3262
    %v3267 = vrsqrt.pop %v3045
    %v3268 = vmul.f32 %v3267, %v3045
    %v3269 = vmul.f32 %v3268, %v3267
    %v3270 = vmul.f32 0.5, %v3269
    %v3271 = vsub.f32 1.5, %v3270
    %v3272 = vmul.f32 %v3267, %v3271
    %vm3273 = vweird.f32 %v3045
    %vm3274 = vweird.f32 %v3267
    %vm3275 = vmor %vm3273, %vm3274
    %v3276 = vsel %vm3275, %v3267, %v3272
    %v3277 = vrsqrt.pop %v3046
    %v3278 = vmul.f32 %v3277, %v3046
    %v3279 = vmul.f32 %v3278, %v3277
    %v3280 = vmul.f32 0.5, %v3279
    %v3281 = vsub.f32 1.5, %v3280
    %v3282 = vmul.f32 %v3277, %v3281
    %vm3283 = vweird.f32 %v3046
    %vm3284 = vweird.f32 %v3277
    %vm3285 = vmor %vm3283, %vm3284
    %v3286 = vsel %vm3285, %v3277, %v3282
    %v3287 = vld [vmem:[%s2] sm:$0xff]
    %v3288 = vld [vmem:[%s2 + $0x8] sm:$0xff]
    %v3289 = vld [vmem:[%s2 + $0x10] sm:$0xff]
    %v3290 = vld [vmem:[%s2 + $0x18] sm:$0xff]
    %v3291 = vld [vmem:[%s2 + $0x20] sm:$0xff]
    %v3292 = vld [vmem:[%s2 + $0x28] sm:$0xff]
    %v3293 = vld [vmem:[%s2 + $0x30] sm:$0xff]
    %v3294 = vld [vmem:[%s2 + $0x38] sm:$0xff]
    %v3295 = vld [vmem:[%s2 + $0x40] sm:$0xff]
    %v3296 = vld [vmem:[%s2 + $0x48] sm:$0xff]
    %v3297 = vld [vmem:[%s2 + $0x50] sm:$0xff]
    %v3298 = vld [vmem:[%s2 + $0x58] sm:$0xff]
    %v3299 = vld [vmem:[%s2 + $0x60] sm:$0xff]
    %v3300 = vld [vmem:[%s2 + $0x68] sm:$0xff]
    %v3301 = vld [vmem:[%s2 + $0x70] sm:$0xff]
    %v3302 = vld [vmem:[%s2 + $0x78] sm:$0xff]
    %v3303 = vld [vmem:[%s2 + $0x80] sm:$0xff]
    %v3304 = vld [vmem:[%s2 + $0x88] sm:$0xff]
    %v3305 = vld [vmem:[%s2 + $0x90] sm:$0xff]
    %v3306 = vld [vmem:[%s2 + $0x98] sm:$0xff]
    %v3307 = vld [vmem:[%s2 + $0xa0] sm:$0xff]
    %v3308 = vld [vmem:[%s2 + $0xa8] sm:$0xff]
    %v3309 = vld [vmem:[%s2 + $0xb0] sm:$0xff]
    %v3310 = vld [vmem:[%s2 + $0xb8] sm:$0xff]
    %v3311 = vmul.f32 %v3287, %v3056
    %v3312 = vmul.f32 %v3288, %v3066
    %v3313 = vmul.f32 %v3289, %v3076
    %v3314 = vmul.f32 %v3290, %v3086
    %v3315 = vmul.f32 %v3291, %v3096
    %v3316 = vmul.f32 %v3292, %v3106
    %v3317 = vmul.f32 %v3293, %v3116
    %v3318 = vmul.f32 %v3294, %v3126
    %v3319 = vmul.f32 %v3295, %v3136
    %v3320 = vmul.f32 %v3296, %v3146
    %v3321 = vmul.f32 %v3297, %v3156
    %v3322 = vmul.f32 %v3298, %v3166
    %v3323 = vmul.f32 %v3299, %v3176
    %v3324 = vmul.f32 %v3300, %v3186
    %v3325 = vmul.f32 %v3301, %v3196
    %v3326 = vmul.f32 %v3302, %v3206
    %v3327 = vmul.f32 %v3303, %v3216
    %v3328 = vmul.f32 %v3304, %v3226
    %v3329 = vmul.f32 %v3305, %v3236
    %v3330 = vmul.f32 %v3306, %v3246
    %v3331 = vmul.f32 %v3307, %v3256
    %v3332 = vmul.f32 %v3308, %v3266
    %v3333 = vmul.f32 %v3309, %v3276
    %v3334 = vmul.f32 %v3310, %v3286
    %3336 = vset.pattern.permute.xlu0 0
    %3337 = vperm.xlu0 %3336, %v3311
    %v3338 = vpop.permute.xlu0 %3337
    %3341 = vset.pattern.permute.xlu0 0
    %3342 = vperm.xlu0 %3341, %v3312
    %v3343 = vpop.permute.xlu0 %3342
    %3346 = vset.pattern.permute.xlu0 0
    %3347 = vperm.xlu0 %3346, %v3313
    %v3348 = vpop.permute.xlu0 %3347
    %3351 = vset.pattern.permute.xlu0 0
    %3352 = vperm.xlu0 %3351, %v3314
    %v3353 = vpop.permute.xlu0 %3352
    %3356 = vset.pattern.permute.xlu0 0
    %3357 = vperm.xlu0 %3356, %v3315
    %v3358 = vpop.permute.xlu0 %3357
    %3361 = vset.pattern.permute.xlu0 0
    %3362 = vperm.xlu0 %3361, %v3316
    %v3363 = vpop.permute.xlu0 %3362
    %3366 = vset.pattern.permute.xlu0 0
    %3367 = vperm.xlu0 %3366, %v3317
    %v3368 = vpop.permute.xlu0 %3367
    %3371 = vset.pattern.permute.xlu0 0
    %3372 = vperm.xlu0 %3371, %v3318
    %v3373 = vpop.permute.xlu0 %3372
    %3376 = vset.pattern.permute.xlu0 0
    %3377 = vperm.xlu0 %3376, %v3319
    %v3378 = vpop.permute.xlu0 %3377
    %3381 = vset.pattern.permute.xlu0 0
    %3382 = vperm.xlu0 %3381, %v3320
    %v3383 = vpop.permute.xlu0 %3382
    %3386 = vset.pattern.permute.xlu0 0
    %3387 = vperm.xlu0 %3386, %v3321
    %v3388 = vpop.permute.xlu0 %3387
    %3391 = vset.pattern.permute.xlu0 0
    %3392 = vperm.xlu0 %3391, %v3322
    %v3393 = vpop.permute.xlu0 %3392
    %3396 = vset.pattern.permute.xlu0 0
    %3397 = vperm.xlu0 %3396, %v3323
    %v3398 = vpop.permute.xlu0 %3397
    %3401 = vset.pattern.permute.xlu0 0
    %3402 = vperm.xlu0 %3401, %v3324
    %v3403 = vpop.permute.xlu0 %3402
    %3406 = vset.pattern.permute.xlu0 0
    %3407 = vperm.xlu0 %3406, %v3325
    %v3408 = vpop.permute.xlu0 %3407
    %3411 = vset.pattern.permute.xlu0 0
    %3412 = vperm.xlu0 %3411, %v3326
    %v3413 = vpop.permute.xlu0 %3412
    %3416 = vset.pattern.permute.xlu0 0
    %3417 = vperm.xlu0 %3416, %v3327
    %v3418 = vpop.permute.xlu0 %3417
    %3421 = vset.pattern.permute.xlu0 0
    %3422 = vperm.xlu0 %3421, %v3328
    %v3423 = vpop.permute.xlu0 %3422
    %3426 = vset.pattern.permute.xlu0 0
    %3427 = vperm.xlu0 %3426, %v3329
    %v3428 = vpop.permute.xlu0 %3427
    %3431 = vset.pattern.permute.xlu0 0
    %3432 = vperm.xlu0 %3431, %v3330
    %v3433 = vpop.permute.xlu0 %3432
    %3436 = vset.pattern.permute.xlu0 0
    %3437 = vperm.xlu0 %3436, %v3331
    %v3438 = vpop.permute.xlu0 %3437
    %3441 = vset.pattern.permute.xlu0 0
    %3442 = vperm.xlu0 %3441, %v3332
    %v3443 = vpop.permute.xlu0 %3442
    %3446 = vset.pattern.permute.xlu0 0
    %3447 = vperm.xlu0 %3446, %v3333
    %v3448 = vpop.permute.xlu0 %3447
    %3451 = vset.pattern.permute.xlu0 0
    %3452 = vperm.xlu0 %3451, %v3334
    %v3453 = vpop.permute.xlu0 %3452
    %v3455 = vmul.f32 %v2807, %v3338
    %v3456 = vmul.f32 %v2808, %v3338
    %v3457 = vmul.f32 %v2809, %v3343
    %v3458 = vmul.f32 %v2810, %v3343
    %v3459 = vmul.f32 %v2811, %v3348
    %v3460 = vmul.f32 %v2812, %v3348
    %v3461 = vmul.f32 %v2813, %v3353
    %v3462 = vmul.f32 %v2814, %v3353
    %v3463 = vmul.f32 %v2815, %v3358
    %v3464 = vmul.f32 %v2816, %v3358
    %v3465 = vmul.f32 %v2817, %v3363
    %v3466 = vmul.f32 %v2818, %v3363
    %v3467 = vmul.f32 %v2819, %v3368
    %v3468 = vmul.f32 %v2820, %v3368
    %v3469 = vmul.f32 %v2821, %v3373
    %v3470 = vmul.f32 %v2822, %v3373
    %v3471 = vmul.f32 %v2823, %v3378
    %v3472 = vmul.f32 %v2824, %v3378
    %v3473 = vmul.f32 %v2825, %v3383
    %v3474 = vmul.f32 %v2826, %v3383
    %v3475 = vmul.f32 %v2827, %v3388
    %v3476 = vmul.f32 %v2828, %v3388
    %v3477 = vmul.f32 %v2829, %v3393
    %v3478 = vmul.f32 %v2830, %v3393
    %v3479 = vmul.f32 %v2831, %v3398
    %v3480 = vmul.f32 %v2832, %v3398
    %v3481 = vmul.f32 %v2833, %v3403
    %v3482 = vmul.f32 %v2834, %v3403
    %v3483 = vmul.f32 %v2835, %v3408
    %v3484 = vmul.f32 %v2836, %v3408
    %v3485 = vmul.f32 %v2837, %v3413
    %v3486 = vmul.f32 %v2838, %v3413
    %v3487 = vmul.f32 %v2839, %v3418
    %v3488 = vmul.f32 %v2840, %v3418
    %v3489 = vmul.f32 %v2841, %v3423
    %v3490 = vmul.f32 %v2842, %v3423
    %v3491 = vmul.f32 %v2843, %v3428
    %v3492 = vmul.f32 %v2844, %v3428
    %v3493 = vmul.f32 %v2845, %v3433
    %v3494 = vmul.f32 %v2846, %v3433
    %v3495 = vmul.f32 %v2847, %v3438
    %v3496 = vmul.f32 %v2848, %v3438
    %v3497 = vmul.f32 %v2849, %v3443
    %v3498 = vmul.f32 %v2850, %v3443
    %v3499 = vmul.f32 %v2851, %v3448
    %v3500 = vmul.f32 %v2852, %v3448
    %v3501 = vmul.f32 %v2853, %v3453
    %v3502 = vmul.f32 %v2854, %v3453
    %3504 = vset.pattern.permute.xlu0 1
    %3505 = vperm.xlu0 %3504, %v3287
    %v3506 = vpop.permute.xlu0 %3505
    %3509 = vset.pattern.permute.xlu0 1
    %3510 = vperm.xlu0 %3509, %v3288
    %v3511 = vpop.permute.xlu0 %3510
    %3514 = vset.pattern.permute.xlu0 1
    %3515 = vperm.xlu0 %3514, %v3289
    %v3516 = vpop.permute.xlu0 %3515
    %3519 = vset.pattern.permute.xlu0 1
    %3520 = vperm.xlu0 %3519, %v3290
    %v3521 = vpop.permute.xlu0 %3520
    %3524 = vset.pattern.permute.xlu0 1
    %3525 = vperm.xlu0 %3524, %v3291
    %v3526 = vpop.permute.xlu0 %3525
    %3529 = vset.pattern.permute.xlu0 1
    %3530 = vperm.xlu0 %3529, %v3292
    %v3531 = vpop.permute.xlu0 %3530
    %3534 = vset.pattern.permute.xlu0 1
    %3535 = vperm.xlu0 %3534, %v3293
    %v3536 = vpop.permute.xlu0 %3535
    %3539 = vset.pattern.permute.xlu0 1
    %3540 = vperm.xlu0 %3539, %v3294
    %v3541 = vpop.permute.xlu0 %3540
    %3544 = vset.pattern.permute.xlu0 1
    %3545 = vperm.xlu0 %3544, %v3295
    %v3546 = vpop.permute.xlu0 %3545
    %3549 = vset.pattern.permute.xlu0 1
    %3550 = vperm.xlu0 %3549, %v3296
    %v3551 = vpop.permute.xlu0 %3550
    %3554 = vset.pattern.permute.xlu0 1
    %3555 = vperm.xlu0 %3554, %v3297
    %v3556 = vpop.permute.xlu0 %3555
    %3559 = vset.pattern.permute.xlu0 1
    %3560 = vperm.xlu0 %3559, %v3298
    %v3561 = vpop.permute.xlu0 %3560
    %3564 = vset.pattern.permute.xlu0 1
    %3565 = vperm.xlu0 %3564, %v3299
    %v3566 = vpop.permute.xlu0 %3565
    %3569 = vset.pattern.permute.xlu0 1
    %3570 = vperm.xlu0 %3569, %v3300
    %v3571 = vpop.permute.xlu0 %3570
    %3574 = vset.pattern.permute.xlu0 1
    %3575 = vperm.xlu0 %3574, %v3301
    %v3576 = vpop.permute.xlu0 %3575
    %3579 = vset.pattern.permute.xlu0 1
    %3580 = vperm.xlu0 %3579, %v3302
    %v3581 = vpop.permute.xlu0 %3580
    %3584 = vset.pattern.permute.xlu0 1
    %3585 = vperm.xlu0 %3584, %v3303
    %v3586 = vpop.permute.xlu0 %3585
    %3589 = vset.pattern.permute.xlu0 1
    %3590 = vperm.xlu0 %3589, %v3304
    %v3591 = vpop.permute.xlu0 %3590
    %3594 = vset.pattern.permute.xlu0 1
    %3595 = vperm.xlu0 %3594, %v3305
    %v3596 = vpop.permute.xlu0 %3595
    %3599 = vset.pattern.permute.xlu0 1
    %3600 = vperm.xlu0 %3599, %v3306
    %v3601 = vpop.permute.xlu0 %3600
    %3604 = vset.pattern.permute.xlu0 1
    %3605 = vperm.xlu0 %3604, %v3307
    %v3606 = vpop.permute.xlu0 %3605
    %3609 = vset.pattern.permute.xlu0 1
    %3610 = vperm.xlu0 %3609, %v3308
    %v3611 = vpop.permute.xlu0 %3610
    %3614 = vset.pattern.permute.xlu0 1
    %3615 = vperm.xlu0 %3614, %v3309
    %v3616 = vpop.permute.xlu0 %3615
    %3619 = vset.pattern.permute.xlu0 1
    %3620 = vperm.xlu0 %3619, %v3310
    %v3621 = vpop.permute.xlu0 %3620
    %v3623 = vadd.f32 %v3455, %v3506
    %v3624 = vadd.f32 %v3456, %v3506
    %v3625 = vadd.f32 %v3457, %v3511
    %v3626 = vadd.f32 %v3458, %v3511
    %v3627 = vadd.f32 %v3459, %v3516
    %v3628 = vadd.f32 %v3460, %v3516
    %v3629 = vadd.f32 %v3461, %v3521
    %v3630 = vadd.f32 %v3462, %v3521
    %v3631 = vadd.f32 %v3463, %v3526
    %v3632 = vadd.f32 %v3464, %v3526
    %v3633 = vadd.f32 %v3465, %v3531
    %v3634 = vadd.f32 %v3466, %v3531
    %v3635 = vadd.f32 %v3467, %v3536
    %v3636 = vadd.f32 %v3468, %v3536
    %v3637 = vadd.f32 %v3469, %v3541
    %v3638 = vadd.f32 %v3470, %v3541
    %v3639 = vadd.f32 %v3471, %v3546
    %v3640 = vadd.f32 %v3472, %v3546
    %v3641 = vadd.f32 %v3473, %v3551
    %v3642 = vadd.f32 %v3474, %v3551
    %v3643 = vadd.f32 %v3475, %v3556
    %v3644 = vadd.f32 %v3476, %v3556
    %v3645 = vadd.f32 %v3477, %v3561
    %v3646 = vadd.f32 %v3478, %v3561
    %v3647 = vadd.f32 %v3479, %v3566
    %v3648 = vadd.f32 %v3480, %v3566
    %v3649 = vadd.f32 %v3481, %v3571
    %v3650 = vadd.f32 %v3482, %v3571
    %v3651 = vadd.f32 %v3483, %v3576
    %v3652 = vadd.f32 %v3484, %v3576
    %v3653 = vadd.f32 %v3485, %v3581
    %v3654 = vadd.f32 %v3486, %v3581
    %v3655 = vadd.f32 %v3487, %v3586
    %v3656 = vadd.f32 %v3488, %v3586
    %v3657 = vadd.f32 %v3489, %v3591
    %v3658 = vadd.f32 %v3490, %v3591
    %v3659 = vadd.f32 %v3491, %v3596
    %v3660 = vadd.f32 %v3492, %v3596
    %v3661 = vadd.f32 %v3493, %v3601
    %v3662 = vadd.f32 %v3494, %v3601
    %v3663 = vadd.f32 %v3495, %v3606
    %v3664 = vadd.f32 %v3496, %v3606
    %v3665 = vadd.f32 %v3497, %v3611
    %v3666 = vadd.f32 %v3498, %v3611
    %v3667 = vadd.f32 %v3499, %v3616
    %v3668 = vadd.f32 %v3500, %v3616
    %v3669 = vadd.f32 %v3501, %v3621
    %v3670 = vadd.f32 %v3502, %v3621
    %v3671 = vmax.f32 %v3623, 0.0
    %v3672 = vmax.f32 %v3624, 0.0
    %v3673 = vmax.f32 %v3625, 0.0
    %v3674 = vmax.f32 %v3626, 0.0
    %v3675 = vmax.f32 %v3627, 0.0
    %v3676 = vmax.f32 %v3628, 0.0
    %v3677 = vmax.f32 %v3629, 0.0
    %v3678 = vmax.f32 %v3630, 0.0
    %v3679 = vmax.f32 %v3631, 0.0
    %v3680 = vmax.f32 %v3632, 0.0
    %v3681 = vmax.f32 %v3633, 0.0
    %v3682 = vmax.f32 %v3634, 0.0
    %v3683 = vmax.f32 %v3635, 0.0
    %v3684 = vmax.f32 %v3636, 0.0
    %v3685 = vmax.f32 %v3637, 0.0
    %v3686 = vmax.f32 %v3638, 0.0
    %v3687 = vmax.f32 %v3639, 0.0
    %v3688 = vmax.f32 %v3640, 0.0
    %v3689 = vmax.f32 %v3641, 0.0
    %v3690 = vmax.f32 %v3642, 0.0
    %v3691 = vmax.f32 %v3643, 0.0
    %v3692 = vmax.f32 %v3644, 0.0
    %v3693 = vmax.f32 %v3645, 0.0
    %v3694 = vmax.f32 %v3646, 0.0
    %v3695 = vmax.f32 %v3647, 0.0
    %v3696 = vmax.f32 %v3648, 0.0
    %v3697 = vmax.f32 %v3649, 0.0
    %v3698 = vmax.f32 %v3650, 0.0
    %v3699 = vmax.f32 %v3651, 0.0
    %v3700 = vmax.f32 %v3652, 0.0
    %v3701 = vmax.f32 %v3653, 0.0
    %v3702 = vmax.f32 %v3654, 0.0
    %v3703 = vmax.f32 %v3655, 0.0
    %v3704 = vmax.f32 %v3656, 0.0
    %v3705 = vmax.f32 %v3657, 0.0
    %v3706 = vmax.f32 %v3658, 0.0
    %v3707 = vmax.f32 %v3659, 0.0
    %v3708 = vmax.f32 %v3660, 0.0
    %v3709 = vmax.f32 %v3661, 0.0
    %v3710 = vmax.f32 %v3662, 0.0
    %v3711 = vmax.f32 %v3663, 0.0
    %v3712 = vmax.f32 %v3664, 0.0
    %v3713 = vmax.f32 %v3665, 0.0
    %v3714 = vmax.f32 %v3666, 0.0
    %v3715 = vmax.f32 %v3667, 0.0
    %v3716 = vmax.f32 %v3668, 0.0
    %v3717 = vmax.f32 %v3669, 0.0
    %v3718 = vmax.f32 %v3670, 0.0
    %3719 = vst [vmem:[#allocation2] sm:$0xff] %v3671
    %3720 = vst.msk [vmem:[#allocation2 + $0x8] sm:$0xff] %vm2679, %v3672
    %3721 = vst [vmem:[#allocation2 + $0x10] sm:$0xff] %v3673
    %3722 = vst.msk [vmem:[#allocation2 + $0x18] sm:$0xff] %vm2679, %v3674
    %3723 = vst [vmem:[#allocation2 + $0x20] sm:$0xff] %v3675
    %3724 = vst.msk [vmem:[#allocation2 + $0x28] sm:$0xff] %vm2679, %v3676
    %3725 = vst [vmem:[#allocation2 + $0x30] sm:$0xff] %v3677
    %3726 = vst.msk [vmem:[#allocation2 + $0x38] sm:$0xff] %vm2679, %v3678
    %3727 = vst [vmem:[#allocation2 + $0x40] sm:$0xff] %v3679
    %3728 = vst.msk [vmem:[#allocation2 + $0x48] sm:$0xff] %vm2679, %v3680
    %3729 = vst [vmem:[#allocation2 + $0x50] sm:$0xff] %v3681
    %3730 = vst.msk [vmem:[#allocation2 + $0x58] sm:$0xff] %vm2679, %v3682
    %3731 = vst [vmem:[#allocation2 + $0x60] sm:$0xff] %v3683
    %3732 = vst.msk [vmem:[#allocation2 + $0x68] sm:$0xff] %vm2679, %v3684
    %3733 = vst [vmem:[#allocation2 + $0x70] sm:$0xff] %v3685
    %3734 = vst.msk [vmem:[#allocation2 + $0x78] sm:$0xff] %vm2679, %v3686
    %3735 = vst [vmem:[#allocation2 + $0x80] sm:$0xff] %v3687
    %3736 = vst.msk [vmem:[#allocation2 + $0x88] sm:$0xff] %vm2679, %v3688
    %3737 = vst [vmem:[#allocation2 + $0x90] sm:$0xff] %v3689
    %3738 = vst.msk [vmem:[#allocation2 + $0x98] sm:$0xff] %vm2679, %v3690
    %3739 = vst [vmem:[#allocation2 + $0xa0] sm:$0xff] %v3691
    %3740 = vst.msk [vmem:[#allocation2 + $0xa8] sm:$0xff] %vm2679, %v3692
    %3741 = vst [vmem:[#allocation2 + $0xb0] sm:$0xff] %v3693
    %3742 = vst.msk [vmem:[#allocation2 + $0xb8] sm:$0xff] %vm2679, %v3694
    %3743 = vst [vmem:[#allocation2 + $0xc0] sm:$0xff] %v3695
    %3744 = vst.msk [vmem:[#allocation2 + $0xc8] sm:$0xff] %vm2679, %v3696
    %3745 = vst [vmem:[#allocation2 + $0xd0] sm:$0xff] %v3697
    %3746 = vst.msk [vmem:[#allocation2 + $0xd8] sm:$0xff] %vm2679, %v3698
    %3747 = vst [vmem:[#allocation2 + $0xe0] sm:$0xff] %v3699
    %3748 = vst.msk [vmem:[#allocation2 + $0xe8] sm:$0xff] %vm2679, %v3700
    %3749 = vst [vmem:[#allocation2 + $0xf0] sm:$0xff] %v3701
    %3750 = vst.msk [vmem:[#allocation2 + $0xf8] sm:$0xff] %vm2679, %v3702
    %3751 = vst [vmem:[#allocation2 + $0x100] sm:$0xff] %v3703
    %3752 = vst.msk [vmem:[#allocation2 + $0x108] sm:$0xff] %vm2679, %v3704
    %3753 = vst [vmem:[#allocation2 + $0x110] sm:$0xff] %v3705
    %3754 = vst.msk [vmem:[#allocation2 + $0x118] sm:$0xff] %vm2679, %v3706
    %3755 = vst [vmem:[#allocation2 + $0x120] sm:$0xff] %v3707
    %3756 = vst.msk [vmem:[#allocation2 + $0x128] sm:$0xff] %vm2679, %v3708
    %3757 = vst [vmem:[#allocation2 + $0x130] sm:$0xff] %v3709
    %3758 = vst.msk [vmem:[#allocation2 + $0x138] sm:$0xff] %vm2679, %v3710
    %3759 = vst [vmem:[#allocation2 + $0x140] sm:$0xff] %v3711
    %3760 = vst.msk [vmem:[#allocation2 + $0x148] sm:$0xff] %vm2679, %v3712
    %3761 = vst [vmem:[#allocation2 + $0x150] sm:$0xff] %v3713
    %3762 = vst.msk [vmem:[#allocation2 + $0x158] sm:$0xff] %vm2679, %v3714
    %3763 = vst [vmem:[#allocation2 + $0x160] sm:$0xff] %v3715
    %3764 = vst.msk [vmem:[#allocation2 + $0x168] sm:$0xff] %vm2679, %v3716
    %3765 = vst [vmem:[#allocation2 + $0x170] sm:$0xff] %v3717
    %3766 = vst.msk [vmem:[#allocation2 + $0x178] sm:$0xff] %vm2679, %v3718
    // Predicated region
    $region14: #{tpu_custom_call.1} parent=1 // pred_check
      _
    $region15: #{tpu_custom_call.1} parent=1 // pred_check_branch
      %3768 = sbr.rel (0) target = $region17
    $region16: #{tpu_custom_call.1} parent=1 // pred_region
      %3770 = vsyncadd [#allocation3], 0
      %s3771 = sshll.u32 [#allocation2], 4
      %s3772 = int_to_ptr.vmem [resolvable:$true] %s3771
      %s3773 = sshll.u32 %s3, 4
      %s3774 = int_to_ptr.hbm [resolvable:$true] %s3773
      %3779 = dma.vmem_to_hbm [thread:$0]  %s3772, 6144, %s3774, [#allocation3], 256, 256, 16
    $region17: #{tpu_custom_call.1} parent=1 // pred_fallthru
      _
    // Predicated region
    $region18: #{tpu_custom_call.1} parent=1 // pred_check
      _
    $region19: #{tpu_custom_call.1} parent=1 // pred_check_branch
      %3781 = sbr.rel (0) target = $region21
    $region20: #{tpu_custom_call.1} parent=1 // pred_region
      %3783 = dma.done [#allocation3], 6144
    $region21: #{tpu_custom_call.1} parent=1 // pred_fallthru
      _
    %3784 = vsyncpa [#allocation3], 1

</llo_original>
